<compile_context>
chip_gen: v5e
topology: v5e:2x2
jax: 0.10.0
libtpu: 0.0.40
codegen_flags: <defaults>
</compile_context>

<pallas_src>
import numpy as np

import jax
import jax.numpy as jnp
from jax.experimental import pallas as pl
from jax.experimental.pallas import tpu as pltpu


# (IC, OC, H) per conv layer; spatial square, stride 2, pad 1, k 3 -> OH = H // 2.
_CONV_CFG = ((1, 2, 80), (2, 4, 40), (4, 8, 20), (8, 16, 10))


def _selection(out_size, in_size):
    """S[k, o, i] = 1 iff i == 2*o - 1 + k (out-of-range rows stay 0 => zero pad)."""
    s = np.zeros((3, out_size, in_size), np.float32)
    o = np.arange(out_size)
    for k in range(3):
        src = 2 * o - 1 + k
        ok = (src >= 0) & (src < in_size)
        s[k, o[ok], src[ok]] = 1.0
    return s


def init_params(key):
    """Torch-layout parameters: conv (OC, IC, 3, 3), fc (out, in), biases (out,)."""
    conv_cfg = [(1, 2), (2, 4), (4, 8), (8, 16)]
    fc_cfg = [(16 * 5 * 5 + 5, 120), (120, 80), (80, 25)]
    params = {}
    keys = jax.random.split(key, 2 * (len(conv_cfg) + len(fc_cfg)))
    ki = 0
    for i, (ic, oc) in enumerate(conv_cfg, start=1):
        bound = 1.0 / float(np.sqrt(ic * 9))
        params[f"conv{i}_w"] = jax.random.uniform(
            keys[ki], (oc, ic, 3, 3), jnp.float32, -bound, bound); ki += 1
        params[f"conv{i}_b"] = jax.random.uniform(
            keys[ki], (oc,), jnp.float32, -bound, bound); ki += 1
    for i, (fin, fout) in enumerate(fc_cfg, start=1):
        bound = 1.0 / float(np.sqrt(fin))
        params[f"fc{i}_w"] = jax.random.uniform(
            keys[ki], (fout, fin), jnp.float32, -bound, bound); ki += 1
        params[f"fc{i}_b"] = jax.random.uniform(
            keys[ki], (fout,), jnp.float32, -bound, bound); ki += 1
    return params


def prepare_params(params, batch_size=2):
    """One-time fold of torch parameters into kernel-ready bf16 matrices."""
    B = batch_size
    prepped = {}
    for idx, (ic, oc, hw) in enumerate(_CONV_CFG, start=1):
        oh = hw // 2
        sh = _selection(oh, hw)                          # (3, OH, H) row select
        sw = _selection(oh, hw)                          # (3, OW, W) col select
        swt = np.transpose(sw, (0, 2, 1))                # (3, W, OW)
        # Block-diagonal batched column selection: rows (b, w) -> cols (b, ow).
        if idx < 4:
            swt_b = np.zeros((3, B * hw, B * oh), np.float32)
            for b in range(B):
                swt_b[:, b * hw:(b + 1) * hw, b * oh:(b + 1) * oh] = swt
        else:
            # Last conv: output columns ordered ow-major (ow*B + b) so fc1 can
            # take contiguous static lane slices per ow.
            swt_b = np.zeros((3, B * hw, oh * B), np.float32)
            for b in range(B):
                swt_b[:, b * hw:(b + 1) * hw, b::B] = swt
        prepped[f"swt{idx}"] = jnp.asarray(swt_b, jnp.bfloat16)

        w = np.asarray(params[f"conv{idx}_w"], np.float32)        # (OC, IC, 3, 3)
        bcv = np.asarray(params[f"conv{idx}_b"], np.float32)      # (OC,)
        # Fold conv weights with the row selection; stack the 3 kw taps on rows:
        # whf[kw, (oc,oh), (ic,ih)] = sum_kh w[oc,ic,kh,kw] * sh[kh,oh,ih]
        whf = np.einsum("oiyx,yph->xopih", w, sh)                 # (3, OC, OH, IC, H)
        prepped[f"whf{idx}"] = jnp.asarray(
            whf.reshape(3 * oc * oh, ic * hw), jnp.bfloat16)      # (3*80, 80)
        prepped[f"bc{idx}"] = jnp.asarray(
            np.repeat(bcv, oh).reshape(oc * oh, 1), jnp.float32)  # (OC*OH, 1)

    # fc1: split into conv part (flatten order folded in) and aux part.
    w1 = np.asarray(params["fc1_w"], np.float32)                  # (120, 405)
    w1c = w1[:, :400].reshape(120, 80, 5)                         # (n, oc*5+oh, ow)
    prepped["w1a"] = jnp.asarray(np.transpose(w1c, (2, 0, 1)), jnp.bfloat16)  # (5,120,80)
    prepped["w1x"] = jnp.asarray(w1[:, 400:], jnp.bfloat16)       # (120, 5)
    prepped["b1c"] = jnp.asarray(
        np.asarray(params["fc1_b"], np.float32).reshape(120, 1), jnp.float32)
    prepped["w2"] = jnp.asarray(params["fc2_w"], jnp.bfloat16)    # (80, 120)
    prepped["b2c"] = jnp.asarray(
        np.asarray(params["fc2_b"], np.float32).reshape(80, 1), jnp.float32)
    prepped["w3"] = jnp.asarray(params["fc3_w"], jnp.bfloat16)    # (25, 80)
    prepped["b3c"] = jnp.asarray(
        np.asarray(params["fc3_b"], np.float32).reshape(25, 1), jnp.float32)
    return prepped


_PARAM_ORDER = ("whf1", "swt1", "bc1", "whf2", "swt2", "bc2",
                "whf3", "swt3", "bc3", "whf4", "swt4", "bc4",
                "w1a", "w1x", "b1c", "w2", "b2c", "w3", "b3c")


def _policy_kernel(x_ref, auxT_ref,
                   whf1, swt1, bc1, whf2, swt2, bc2,
                   whf3, swt3, bc3, whf4, swt4, bc4,
                   w1a_ref, w1x_ref, b1c_ref,
                   w2_ref, b2c_ref, w3_ref, b3c_ref,
                   out_ref):
    f32 = jnp.float32
    bf16 = jnp.bfloat16

    def conv(h, whf, swt, bc):
        # Stage 1: all 3 kw taps in one matmul (taps stacked on LHS rows).
        u = jnp.dot(whf[...], h, preferred_element_type=f32)        # (3*OC*OH, B*W)
        rows = whf.shape[0] // 3
        acc = None
        for k in range(3):                                          # static unroll
            uk = u[k * rows:(k + 1) * rows, :].astype(bf16)         # tile-aligned slice
            c = jnp.dot(uk, swt[k], preferred_element_type=f32)     # (OC*OH, B*OW)
            acc = c if acc is None else acc + c
        return jnp.maximum(acc + bc[...], 0.0)                      # f32 bias + ReLU

    h = x_ref[...]                                                  # bf16 (80, B*80)
    h = conv(h, whf1, swt1, bc1).astype(bf16)                       # (80, B*40)
    h = conv(h, whf2, swt2, bc2).astype(bf16)                       # (80, B*20)
    h = conv(h, whf3, swt3, bc3).astype(bf16)                       # (80, B*10)
    h4 = conv(h, whf4, swt4, bc4).astype(bf16)                      # (80, 5*B) cols = ow*B+b

    batch = out_ref.shape[1]
    n_ow = w1a_ref.shape[0]
    # fc1 = relu( sum_ow W1a[ow] @ h4[:, ow-block]  +  W1x @ aux^T  +  b1 )
    acc1 = jnp.dot(w1x_ref[...], auxT_ref[...], preferred_element_type=f32)   # (120, B)
    for ow in range(n_ow):                                          # static unroll
        col = h4[:, ow * batch:(ow + 1) * batch]                    # (80, B) lane slice
        acc1 = acc1 + jnp.dot(w1a_ref[ow], col, preferred_element_type=f32)
    h1 = jnp.maximum(acc1 + b1c_ref[...], 0.0).astype(bf16)         # (120, B)
    h2 = jnp.maximum(
        jnp.dot(w2_ref[...], h1, preferred_element_type=f32) + b2c_ref[...],
        0.0).astype(bf16)                                           # (80, B)
    h3 = jnp.dot(w3_ref[...], h2, preferred_element_type=f32) + b3c_ref[...]  # (25, B)
    out_ref[...] = h3.astype(out_ref.dtype)


def _full_spec(shape):
    return pl.BlockSpec(shape, lambda i, _n=len(shape): (0,) * _n)


@jax.jit
def policy_forward(prepped, x, aux):
    """x: (B, 1, 80, 80) f32, aux: (B, 5) f32 -> (B, 25) f32 (== Policy.forward)."""
    B, _, H, W = x.shape
    # Fold batch into the lane (width) axis: rows = (ic, ih), cols = (b, iw).
    xb = jnp.transpose(x[:, 0, :, :], (1, 0, 2)).reshape(H, B * W).astype(jnp.bfloat16)
    auxT = aux.T.astype(jnp.bfloat16)                               # (5, B)
    operands = [xb, auxT] + [prepped[k] for k in _PARAM_ORDER]
    out = pl.pallas_call(
        _policy_kernel,
        out_shape=jax.ShapeDtypeStruct((25, B), jnp.float32),
        grid=(1,),
        in_specs=[_full_spec(op.shape) for op in operands],
        out_specs=pl.BlockSpec((25, B), lambda i: (0, 0)),
        compiler_params=pltpu.CompilerParams(dimension_semantics=("arbitrary",)),
        cost_estimate=pl.CostEstimate(
            flops=12_000_000, transcendentals=0, bytes_accessed=420_000),
    )(*operands)
    return out.T                                                    # (B, 25)


def _ref_forward(params, x, aux):
    """Pure-JAX f32 reference mirroring the PyTorch module (correctness check)."""
    h = x
    for i in range(1, 5):
        w = params[f"conv{i}_w"]
        b = params[f"conv{i}_b"]
        h = jax.lax.conv_general_dilated(
            h, w, (2, 2), ((1, 1), (1, 1)),
            dimension_numbers=("NCHW", "OIHW", "NCHW"))
        h = jnp.maximum(h + b.reshape(1, -1, 1, 1), 0.0)
    h = h.reshape(h.shape[0], -1)
    h = jnp.concatenate([h, aux], axis=1)
    h = jnp.maximum(h @ params["fc1_w"].T + params["fc1_b"], 0.0)
    h = jnp.maximum(h @ params["fc2_w"].T + params["fc2_b"], 0.0)
    return h @ params["fc3_w"].T + params["fc3_b"]


if __name__ == "__main__":
    key = jax.random.PRNGKey(0)
    kp, kx, ka = jax.random.split(key, 3)

    # Spatial size 80 is required by fc1 (16*5*5 features after four stride-2 convs).
    B = 2
    params = init_params(kp)
    prepped = prepare_params(params, batch_size=B)

    x = jax.random.normal(kx, (B, 1, 80, 80), jnp.float32)
    aux = jax.random.normal(ka, (B, 5), jnp.float32)

    out = jax.block_until_ready(policy_forward(prepped, x, aux))
    assert out.shape == (B, 25), out.shape

    ref = jax.block_until_ready(_ref_forward(params, x, aux))
    max_err = float(jnp.max(jnp.abs(out - ref)))
    # bf16 matmul operands with f32 accumulation: tolerance tighter than the
    # previous 5e-2 but looser than a pure-f32 port would need.
    assert jnp.allclose(out, ref, atol=3e-2, rtol=3e-2), max_err

    print("KERNEL_OK")
</pallas_src>

<mosaic_0001>
module attributes {stable_mosaic.version = 11 : i64} {
  func.func @_policy_kernel(%arg0: i32, %arg1: memref<80x160xbf16, #tpu.memory_space<vmem>>, %arg2: memref<5x2xbf16, #tpu.memory_space<vmem>>, %arg3: memref<240x80xbf16, #tpu.memory_space<vmem>>, %arg4: memref<3x160x80xbf16, #tpu.memory_space<vmem>>, %arg5: memref<80x1xf32, #tpu.memory_space<vmem>>, %arg6: memref<240x80xbf16, #tpu.memory_space<vmem>>, %arg7: memref<3x80x40xbf16, #tpu.memory_space<vmem>>, %arg8: memref<80x1xf32, #tpu.memory_space<vmem>>, %arg9: memref<240x80xbf16, #tpu.memory_space<vmem>>, %arg10: memref<3x40x20xbf16, #tpu.memory_space<vmem>>, %arg11: memref<80x1xf32, #tpu.memory_space<vmem>>, %arg12: memref<240x80xbf16, #tpu.memory_space<vmem>>, %arg13: memref<3x20x10xbf16, #tpu.memory_space<vmem>>, %arg14: memref<80x1xf32, #tpu.memory_space<vmem>>, %arg15: memref<5x120x80xbf16, #tpu.memory_space<vmem>>, %arg16: memref<120x5xbf16, #tpu.memory_space<vmem>>, %arg17: memref<120x1xf32, #tpu.memory_space<vmem>>, %arg18: memref<80x120xbf16, #tpu.memory_space<vmem>>, %arg19: memref<80x1xf32, #tpu.memory_space<vmem>>, %arg20: memref<25x80xbf16, #tpu.memory_space<vmem>>, %arg21: memref<25x1xf32, #tpu.memory_space<vmem>>, %arg22: memref<25x2xf32, #tpu.memory_space<vmem>>) attributes {dimension_semantics = [#tpu.dimension_semantics<arbitrary>], iteration_bounds = array<i64: 1>, scalar_prefetch = 0 : i64, scratch_operands = 0 : i64, tpu.core_type = #tpu.core_type<tc>, window_params = [{pipeline_mode = #tpu.pipeline_mode<synchronous>, transform_indices = @transform_0, window_bounds = array<i64: 80, 160>}, {pipeline_mode = #tpu.pipeline_mode<synchronous>, transform_indices = @transform_1, window_bounds = array<i64: 5, 2>}, {pipeline_mode = #tpu.pipeline_mode<synchronous>, transform_indices = @transform_2, window_bounds = array<i64: 240, 80>}, {pipeline_mode = #tpu.pipeline_mode<synchronous>, transform_indices = @transform_3, window_bounds = array<i64: 3, 160, 80>}, {pipeline_mode = #tpu.pipeline_mode<synchronous>, transform_indices = @transform_4, window_bounds = array<i64: 80, 1>}, {pipeline_mode = #tpu.pipeline_mode<synchronous>, transform_indices = @transform_5, window_bounds = array<i64: 240, 80>}, {pipeline_mode = #tpu.pipeline_mode<synchronous>, transform_indices = @transform_6, window_bounds = array<i64: 3, 80, 40>}, {pipeline_mode = #tpu.pipeline_mode<synchronous>, transform_indices = @transform_7, window_bounds = array<i64: 80, 1>}, {pipeline_mode = #tpu.pipeline_mode<synchronous>, transform_indices = @transform_8, window_bounds = array<i64: 240, 80>}, {pipeline_mode = #tpu.pipeline_mode<synchronous>, transform_indices = @transform_9, window_bounds = array<i64: 3, 40, 20>}, {pipeline_mode = #tpu.pipeline_mode<synchronous>, transform_indices = @transform_10, window_bounds = array<i64: 80, 1>}, {pipeline_mode = #tpu.pipeline_mode<synchronous>, transform_indices = @transform_11, window_bounds = array<i64: 240, 80>}, {pipeline_mode = #tpu.pipeline_mode<synchronous>, transform_indices = @transform_12, window_bounds = array<i64: 3, 20, 10>}, {pipeline_mode = #tpu.pipeline_mode<synchronous>, transform_indices = @transform_13, window_bounds = array<i64: 80, 1>}, {pipeline_mode = #tpu.pipeline_mode<synchronous>, transform_indices = @transform_14, window_bounds = array<i64: 5, 120, 80>}, {pipeline_mode = #tpu.pipeline_mode<synchronous>, transform_indices = @transform_15, window_bounds = array<i64: 120, 5>}, {pipeline_mode = #tpu.pipeline_mode<synchronous>, transform_indices = @transform_16, window_bounds = array<i64: 120, 1>}, {pipeline_mode = #tpu.pipeline_mode<synchronous>, transform_indices = @transform_17, window_bounds = array<i64: 80, 120>}, {pipeline_mode = #tpu.pipeline_mode<synchronous>, transform_indices = @transform_18, window_bounds = array<i64: 80, 1>}, {pipeline_mode = #tpu.pipeline_mode<synchronous>, transform_indices = @transform_19, window_bounds = array<i64: 25, 80>}, {pipeline_mode = #tpu.pipeline_mode<synchronous>, transform_indices = @transform_20, window_bounds = array<i64: 25, 1>}, {pipeline_mode = #tpu.pipeline_mode<synchronous>, transform_indices = @transform_21, window_bounds = array<i64: 25, 2>}]} {
    %c0 = arith.constant 0 : index
    %c0_0 = arith.constant 0 : index
    %0 = vector.load %arg1[%c0, %c0_0] : memref<80x160xbf16, #tpu.memory_space<vmem>>, vector<80x160xbf16>
    %c0_1 = arith.constant 0 : index
    %c0_2 = arith.constant 0 : index
    %1 = vector.load %arg3[%c0_1, %c0_2] : memref<240x80xbf16, #tpu.memory_space<vmem>>, vector<240x80xbf16>
    %cst = arith.constant dense<0.000000e+00> : vector<240x160xf32>
    %2 = tpu.matmul %1, %0, %cst {dimension_numbers = #tpu.dot_dimension_numbers<[1], [0], [0], [1], [0, 0, 1, 1], [], []>} : vector<240x80xbf16>, vector<80x160xbf16>, vector<240x160xf32> -> vector<240x160xf32>
    %3 = vector.extract_strided_slice %2 {offsets = [0, 0], sizes = [80, 160], strides = [1, 1]} : vector<240x160xf32> to vector<80x160xf32>
    %4 = arith.truncf %3 : vector<80x160xf32> to vector<80x160xbf16>
    %c0_3 = arith.constant 0 : index
    %c0_4 = arith.constant 0 : index
    %c0_5 = arith.constant 0 : index
    %5 = vector.load %arg4[%c0_3, %c0_4, %c0_5] : memref<3x160x80xbf16, #tpu.memory_space<vmem>>, vector<1x160x80xbf16>
    %6 = vector.shape_cast %5 : vector<1x160x80xbf16> to vector<160x80xbf16>
    %cst_6 = arith.constant dense<0.000000e+00> : vector<80x80xf32>
    %7 = tpu.matmul %4, %6, %cst_6 {dimension_numbers = #tpu.dot_dimension_numbers<[1], [0], [0], [1], [0, 0, 1, 1], [], []>} : vector<80x160xbf16>, vector<160x80xbf16>, vector<80x80xf32> -> vector<80x80xf32>
    %8 = vector.extract_strided_slice %2 {offsets = [80, 0], sizes = [80, 160], strides = [1, 1]} : vector<240x160xf32> to vector<80x160xf32>
    %9 = arith.truncf %8 : vector<80x160xf32> to vector<80x160xbf16>
    %c1 = arith.constant 1 : index
    %c0_7 = arith.constant 0 : index
    %c0_8 = arith.constant 0 : index
    %10 = vector.load %arg4[%c1, %c0_7, %c0_8] : memref<3x160x80xbf16, #tpu.memory_space<vmem>>, vector<1x160x80xbf16>
    %11 = vector.shape_cast %10 : vector<1x160x80xbf16> to vector<160x80xbf16>
    %cst_9 = arith.constant dense<0.000000e+00> : vector<80x80xf32>
    %12 = tpu.matmul %9, %11, %cst_9 {dimension_numbers = #tpu.dot_dimension_numbers<[1], [0], [0], [1], [0, 0, 1, 1], [], []>} : vector<80x160xbf16>, vector<160x80xbf16>, vector<80x80xf32> -> vector<80x80xf32>
    %13 = arith.addf %7, %12 : vector<80x80xf32>
    %14 = vector.extract_strided_slice %2 {offsets = [160, 0], sizes = [80, 160], strides = [1, 1]} : vector<240x160xf32> to vector<80x160xf32>
    %15 = arith.truncf %14 : vector<80x160xf32> to vector<80x160xbf16>
    %c2 = arith.constant 2 : index
    %c0_10 = arith.constant 0 : index
    %c0_11 = arith.constant 0 : index
    %16 = vector.load %arg4[%c2, %c0_10, %c0_11] : memref<3x160x80xbf16, #tpu.memory_space<vmem>>, vector<1x160x80xbf16>
    %17 = vector.shape_cast %16 : vector<1x160x80xbf16> to vector<160x80xbf16>
    %cst_12 = arith.constant dense<0.000000e+00> : vector<80x80xf32>
    %18 = tpu.matmul %15, %17, %cst_12 {dimension_numbers = #tpu.dot_dimension_numbers<[1], [0], [0], [1], [0, 0, 1, 1], [], []>} : vector<80x160xbf16>, vector<160x80xbf16>, vector<80x80xf32> -> vector<80x80xf32>
    %19 = arith.addf %13, %18 : vector<80x80xf32>
    %c0_13 = arith.constant 0 : index
    %c0_14 = arith.constant 0 : index
    %20 = vector.load %arg5[%c0_13, %c0_14] : memref<80x1xf32, #tpu.memory_space<vmem>>, vector<80x1xf32>
    %21 = vector.broadcast %20 : vector<80x1xf32> to vector<80x80xf32>
    %22 = arith.addf %19, %21 : vector<80x80xf32>
    %cst_15 = arith.constant 0.000000e+00 : f32
    %23 = vector.broadcast %cst_15 : f32 to vector<80x80xf32>
    %24 = arith.maximumf %22, %23 : vector<80x80xf32>
    %25 = arith.truncf %24 : vector<80x80xf32> to vector<80x80xbf16>
    %c0_16 = arith.constant 0 : index
    %c0_17 = arith.constant 0 : index
    %26 = vector.load %arg6[%c0_16, %c0_17] : memref<240x80xbf16, #tpu.memory_space<vmem>>, vector<240x80xbf16>
    %cst_18 = arith.constant dense<0.000000e+00> : vector<240x80xf32>
    %27 = tpu.matmul %26, %25, %cst_18 {dimension_numbers = #tpu.dot_dimension_numbers<[1], [0], [0], [1], [0, 0, 1, 1], [], []>} : vector<240x80xbf16>, vector<80x80xbf16>, vector<240x80xf32> -> vector<240x80xf32>
    %28 = vector.extract_strided_slice %27 {offsets = [0, 0], sizes = [80, 80], strides = [1, 1]} : vector<240x80xf32> to vector<80x80xf32>
    %29 = arith.truncf %28 : vector<80x80xf32> to vector<80x80xbf16>
    %c0_19 = arith.constant 0 : index
    %c0_20 = arith.constant 0 : index
    %c0_21 = arith.constant 0 : index
    %30 = vector.load %arg7[%c0_19, %c0_20, %c0_21] : memref<3x80x40xbf16, #tpu.memory_space<vmem>>, vector<1x80x40xbf16>
    %31 = vector.shape_cast %30 : vector<1x80x40xbf16> to vector<80x40xbf16>
    %cst_22 = arith.constant dense<0.000000e+00> : vector<80x40xf32>
    %32 = tpu.matmul %29, %31, %cst_22 {dimension_numbers = #tpu.dot_dimension_numbers<[1], [0], [0], [1], [0, 0, 1, 1], [], []>} : vector<80x80xbf16>, vector<80x40xbf16>, vector<80x40xf32> -> vector<80x40xf32>
    %33 = vector.extract_strided_slice %27 {offsets = [80, 0], sizes = [80, 80], strides = [1, 1]} : vector<240x80xf32> to vector<80x80xf32>
    %34 = arith.truncf %33 : vector<80x80xf32> to vector<80x80xbf16>
    %c1_23 = arith.constant 1 : index
    %c0_24 = arith.constant 0 : index
    %c0_25 = arith.constant 0 : index
    %35 = vector.load %arg7[%c1_23, %c0_24, %c0_25] : memref<3x80x40xbf16, #tpu.memory_space<vmem>>, vector<1x80x40xbf16>
    %36 = vector.shape_cast %35 : vector<1x80x40xbf16> to vector<80x40xbf16>
    %cst_26 = arith.constant dense<0.000000e+00> : vector<80x40xf32>
    %37 = tpu.matmul %34, %36, %cst_26 {dimension_numbers = #tpu.dot_dimension_numbers<[1], [0], [0], [1], [0, 0, 1, 1], [], []>} : vector<80x80xbf16>, vector<80x40xbf16>, vector<80x40xf32> -> vector<80x40xf32>
    %38 = arith.addf %32, %37 : vector<80x40xf32>
    %39 = vector.extract_strided_slice %27 {offsets = [160, 0], sizes = [80, 80], strides = [1, 1]} : vector<240x80xf32> to vector<80x80xf32>
    %40 = arith.truncf %39 : vector<80x80xf32> to vector<80x80xbf16>
    %c2_27 = arith.constant 2 : index
    %c0_28 = arith.constant 0 : index
    %c0_29 = arith.constant 0 : index
    %41 = vector.load %arg7[%c2_27, %c0_28, %c0_29] : memref<3x80x40xbf16, #tpu.memory_space<vmem>>, vector<1x80x40xbf16>
    %42 = vector.shape_cast %41 : vector<1x80x40xbf16> to vector<80x40xbf16>
    %cst_30 = arith.constant dense<0.000000e+00> : vector<80x40xf32>
    %43 = tpu.matmul %40, %42, %cst_30 {dimension_numbers = #tpu.dot_dimension_numbers<[1], [0], [0], [1], [0, 0, 1, 1], [], []>} : vector<80x80xbf16>, vector<80x40xbf16>, vector<80x40xf32> -> vector<80x40xf32>
    %44 = arith.addf %38, %43 : vector<80x40xf32>
    %c0_31 = arith.constant 0 : index
    %c0_32 = arith.constant 0 : index
    %45 = vector.load %arg8[%c0_31, %c0_32] : memref<80x1xf32, #tpu.memory_space<vmem>>, vector<80x1xf32>
    %46 = vector.broadcast %45 : vector<80x1xf32> to vector<80x40xf32>
    %47 = arith.addf %44, %46 : vector<80x40xf32>
    %cst_33 = arith.constant 0.000000e+00 : f32
    %48 = vector.broadcast %cst_33 : f32 to vector<80x40xf32>
    %49 = arith.maximumf %47, %48 : vector<80x40xf32>
    %50 = arith.truncf %49 : vector<80x40xf32> to vector<80x40xbf16>
    %c0_34 = arith.constant 0 : index
    %c0_35 = arith.constant 0 : index
    %51 = vector.load %arg9[%c0_34, %c0_35] : memref<240x80xbf16, #tpu.memory_space<vmem>>, vector<240x80xbf16>
    %cst_36 = arith.constant dense<0.000000e+00> : vector<240x40xf32>
    %52 = tpu.matmul %51, %50, %cst_36 {dimension_numbers = #tpu.dot_dimension_numbers<[1], [0], [0], [1], [0, 0, 1, 1], [], []>} : vector<240x80xbf16>, vector<80x40xbf16>, vector<240x40xf32> -> vector<240x40xf32>
    %53 = vector.extract_strided_slice %52 {offsets = [0, 0], sizes = [80, 40], strides = [1, 1]} : vector<240x40xf32> to vector<80x40xf32>
    %54 = arith.truncf %53 : vector<80x40xf32> to vector<80x40xbf16>
    %c0_37 = arith.constant 0 : index
    %c0_38 = arith.constant 0 : index
    %c0_39 = arith.constant 0 : index
    %55 = vector.load %arg10[%c0_37, %c0_38, %c0_39] : memref<3x40x20xbf16, #tpu.memory_space<vmem>>, vector<1x40x20xbf16>
    %56 = vector.shape_cast %55 : vector<1x40x20xbf16> to vector<40x20xbf16>
    %cst_40 = arith.constant dense<0.000000e+00> : vector<80x20xf32>
    %57 = tpu.matmul %54, %56, %cst_40 {dimension_numbers = #tpu.dot_dimension_numbers<[1], [0], [0], [1], [0, 0, 1, 1], [], []>} : vector<80x40xbf16>, vector<40x20xbf16>, vector<80x20xf32> -> vector<80x20xf32>
    %58 = vector.extract_strided_slice %52 {offsets = [80, 0], sizes = [80, 40], strides = [1, 1]} : vector<240x40xf32> to vector<80x40xf32>
    %59 = arith.truncf %58 : vector<80x40xf32> to vector<80x40xbf16>
    %c1_41 = arith.constant 1 : index
    %c0_42 = arith.constant 0 : index
    %c0_43 = arith.constant 0 : index
    %60 = vector.load %arg10[%c1_41, %c0_42, %c0_43] : memref<3x40x20xbf16, #tpu.memory_space<vmem>>, vector<1x40x20xbf16>
    %61 = vector.shape_cast %60 : vector<1x40x20xbf16> to vector<40x20xbf16>
    %cst_44 = arith.constant dense<0.000000e+00> : vector<80x20xf32>
    %62 = tpu.matmul %59, %61, %cst_44 {dimension_numbers = #tpu.dot_dimension_numbers<[1], [0], [0], [1], [0, 0, 1, 1], [], []>} : vector<80x40xbf16>, vector<40x20xbf16>, vector<80x20xf32> -> vector<80x20xf32>
    %63 = arith.addf %57, %62 : vector<80x20xf32>
    %64 = vector.extract_strided_slice %52 {offsets = [160, 0], sizes = [80, 40], strides = [1, 1]} : vector<240x40xf32> to vector<80x40xf32>
    %65 = arith.truncf %64 : vector<80x40xf32> to vector<80x40xbf16>
    %c2_45 = arith.constant 2 : index
    %c0_46 = arith.constant 0 : index
    %c0_47 = arith.constant 0 : index
    %66 = vector.load %arg10[%c2_45, %c0_46, %c0_47] : memref<3x40x20xbf16, #tpu.memory_space<vmem>>, vector<1x40x20xbf16>
    %67 = vector.shape_cast %66 : vector<1x40x20xbf16> to vector<40x20xbf16>
    %cst_48 = arith.constant dense<0.000000e+00> : vector<80x20xf32>
    %68 = tpu.matmul %65, %67, %cst_48 {dimension_numbers = #tpu.dot_dimension_numbers<[1], [0], [0], [1], [0, 0, 1, 1], [], []>} : vector<80x40xbf16>, vector<40x20xbf16>, vector<80x20xf32> -> vector<80x20xf32>
    %69 = arith.addf %63, %68 : vector<80x20xf32>
    %c0_49 = arith.constant 0 : index
    %c0_50 = arith.constant 0 : index
    %70 = vector.load %arg11[%c0_49, %c0_50] : memref<80x1xf32, #tpu.memory_space<vmem>>, vector<80x1xf32>
    %71 = vector.broadcast %70 : vector<80x1xf32> to vector<80x20xf32>
    %72 = arith.addf %69, %71 : vector<80x20xf32>
    %cst_51 = arith.constant 0.000000e+00 : f32
    %73 = vector.broadcast %cst_51 : f32 to vector<80x20xf32>
    %74 = arith.maximumf %72, %73 : vector<80x20xf32>
    %75 = arith.truncf %74 : vector<80x20xf32> to vector<80x20xbf16>
    %c0_52 = arith.constant 0 : index
    %c0_53 = arith.constant 0 : index
    %76 = vector.load %arg12[%c0_52, %c0_53] : memref<240x80xbf16, #tpu.memory_space<vmem>>, vector<240x80xbf16>
    %cst_54 = arith.constant dense<0.000000e+00> : vector<240x20xf32>
    %77 = tpu.matmul %76, %75, %cst_54 {dimension_numbers = #tpu.dot_dimension_numbers<[1], [0], [0], [1], [0, 0, 1, 1], [], []>} : vector<240x80xbf16>, vector<80x20xbf16>, vector<240x20xf32> -> vector<240x20xf32>
    %78 = vector.extract_strided_slice %77 {offsets = [0, 0], sizes = [80, 20], strides = [1, 1]} : vector<240x20xf32> to vector<80x20xf32>
    %79 = arith.truncf %78 : vector<80x20xf32> to vector<80x20xbf16>
    %c0_55 = arith.constant 0 : index
    %c0_56 = arith.constant 0 : index
    %c0_57 = arith.constant 0 : index
    %80 = vector.load %arg13[%c0_55, %c0_56, %c0_57] : memref<3x20x10xbf16, #tpu.memory_space<vmem>>, vector<1x20x10xbf16>
    %81 = vector.shape_cast %80 : vector<1x20x10xbf16> to vector<20x10xbf16>
    %cst_58 = arith.constant dense<0.000000e+00> : vector<80x10xf32>
    %82 = tpu.matmul %79, %81, %cst_58 {dimension_numbers = #tpu.dot_dimension_numbers<[1], [0], [0], [1], [0, 0, 1, 1], [], []>} : vector<80x20xbf16>, vector<20x10xbf16>, vector<80x10xf32> -> vector<80x10xf32>
    %83 = vector.extract_strided_slice %77 {offsets = [80, 0], sizes = [80, 20], strides = [1, 1]} : vector<240x20xf32> to vector<80x20xf32>
    %84 = arith.truncf %83 : vector<80x20xf32> to vector<80x20xbf16>
    %c1_59 = arith.constant 1 : index
    %c0_60 = arith.constant 0 : index
    %c0_61 = arith.constant 0 : index
    %85 = vector.load %arg13[%c1_59, %c0_60, %c0_61] : memref<3x20x10xbf16, #tpu.memory_space<vmem>>, vector<1x20x10xbf16>
    %86 = vector.shape_cast %85 : vector<1x20x10xbf16> to vector<20x10xbf16>
    %cst_62 = arith.constant dense<0.000000e+00> : vector<80x10xf32>
    %87 = tpu.matmul %84, %86, %cst_62 {dimension_numbers = #tpu.dot_dimension_numbers<[1], [0], [0], [1], [0, 0, 1, 1], [], []>} : vector<80x20xbf16>, vector<20x10xbf16>, vector<80x10xf32> -> vector<80x10xf32>
    %88 = arith.addf %82, %87 : vector<80x10xf32>
    %89 = vector.extract_strided_slice %77 {offsets = [160, 0], sizes = [80, 20], strides = [1, 1]} : vector<240x20xf32> to vector<80x20xf32>
    %90 = arith.truncf %89 : vector<80x20xf32> to vector<80x20xbf16>
    %c2_63 = arith.constant 2 : index
    %c0_64 = arith.constant 0 : index
    %c0_65 = arith.constant 0 : index
    %91 = vector.load %arg13[%c2_63, %c0_64, %c0_65] : memref<3x20x10xbf16, #tpu.memory_space<vmem>>, vector<1x20x10xbf16>
    %92 = vector.shape_cast %91 : vector<1x20x10xbf16> to vector<20x10xbf16>
    %cst_66 = arith.constant dense<0.000000e+00> : vector<80x10xf32>
    %93 = tpu.matmul %90, %92, %cst_66 {dimension_numbers = #tpu.dot_dimension_numbers<[1], [0], [0], [1], [0, 0, 1, 1], [], []>} : vector<80x20xbf16>, vector<20x10xbf16>, vector<80x10xf32> -> vector<80x10xf32>
    %94 = arith.addf %88, %93 : vector<80x10xf32>
    %c0_67 = arith.constant 0 : index
    %c0_68 = arith.constant 0 : index
    %95 = vector.load %arg14[%c0_67, %c0_68] : memref<80x1xf32, #tpu.memory_space<vmem>>, vector<80x1xf32>
    %96 = vector.broadcast %95 : vector<80x1xf32> to vector<80x10xf32>
    %97 = arith.addf %94, %96 : vector<80x10xf32>
    %cst_69 = arith.constant 0.000000e+00 : f32
    %98 = vector.broadcast %cst_69 : f32 to vector<80x10xf32>
    %99 = arith.maximumf %97, %98 : vector<80x10xf32>
    %100 = arith.truncf %99 : vector<80x10xf32> to vector<80x10xbf16>
    %c0_70 = arith.constant 0 : index
    %c0_71 = arith.constant 0 : index
    %101 = vector.load %arg16[%c0_70, %c0_71] : memref<120x5xbf16, #tpu.memory_space<vmem>>, vector<120x5xbf16>
    %c0_72 = arith.constant 0 : index
    %c0_73 = arith.constant 0 : index
    %102 = vector.load %arg2[%c0_72, %c0_73] : memref<5x2xbf16, #tpu.memory_space<vmem>>, vector<5x2xbf16>
    %cst_74 = arith.constant dense<0.000000e+00> : vector<120x2xf32>
    %103 = tpu.matmul %101, %102, %cst_74 {dimension_numbers = #tpu.dot_dimension_numbers<[1], [0], [0], [1], [0, 0, 1, 1], [], []>} : vector<120x5xbf16>, vector<5x2xbf16>, vector<120x2xf32> -> vector<120x2xf32>
    %104 = vector.extract_strided_slice %100 {offsets = [0, 0], sizes = [80, 2], strides = [1, 1]} : vector<80x10xbf16> to vector<80x2xbf16>
    %c0_75 = arith.constant 0 : index
    %c0_76 = arith.constant 0 : index
    %c0_77 = arith.constant 0 : index
    %105 = vector.load %arg15[%c0_75, %c0_76, %c0_77] : memref<5x120x80xbf16, #tpu.memory_space<vmem>>, vector<1x120x80xbf16>
    %106 = vector.shape_cast %105 : vector<1x120x80xbf16> to vector<120x80xbf16>
    %cst_78 = arith.constant dense<0.000000e+00> : vector<120x2xf32>
    %107 = tpu.matmul %106, %104, %cst_78 {dimension_numbers = #tpu.dot_dimension_numbers<[1], [0], [0], [1], [0, 0, 1, 1], [], []>} : vector<120x80xbf16>, vector<80x2xbf16>, vector<120x2xf32> -> vector<120x2xf32>
    %108 = arith.addf %103, %107 : vector<120x2xf32>
    %109 = vector.extract_strided_slice %100 {offsets = [0, 2], sizes = [80, 2], strides = [1, 1]} : vector<80x10xbf16> to vector<80x2xbf16>
    %c1_79 = arith.constant 1 : index
    %c0_80 = arith.constant 0 : index
    %c0_81 = arith.constant 0 : index
    %110 = vector.load %arg15[%c1_79, %c0_80, %c0_81] : memref<5x120x80xbf16, #tpu.memory_space<vmem>>, vector<1x120x80xbf16>
    %111 = vector.shape_cast %110 : vector<1x120x80xbf16> to vector<120x80xbf16>
    %cst_82 = arith.constant dense<0.000000e+00> : vector<120x2xf32>
    %112 = tpu.matmul %111, %109, %cst_82 {dimension_numbers = #tpu.dot_dimension_numbers<[1], [0], [0], [1], [0, 0, 1, 1], [], []>} : vector<120x80xbf16>, vector<80x2xbf16>, vector<120x2xf32> -> vector<120x2xf32>
    %113 = arith.addf %108, %112 : vector<120x2xf32>
    %114 = vector.extract_strided_slice %100 {offsets = [0, 4], sizes = [80, 2], strides = [1, 1]} : vector<80x10xbf16> to vector<80x2xbf16>
    %c2_83 = arith.constant 2 : index
    %c0_84 = arith.constant 0 : index
    %c0_85 = arith.constant 0 : index
    %115 = vector.load %arg15[%c2_83, %c0_84, %c0_85] : memref<5x120x80xbf16, #tpu.memory_space<vmem>>, vector<1x120x80xbf16>
    %116 = vector.shape_cast %115 : vector<1x120x80xbf16> to vector<120x80xbf16>
    %cst_86 = arith.constant dense<0.000000e+00> : vector<120x2xf32>
    %117 = tpu.matmul %116, %114, %cst_86 {dimension_numbers = #tpu.dot_dimension_numbers<[1], [0], [0], [1], [0, 0, 1, 1], [], []>} : vector<120x80xbf16>, vector<80x2xbf16>, vector<120x2xf32> -> vector<120x2xf32>
    %118 = arith.addf %113, %117 : vector<120x2xf32>
    %119 = vector.extract_strided_slice %100 {offsets = [0, 6], sizes = [80, 2], strides = [1, 1]} : vector<80x10xbf16> to vector<80x2xbf16>
    %c3 = arith.constant 3 : index
    %c0_87 = arith.constant 0 : index
    %c0_88 = arith.constant 0 : index
    %120 = vector.load %arg15[%c3, %c0_87, %c0_88] : memref<5x120x80xbf16, #tpu.memory_space<vmem>>, vector<1x120x80xbf16>
    %121 = vector.shape_cast %120 : vector<1x120x80xbf16> to vector<120x80xbf16>
    %cst_89 = arith.constant dense<0.000000e+00> : vector<120x2xf32>
    %122 = tpu.matmul %121, %119, %cst_89 {dimension_numbers = #tpu.dot_dimension_numbers<[1], [0], [0], [1], [0, 0, 1, 1], [], []>} : vector<120x80xbf16>, vector<80x2xbf16>, vector<120x2xf32> -> vector<120x2xf32>
    %123 = arith.addf %118, %122 : vector<120x2xf32>
    %124 = vector.extract_strided_slice %100 {offsets = [0, 8], sizes = [80, 2], strides = [1, 1]} : vector<80x10xbf16> to vector<80x2xbf16>
    %c4 = arith.constant 4 : index
    %c0_90 = arith.constant 0 : index
    %c0_91 = arith.constant 0 : index
    %125 = vector.load %arg15[%c4, %c0_90, %c0_91] : memref<5x120x80xbf16, #tpu.memory_space<vmem>>, vector<1x120x80xbf16>
    %126 = vector.shape_cast %125 : vector<1x120x80xbf16> to vector<120x80xbf16>
    %cst_92 = arith.constant dense<0.000000e+00> : vector<120x2xf32>
    %127 = tpu.matmul %126, %124, %cst_92 {dimension_numbers = #tpu.dot_dimension_numbers<[1], [0], [0], [1], [0, 0, 1, 1], [], []>} : vector<120x80xbf16>, vector<80x2xbf16>, vector<120x2xf32> -> vector<120x2xf32>
    %128 = arith.addf %123, %127 : vector<120x2xf32>
    %c0_93 = arith.constant 0 : index
    %c0_94 = arith.constant 0 : index
    %129 = vector.load %arg17[%c0_93, %c0_94] : memref<120x1xf32, #tpu.memory_space<vmem>>, vector<120x1xf32>
    %130 = vector.broadcast %129 : vector<120x1xf32> to vector<120x2xf32>
    %131 = arith.addf %128, %130 : vector<120x2xf32>
    %cst_95 = arith.constant 0.000000e+00 : f32
    %132 = vector.broadcast %cst_95 : f32 to vector<120x2xf32>
    %133 = arith.maximumf %131, %132 : vector<120x2xf32>
    %134 = arith.truncf %133 : vector<120x2xf32> to vector<120x2xbf16>
    %c0_96 = arith.constant 0 : index
    %c0_97 = arith.constant 0 : index
    %135 = vector.load %arg18[%c0_96, %c0_97] : memref<80x120xbf16, #tpu.memory_space<vmem>>, vector<80x120xbf16>
    %cst_98 = arith.constant dense<0.000000e+00> : vector<80x2xf32>
    %136 = tpu.matmul %135, %134, %cst_98 {dimension_numbers = #tpu.dot_dimension_numbers<[1], [0], [0], [1], [0, 0, 1, 1], [], []>} : vector<80x120xbf16>, vector<120x2xbf16>, vector<80x2xf32> -> vector<80x2xf32>
    %c0_99 = arith.constant 0 : index
    %c0_100 = arith.constant 0 : index
    %137 = vector.load %arg19[%c0_99, %c0_100] : memref<80x1xf32, #tpu.memory_space<vmem>>, vector<80x1xf32>
    %138 = vector.broadcast %137 : vector<80x1xf32> to vector<80x2xf32>
    %139 = arith.addf %136, %138 : vector<80x2xf32>
    %cst_101 = arith.constant 0.000000e+00 : f32
    %140 = vector.broadcast %cst_101 : f32 to vector<80x2xf32>
    %141 = arith.maximumf %139, %140 : vector<80x2xf32>
    %142 = arith.truncf %141 : vector<80x2xf32> to vector<80x2xbf16>
    %c0_102 = arith.constant 0 : index
    %c0_103 = arith.constant 0 : index
    %143 = vector.load %arg20[%c0_102, %c0_103] : memref<25x80xbf16, #tpu.memory_space<vmem>>, vector<25x80xbf16>
    %cst_104 = arith.constant dense<0.000000e+00> : vector<25x2xf32>
    %144 = tpu.matmul %143, %142, %cst_104 {dimension_numbers = #tpu.dot_dimension_numbers<[1], [0], [0], [1], [0, 0, 1, 1], [], []>} : vector<25x80xbf16>, vector<80x2xbf16>, vector<25x2xf32> -> vector<25x2xf32>
    %c0_105 = arith.constant 0 : index
    %c0_106 = arith.constant 0 : index
    %145 = vector.load %arg21[%c0_105, %c0_106] : memref<25x1xf32, #tpu.memory_space<vmem>>, vector<25x1xf32>
    %146 = vector.broadcast %145 : vector<25x1xf32> to vector<25x2xf32>
    %147 = arith.addf %144, %146 : vector<25x2xf32>
    %c0_107 = arith.constant 0 : index
    %c0_108 = arith.constant 0 : index
    %148 = vector.load %arg22[%c0_107, %c0_108] : memref<25x2xf32, #tpu.memory_space<vmem>>, vector<25x2xf32>
    tpu.vector_store %arg22[%c0_107, %c0_108], %147 {strides = array<i32>} : memref<25x2xf32, #tpu.memory_space<vmem>>, vector<25x2xf32>,
    return
  }
  func.func @transform_0(%arg0: i32) -> (i32, i32) {
    %c0_i32 = arith.constant 0 : i32
    %c0_i32_0 = arith.constant 0 : i32
    %c0_i32_1 = arith.constant 0 : i32
    return %c0_i32, %c0_i32_0 : i32, i32
  }
  func.func @transform_1(%arg0: i32) -> (i32, i32) {
    %c0_i32 = arith.constant 0 : i32
    %c0_i32_0 = arith.constant 0 : i32
    %c0_i32_1 = arith.constant 0 : i32
    return %c0_i32, %c0_i32_0 : i32, i32
  }
  func.func @transform_2(%arg0: i32) -> (i32, i32) {
    %c0_i32 = arith.constant 0 : i32
    %c0_i32_0 = arith.constant 0 : i32
    %c0_i32_1 = arith.constant 0 : i32
    return %c0_i32, %c0_i32_0 : i32, i32
  }
  func.func @transform_3(%arg0: i32) -> (i32, i32, i32) {
    %c0_i32 = arith.constant 0 : i32
    %c0_i32_0 = arith.constant 0 : i32
    %c0_i32_1 = arith.constant 0 : i32
    %c0_i32_2 = arith.constant 0 : i32
    return %c0_i32, %c0_i32_0, %c0_i32_1 : i32, i32, i32
  }
  func.func @transform_4(%arg0: i32) -> (i32, i32) {
    %c0_i32 = arith.constant 0 : i32
    %c0_i32_0 = arith.constant 0 : i32
    %c0_i32_1 = arith.constant 0 : i32
    return %c0_i32, %c0_i32_0 : i32, i32
  }
  func.func @transform_5(%arg0: i32) -> (i32, i32) {
    %c0_i32 = arith.constant 0 : i32
    %c0_i32_0 = arith.constant 0 : i32
    %c0_i32_1 = arith.constant 0 : i32
    return %c0_i32, %c0_i32_0 : i32, i32
  }
  func.func @transform_6(%arg0: i32) -> (i32, i32, i32) {
    %c0_i32 = arith.constant 0 : i32
    %c0_i32_0 = arith.constant 0 : i32
    %c0_i32_1 = arith.constant 0 : i32
    %c0_i32_2 = arith.constant 0 : i32
    return %c0_i32, %c0_i32_0, %c0_i32_1 : i32, i32, i32
  }
  func.func @transform_7(%arg0: i32) -> (i32, i32) {
    %c0_i32 = arith.constant 0 : i32
    %c0_i32_0 = arith.constant 0 : i32
    %c0_i32_1 = arith.constant 0 : i32
    return %c0_i32, %c0_i32_0 : i32, i32
  }
  func.func @transform_8(%arg0: i32) -> (i32, i32) {
    %c0_i32 = arith.constant 0 : i32
    %c0_i32_0 = arith.constant 0 : i32
    %c0_i32_1 = arith.constant 0 : i32
    return %c0_i32, %c0_i32_0 : i32, i32
  }
  func.func @transform_9(%arg0: i32) -> (i32, i32, i32) {
    %c0_i32 = arith.constant 0 : i32
    %c0_i32_0 = arith.constant 0 : i32
    %c0_i32_1 = arith.constant 0 : i32
    %c0_i32_2 = arith.constant 0 : i32
    return %c0_i32, %c0_i32_0, %c0_i32_1 : i32, i32, i32
  }
  func.func @transform_10(%arg0: i32) -> (i32, i32) {
    %c0_i32 = arith.constant 0 : i32
    %c0_i32_0 = arith.constant 0 : i32
    %c0_i32_1 = arith.constant 0 : i32
    return %c0_i32, %c0_i32_0 : i32, i32
  }
  func.func @transform_11(%arg0: i32) -> (i32, i32) {
    %c0_i32 = arith.constant 0 : i32
    %c0_i32_0 = arith.constant 0 : i32
    %c0_i32_1 = arith.constant 0 : i32
    return %c0_i32, %c0_i32_0 : i32, i32
  }
  func.func @transform_12(%arg0: i32) -> (i32, i32, i32) {
    %c0_i32 = arith.constant 0 : i32
    %c0_i32_0 = arith.constant 0 : i32
    %c0_i32_1 = arith.constant 0 : i32
    %c0_i32_2 = arith.constant 0 : i32
    return %c0_i32, %c0_i32_0, %c0_i32_1 : i32, i32, i32
  }
  func.func @transform_13(%arg0: i32) -> (i32, i32) {
    %c0_i32 = arith.constant 0 : i32
    %c0_i32_0 = arith.constant 0 : i32
    %c0_i32_1 = arith.constant 0 : i32
    return %c0_i32, %c0_i32_0 : i32, i32
  }
  func.func @transform_14(%arg0: i32) -> (i32, i32, i32) {
    %c0_i32 = arith.constant 0 : i32
    %c0_i32_0 = arith.constant 0 : i32
    %c0_i32_1 = arith.constant 0 : i32
    %c0_i32_2 = arith.constant 0 : i32
    return %c0_i32, %c0_i32_0, %c0_i32_1 : i32, i32, i32
  }
  func.func @transform_15(%arg0: i32) -> (i32, i32) {
    %c0_i32 = arith.constant 0 : i32
    %c0_i32_0 = arith.constant 0 : i32
    %c0_i32_1 = arith.constant 0 : i32
    return %c0_i32, %c0_i32_0 : i32, i32
  }
  func.func @transform_16(%arg0: i32) -> (i32, i32) {
    %c0_i32 = arith.constant 0 : i32
    %c0_i32_0 = arith.constant 0 : i32
    %c0_i32_1 = arith.constant 0 : i32
    return %c0_i32, %c0_i32_0 : i32, i32
  }
  func.func @transform_17(%arg0: i32) -> (i32, i32) {
    %c0_i32 = arith.constant 0 : i32
    %c0_i32_0 = arith.constant 0 : i32
    %c0_i32_1 = arith.constant 0 : i32
    return %c0_i32, %c0_i32_0 : i32, i32
  }
  func.func @transform_18(%arg0: i32) -> (i32, i32) {
    %c0_i32 = arith.constant 0 : i32
    %c0_i32_0 = arith.constant 0 : i32
    %c0_i32_1 = arith.constant 0 : i32
    return %c0_i32, %c0_i32_0 : i32, i32
  }
  func.func @transform_19(%arg0: i32) -> (i32, i32) {
    %c0_i32 = arith.constant 0 : i32
    %c0_i32_0 = arith.constant 0 : i32
    %c0_i32_1 = arith.constant 0 : i32
    return %c0_i32, %c0_i32_0 : i32, i32
  }
  func.func @transform_20(%arg0: i32) -> (i32, i32) {
    %c0_i32 = arith.constant 0 : i32
    %c0_i32_0 = arith.constant 0 : i32
    %c0_i32_1 = arith.constant 0 : i32
    return %c0_i32, %c0_i32_0 : i32, i32
  }
  func.func @transform_21(%arg0: i32) -> (i32, i32) {
    %c0_i32 = arith.constant 0 : i32
    %c0_i32_0 = arith.constant 0 : i32
    %c0_i32_1 = arith.constant 0 : i32
    return %c0_i32, %c0_i32_0 : i32, i32
  }
}

</mosaic_0001>

<llo_original>
// kernel: policy_forward.1
$region0: #{policy_forward.1}
  #allocation0 [shape = 'u32[]', space=smem, size = 0x4, offset = 0x4, fixed_abs, tag = 'smem constant byte address 0x4 - core index']
  #allocation1 [shape = 'u32[72,128]{1,0:T(1,128)}', space=vmem, size = 0x9000, scoped, tag = 'internal scratch']
  %s0 = inlined_call_operand.vmem [shape: bf16[80,160], index: 0, kind: input, shape index: {}]
  %s1 = inlined_call_operand.vmem [shape: bf16[5,2], index: 1, kind: input, shape index: {}]
  %s2 = inlined_call_operand.vmem [shape: bf16[240,80], index: 2, kind: input, shape index: {}]
  %s3 = inlined_call_operand.vmem [shape: bf16[3,160,80], index: 3, kind: input, shape index: {}]
  %s4 = inlined_call_operand.vmem [shape: f32[80,1], index: 4, kind: input, shape index: {}]
  %s5 = inlined_call_operand.vmem [shape: bf16[240,80], index: 5, kind: input, shape index: {}]
  %s6 = inlined_call_operand.vmem [shape: bf16[3,80,40], index: 6, kind: input, shape index: {}]
  %s7 = inlined_call_operand.vmem [shape: f32[80,1], index: 7, kind: input, shape index: {}]
  %s8 = inlined_call_operand.vmem [shape: bf16[240,80], index: 8, kind: input, shape index: {}]
  %s9 = inlined_call_operand.vmem [shape: bf16[3,40,20], index: 9, kind: input, shape index: {}]
  %s10 = inlined_call_operand.vmem [shape: f32[80,1], index: 10, kind: input, shape index: {}]
  %s11 = inlined_call_operand.vmem [shape: bf16[240,80], index: 11, kind: input, shape index: {}]
  %s12 = inlined_call_operand.vmem [shape: bf16[3,20,10], index: 12, kind: input, shape index: {}]
  %s13 = inlined_call_operand.vmem [shape: f32[80,1], index: 13, kind: input, shape index: {}]
  %s14 = inlined_call_operand.vmem [shape: bf16[5,120,80], index: 14, kind: input, shape index: {}]
  %s15 = inlined_call_operand.vmem [shape: bf16[120,5], index: 15, kind: input, shape index: {}]
  %s16 = inlined_call_operand.vmem [shape: f32[120,1], index: 16, kind: input, shape index: {}]
  %s17 = inlined_call_operand.vmem [shape: bf16[80,120], index: 17, kind: input, shape index: {}]
  %s18 = inlined_call_operand.vmem [shape: f32[80,1], index: 18, kind: input, shape index: {}]
  %s19 = inlined_call_operand.vmem [shape: bf16[25,80], index: 19, kind: input, shape index: {}]
  %s20 = inlined_call_operand.vmem [shape: f32[25,1], index: 20, kind: input, shape index: {}]
  %s21 = inlined_call_operand.vmem [shape: f32[25,2], index: 21, kind: output, shape index: {}]
  %s22 = sld [smem:[#allocation0]]
  $region94: #{policy_forward.1} parent=0
    _
  %s24 = ssub.s32 1, %s22
  %s25 = scalar_select 0, %s24, %s22
  // Predicated region
  $region2: #{policy_forward.1} parent=0 // pred_check
    _
  $region3: #{policy_forward.1} parent=0 // pred_check_branch
    %27 = sbr.rel (0) target = $region5
  $region4: #{policy_forward.1} parent=0 // pred_region
    _
  $region5: #{policy_forward.1} parent=0 // pred_fallthru
    _
  // Predicated region
  $region6: #{policy_forward.1} parent=0 // pred_check
    _
  $region7: #{policy_forward.1} parent=0 // pred_check_branch
    %29 = sbr.rel (0) target = $region9
  $region8: #{policy_forward.1} parent=0 // pred_region
    _
  $region9: #{policy_forward.1} parent=0 // pred_fallthru
    _
  // Predicated region
  $region10: #{policy_forward.1} parent=0 // pred_check
    _
  $region11: #{policy_forward.1} parent=0 // pred_check_branch
    %31 = sbr.rel (0) target = $region13
  $region12: #{policy_forward.1} parent=0 // pred_region
    _
  $region13: #{policy_forward.1} parent=0 // pred_fallthru
    _
  // Predicated region
  $region14: #{policy_forward.1} parent=0 // pred_check
    _
  $region15: #{policy_forward.1} parent=0 // pred_check_branch
    %33 = sbr.rel (0) target = $region17
  $region16: #{policy_forward.1} parent=0 // pred_region
    _
  $region17: #{policy_forward.1} parent=0 // pred_fallthru
    _
  // Predicated region
  $region18: #{policy_forward.1} parent=0 // pred_check
    _
  $region19: #{policy_forward.1} parent=0 // pred_check_branch
    %35 = sbr.rel (0) target = $region21
  $region20: #{policy_forward.1} parent=0 // pred_region
    _
  $region21: #{policy_forward.1} parent=0 // pred_fallthru
    _
  // Predicated region
  $region22: #{policy_forward.1} parent=0 // pred_check
    _
  $region23: #{policy_forward.1} parent=0 // pred_check_branch
    %37 = sbr.rel (0) target = $region25
  $region24: #{policy_forward.1} parent=0 // pred_region
    _
  $region25: #{policy_forward.1} parent=0 // pred_fallthru
    _
  // Predicated region
  $region26: #{policy_forward.1} parent=0 // pred_check
    _
  $region27: #{policy_forward.1} parent=0 // pred_check_branch
    %39 = sbr.rel (0) target = $region29
  $region28: #{policy_forward.1} parent=0 // pred_region
    _
  $region29: #{policy_forward.1} parent=0 // pred_fallthru
    _
  // Predicated region
  $region30: #{policy_forward.1} parent=0 // pred_check
    _
  $region31: #{policy_forward.1} parent=0 // pred_check_branch
    %41 = sbr.rel (0) target = $region33
  $region32: #{policy_forward.1} parent=0 // pred_region
    _
  $region33: #{policy_forward.1} parent=0 // pred_fallthru
    _
  // Predicated region
  $region34: #{policy_forward.1} parent=0 // pred_check
    _
  $region35: #{policy_forward.1} parent=0 // pred_check_branch
    %43 = sbr.rel (0) target = $region37
  $region36: #{policy_forward.1} parent=0 // pred_region
    _
  $region37: #{policy_forward.1} parent=0 // pred_fallthru
    _
  // Predicated region
  $region38: #{policy_forward.1} parent=0 // pred_check
    _
  $region39: #{policy_forward.1} parent=0 // pred_check_branch
    %45 = sbr.rel (0) target = $region41
  $region40: #{policy_forward.1} parent=0 // pred_region
    _
  $region41: #{policy_forward.1} parent=0 // pred_fallthru
    _
  // Predicated region
  $region42: #{policy_forward.1} parent=0 // pred_check
    _
  $region43: #{policy_forward.1} parent=0 // pred_check_branch
    %47 = sbr.rel (0) target = $region45
  $region44: #{policy_forward.1} parent=0 // pred_region
    _
  $region45: #{policy_forward.1} parent=0 // pred_fallthru
    _
  // Predicated region
  $region46: #{policy_forward.1} parent=0 // pred_check
    _
  $region47: #{policy_forward.1} parent=0 // pred_check_branch
    %49 = sbr.rel (0) target = $region49
  $region48: #{policy_forward.1} parent=0 // pred_region
    _
  $region49: #{policy_forward.1} parent=0 // pred_fallthru
    _
  // Predicated region
  $region50: #{policy_forward.1} parent=0 // pred_check
    _
  $region51: #{policy_forward.1} parent=0 // pred_check_branch
    %51 = sbr.rel (0) target = $region53
  $region52: #{policy_forward.1} parent=0 // pred_region
    _
  $region53: #{policy_forward.1} parent=0 // pred_fallthru
    _
  // Predicated region
  $region54: #{policy_forward.1} parent=0 // pred_check
    _
  $region55: #{policy_forward.1} parent=0 // pred_check_branch
    %53 = sbr.rel (0) target = $region57
  $region56: #{policy_forward.1} parent=0 // pred_region
    _
  $region57: #{policy_forward.1} parent=0 // pred_fallthru
    _
  // Predicated region
  $region58: #{policy_forward.1} parent=0 // pred_check
    _
  $region59: #{policy_forward.1} parent=0 // pred_check_branch
    %55 = sbr.rel (0) target = $region61
  $region60: #{policy_forward.1} parent=0 // pred_region
    _
  $region61: #{policy_forward.1} parent=0 // pred_fallthru
    _
  // Predicated region
  $region62: #{policy_forward.1} parent=0 // pred_check
    _
  $region63: #{policy_forward.1} parent=0 // pred_check_branch
    %57 = sbr.rel (0) target = $region65
  $region64: #{policy_forward.1} parent=0 // pred_region
    _
  $region65: #{policy_forward.1} parent=0 // pred_fallthru
    _
  // Predicated region
  $region66: #{policy_forward.1} parent=0 // pred_check
    _
  $region67: #{policy_forward.1} parent=0 // pred_check_branch
    %59 = sbr.rel (0) target = $region69
  $region68: #{policy_forward.1} parent=0 // pred_region
    _
  $region69: #{policy_forward.1} parent=0 // pred_fallthru
    _
  // Predicated region
  $region70: #{policy_forward.1} parent=0 // pred_check
    _
  $region71: #{policy_forward.1} parent=0 // pred_check_branch
    %61 = sbr.rel (0) target = $region73
  $region72: #{policy_forward.1} parent=0 // pred_region
    _
  $region73: #{policy_forward.1} parent=0 // pred_fallthru
    _
  // Predicated region
  $region74: #{policy_forward.1} parent=0 // pred_check
    _
  $region75: #{policy_forward.1} parent=0 // pred_check_branch
    %63 = sbr.rel (0) target = $region77
  $region76: #{policy_forward.1} parent=0 // pred_region
    _
  $region77: #{policy_forward.1} parent=0 // pred_fallthru
    _
  // Predicated region
  $region78: #{policy_forward.1} parent=0 // pred_check
    _
  $region79: #{policy_forward.1} parent=0 // pred_check_branch
    %65 = sbr.rel (0) target = $region81
  $region80: #{policy_forward.1} parent=0 // pred_region
    _
  $region81: #{policy_forward.1} parent=0 // pred_fallthru
    _
  // Predicated region
  $region82: #{policy_forward.1} parent=0 // pred_check
    _
  $region83: #{policy_forward.1} parent=0 // pred_check_branch
    %67 = sbr.rel (0) target = $region85
  $region84: #{policy_forward.1} parent=0 // pred_region
    _
  $region85: #{policy_forward.1} parent=0 // pred_fallthru
    _
  %v69 = vld [vmem:[%s0] sm:$0xff]
  %v70 = vld [vmem:[%s0 + $0x8] sm:$0xff]
  %v71 = vld [vmem:[%s0 + $0x10] sm:$0xff]
  %v72 = vld [vmem:[%s0 + $0x18] sm:$0xff]
  %v73 = vld [vmem:[%s0 + $0x20] sm:$0xff]
  %v74 = vld [vmem:[%s0 + $0x28] sm:$0xff]
  %v75 = vld [vmem:[%s0 + $0x30] sm:$0xff]
  %v76 = vld [vmem:[%s0 + $0x38] sm:$0xff]
  %v77 = vld [vmem:[%s0 + $0x40] sm:$0xff]
  %v78 = vld [vmem:[%s0 + $0x48] sm:$0xff]
  %v79 = vld [vmem:[%s2] sm:$0xf]
  %v80 = vld [vmem:[%s2 + $0x4] sm:$0xf]
  %v81 = vld [vmem:[%s2 + $0x8] sm:$0xf]
  %v82 = vld [vmem:[%s2 + $0xc] sm:$0xf]
  %v83 = vld [vmem:[%s2 + $0x10] sm:$0xf]
  %v84 = vld [vmem:[%s2 + $0x14] sm:$0xf]
  %v85 = vld [vmem:[%s2 + $0x18] sm:$0xf]
  %v86 = vld [vmem:[%s2 + $0x1c] sm:$0xf]
  %v87 = vld [vmem:[%s2 + $0x20] sm:$0xf]
  %v88 = vld [vmem:[%s2 + $0x24] sm:$0xf]
  %v89 = vld [vmem:[%s2 + $0x28] sm:$0xf]
  %v90 = vld [vmem:[%s2 + $0x2c] sm:$0xf]
  %v91 = vld [vmem:[%s2 + $0x30] sm:$0xf]
  %v92 = vld [vmem:[%s2 + $0x34] sm:$0xf]
  %v93 = vld [vmem:[%s2 + $0x38] sm:$0xf]
  %v94 = vld [vmem:[%s2 + $0x3c] sm:$0xf]
  %v95 = vld [vmem:[%s2 + $0x40] sm:$0xf]
  %v96 = vld [vmem:[%s2 + $0x44] sm:$0xf]
  %v97 = vld [vmem:[%s2 + $0x48] sm:$0xf]
  %v98 = vld [vmem:[%s2 + $0x4c] sm:$0xf]
  %v99 = vld [vmem:[%s2 + $0x50] sm:$0xf]
  %v100 = vld [vmem:[%s2 + $0x54] sm:$0xf]
  %v101 = vld [vmem:[%s2 + $0x58] sm:$0xf]
  %v102 = vld [vmem:[%s2 + $0x5c] sm:$0xf]
  %v103 = vld [vmem:[%s2 + $0x60] sm:$0xf]
  %v104 = vld [vmem:[%s2 + $0x64] sm:$0xf]
  %v105 = vld [vmem:[%s2 + $0x68] sm:$0xf]
  %v106 = vld [vmem:[%s2 + $0x6c] sm:$0xf]
  %v107 = vld [vmem:[%s2 + $0x70] sm:$0xf]
  %v108 = vld [vmem:[%s2 + $0x74] sm:$0xf]
  %v139 = vunpack.c.l.b16 %v79
  %v140 = vunpack.c.l.b16 %v80
  %v141 = vunpack.c.l.b16 %v81
  %v142 = vunpack.c.l.b16 %v82
  %v143 = vunpack.c.l.b16 %v83
  %v144 = vunpack.c.l.b16 %v84
  %v145 = vunpack.c.l.b16 %v85
  %v146 = vunpack.c.l.b16 %v86
  %v147 = vunpack.c.l.b16 %v87
  %v148 = vunpack.c.l.b16 %v88
  %v149 = vunpack.c.l.b16 %v89
  %v150 = vunpack.c.l.b16 %v90
  %v151 = vunpack.c.l.b16 %v91
  %v152 = vunpack.c.l.b16 %v92
  %v153 = vunpack.c.l.b16 %v93
  %v154 = vunpack.c.l.b16 %v94
  %v155 = vunpack.c.l.b16 %v95
  %v156 = vunpack.c.l.b16 %v96
  %v157 = vunpack.c.l.b16 %v97
  %v158 = vunpack.c.l.b16 %v98
  %v159 = vunpack.c.l.b16 %v99
  %v160 = vunpack.c.l.b16 %v100
  %v161 = vunpack.c.l.b16 %v101
  %v162 = vunpack.c.l.b16 %v102
  %v163 = vunpack.c.l.b16 %v103
  %v164 = vunpack.c.l.b16 %v104
  %v165 = vunpack.c.l.b16 %v105
  %v166 = vunpack.c.l.b16 %v106
  %v167 = vunpack.c.l.b16 %v107
  %v168 = vunpack.c.l.b16 %v108
  %v169 = vpack.c.b16 %v140, %v139
  %v170 = vpack.c.b16 %v142, %v141
  %v171 = vpack.c.b16 %v144, %v143
  %v172 = vpack.c.b16 %v146, %v145
  %v173 = vpack.c.b16 %v148, %v147
  %v174 = vpack.c.b16 %v150, %v149
  %v175 = vpack.c.b16 %v152, %v151
  %v176 = vpack.c.b16 %v154, %v153
  %v177 = vpack.c.b16 %v156, %v155
  %v178 = vpack.c.b16 %v158, %v157
  %v179 = vpack.c.b16 %v160, %v159
  %v180 = vpack.c.b16 %v162, %v161
  %v181 = vpack.c.b16 %v164, %v163
  %v182 = vpack.c.b16 %v166, %v165
  %v183 = vpack.c.b16 %v168, %v167
  %v194 = vunpack.c.l.b16 %v69
  %v195 = vunpack.c.h.b16 %v69
  %v196 = vunpack.c.l.b16 %v70
  %v197 = vunpack.c.h.b16 %v70
  %v198 = vunpack.c.l.b16 %v71
  %v199 = vunpack.c.h.b16 %v71
  %v200 = vunpack.c.l.b16 %v72
  %v201 = vunpack.c.h.b16 %v72
  %v202 = vunpack.c.l.b16 %v73
  %v203 = vunpack.c.h.b16 %v73
  %v204 = vunpack.c.l.b16 %v74
  %v205 = vunpack.c.h.b16 %v74
  %v206 = vunpack.c.l.b16 %v75
  %v207 = vunpack.c.h.b16 %v75
  %v208 = vunpack.c.l.b16 %v76
  %v209 = vunpack.c.h.b16 %v76
  %v210 = vunpack.c.l.b16 %v77
  %v211 = vunpack.c.h.b16 %v77
  %v212 = vunpack.c.l.b16 %v78
  %v213 = vunpack.c.h.b16 %v78
  %v214 = vpack.c.b16 %v196, %v194
  %v215 = vpack.c.b16 %v197, %v195
  %v216 = vpack.c.b16 %v200, %v198
  %v217 = vpack.c.b16 %v201, %v199
  %v218 = vpack.c.b16 %v204, %v202
  %v219 = vpack.c.b16 %v205, %v203
  %v220 = vpack.c.b16 %v208, %v206
  %v221 = vpack.c.b16 %v209, %v207
  %v222 = vpack.c.b16 %v212, %v210
  %v223 = vpack.c.b16 %v213, %v211
  %vm234 = vcmask 654336
  %v236 = vsel %vm234, %v169, 0
  %v239 = vsel %vm234, %v170, 0
  %v242 = vsel %vm234, %v171, 0
  %v245 = vsel %vm234, %v172, 0
  %v248 = vsel %vm234, %v173, 0
  %v251 = vsel %vm234, %v174, 0
  %v254 = vsel %vm234, %v175, 0
  %v257 = vsel %vm234, %v176, 0
  %v260 = vsel %vm234, %v177, 0
  %v263 = vsel %vm234, %v178, 0
  %v266 = vsel %vm234, %v179, 0
  %v269 = vsel %vm234, %v180, 0
  %v272 = vsel %vm234, %v181, 0
  %v275 = vsel %vm234, %v182, 0
  %v278 = vsel %vm234, %v183, 0
  %280 = vmatpush.bf16.msra.mxu0 0
  %281 = vmatpush.bf16.msra.mxu0 0
  %282 = vmatpush.bf16.msra.mxu0 0
  %283 = vmatpush.bf16.msra.mxu0 %v222
  %284 = vmatpush.bf16.msra.mxu0 %v220
  %285 = vmatpush.bf16.msra.mxu0 %v218
  %286 = vmatpush.bf16.msra.mxu0 %v216
  %287 = vmatpush.bf16.msra.mxu0 %v214
  %288 = vmatmul.bf16.gmra.mxu0 %v236
  %v289 = vpop.f32.mrf.mxu0
  %v290 = vadd.f32 0.0, %v289
  %v291 = vpop.f32.mrf.mxu0
  %v292 = vadd.f32 0.0, %v291
  %293 = vmatmul.bf16.gmra.mxu0 %v239
  %v294 = vpop.f32.mrf.mxu0
  %v295 = vadd.f32 0.0, %v294
  %v296 = vpop.f32.mrf.mxu0
  %v297 = vadd.f32 0.0, %v296
  %298 = vmatmul.bf16.gmra.mxu0 %v242
  %v299 = vpop.f32.mrf.mxu0
  %v300 = vadd.f32 0.0, %v299
  %v301 = vpop.f32.mrf.mxu0
  %v302 = vadd.f32 0.0, %v301
  %303 = vmatmul.bf16.gmra.mxu0 %v245
  %v304 = vpop.f32.mrf.mxu0
  %v305 = vadd.f32 0.0, %v304
  %v306 = vpop.f32.mrf.mxu0
  %v307 = vadd.f32 0.0, %v306
  %308 = vmatmul.bf16.gmra.mxu0 %v248
  %v309 = vpop.f32.mrf.mxu0
  %v310 = vadd.f32 0.0, %v309
  %v311 = vpop.f32.mrf.mxu0
  %v312 = vadd.f32 0.0, %v311
  %313 = vmatmul.bf16.gmra.mxu0 %v251
  %v314 = vpop.f32.mrf.mxu0
  %v315 = vadd.f32 0.0, %v314
  %v316 = vpop.f32.mrf.mxu0
  %v317 = vadd.f32 0.0, %v316
  %318 = vmatmul.bf16.gmra.mxu0 %v254
  %v319 = vpop.f32.mrf.mxu0
  %v320 = vadd.f32 0.0, %v319
  %v321 = vpop.f32.mrf.mxu0
  %v322 = vadd.f32 0.0, %v321
  %323 = vmatmul.bf16.gmra.mxu0 %v257
  %v324 = vpop.f32.mrf.mxu0
  %v325 = vadd.f32 0.0, %v324
  %v326 = vpop.f32.mrf.mxu0
  %v327 = vadd.f32 0.0, %v326
  %328 = vmatmul.bf16.gmra.mxu0 %v260
  %v329 = vpop.f32.mrf.mxu0
  %v330 = vadd.f32 0.0, %v329
  %v331 = vpop.f32.mrf.mxu0
  %v332 = vadd.f32 0.0, %v331
  %333 = vmatmul.bf16.gmra.mxu0 %v263
  %v334 = vpop.f32.mrf.mxu0
  %v335 = vadd.f32 0.0, %v334
  %v336 = vpop.f32.mrf.mxu0
  %v337 = vadd.f32 0.0, %v336
  %338 = vmatmul.bf16.gmra.mxu0 %v266
  %v339 = vpop.f32.mrf.mxu0
  %v340 = vadd.f32 0.0, %v339
  %v341 = vpop.f32.mrf.mxu0
  %v342 = vadd.f32 0.0, %v341
  %343 = vmatmul.bf16.gmra.mxu0 %v269
  %v344 = vpop.f32.mrf.mxu0
  %v345 = vadd.f32 0.0, %v344
  %v346 = vpop.f32.mrf.mxu0
  %v347 = vadd.f32 0.0, %v346
  %348 = vmatmul.bf16.gmra.mxu0 %v272
  %v349 = vpop.f32.mrf.mxu0
  %v350 = vadd.f32 0.0, %v349
  %v351 = vpop.f32.mrf.mxu0
  %v352 = vadd.f32 0.0, %v351
  %353 = vmatmul.bf16.gmra.mxu0 %v275
  %v354 = vpop.f32.mrf.mxu0
  %v355 = vadd.f32 0.0, %v354
  %v356 = vpop.f32.mrf.mxu0
  %v357 = vadd.f32 0.0, %v356
  %358 = vmatmul.bf16.gmra.mxu0 %v278
  %v359 = vpop.f32.mrf.mxu0
  %v360 = vadd.f32 0.0, %v359
  %v361 = vpop.f32.mrf.mxu0
  %v362 = vadd.f32 0.0, %v361
  %363 = vdwg.mxu0
  %364 = vmatpush.bf16.msra.mxu0 0
  %365 = vmatpush.bf16.msra.mxu0 0
  %366 = vmatpush.bf16.msra.mxu0 0
  %367 = vmatpush.bf16.msra.mxu0 %v223
  %368 = vmatpush.bf16.msra.mxu0 %v221
  %369 = vmatpush.bf16.msra.mxu0 %v219
  %370 = vmatpush.bf16.msra.mxu0 %v217
  %371 = vmatpush.bf16.msra.mxu0 %v215
  %372 = vmatmul.bf16.gmra.mxu0 %v236
  %v373 = vpop.f32.mrf.mxu0
  %v374 = vadd.f32 0.0, %v373
  %v375 = vpop.f32.mrf.mxu0
  %v376 = vadd.f32 0.0, %v375
  %377 = vmatmul.bf16.gmra.mxu0 %v239
  %v378 = vpop.f32.mrf.mxu0
  %v379 = vadd.f32 0.0, %v378
  %v380 = vpop.f32.mrf.mxu0
  %v381 = vadd.f32 0.0, %v380
  %382 = vmatmul.bf16.gmra.mxu0 %v242
  %v383 = vpop.f32.mrf.mxu0
  %v384 = vadd.f32 0.0, %v383
  %v385 = vpop.f32.mrf.mxu0
  %v386 = vadd.f32 0.0, %v385
  %387 = vmatmul.bf16.gmra.mxu0 %v245
  %v388 = vpop.f32.mrf.mxu0
  %v389 = vadd.f32 0.0, %v388
  %v390 = vpop.f32.mrf.mxu0
  %v391 = vadd.f32 0.0, %v390
  %392 = vmatmul.bf16.gmra.mxu0 %v248
  %v393 = vpop.f32.mrf.mxu0
  %v394 = vadd.f32 0.0, %v393
  %v395 = vpop.f32.mrf.mxu0
  %v396 = vadd.f32 0.0, %v395
  %397 = vmatmul.bf16.gmra.mxu0 %v251
  %v398 = vpop.f32.mrf.mxu0
  %v399 = vadd.f32 0.0, %v398
  %v400 = vpop.f32.mrf.mxu0
  %v401 = vadd.f32 0.0, %v400
  %402 = vmatmul.bf16.gmra.mxu0 %v254
  %v403 = vpop.f32.mrf.mxu0
  %v404 = vadd.f32 0.0, %v403
  %v405 = vpop.f32.mrf.mxu0
  %v406 = vadd.f32 0.0, %v405
  %407 = vmatmul.bf16.gmra.mxu0 %v257
  %v408 = vpop.f32.mrf.mxu0
  %v409 = vadd.f32 0.0, %v408
  %v410 = vpop.f32.mrf.mxu0
  %v411 = vadd.f32 0.0, %v410
  %412 = vmatmul.bf16.gmra.mxu0 %v260
  %v413 = vpop.f32.mrf.mxu0
  %v414 = vadd.f32 0.0, %v413
  %v415 = vpop.f32.mrf.mxu0
  %v416 = vadd.f32 0.0, %v415
  %417 = vmatmul.bf16.gmra.mxu0 %v263
  %v418 = vpop.f32.mrf.mxu0
  %v419 = vadd.f32 0.0, %v418
  %v420 = vpop.f32.mrf.mxu0
  %v421 = vadd.f32 0.0, %v420
  %422 = vmatmul.bf16.gmra.mxu0 %v266
  %v423 = vpop.f32.mrf.mxu0
  %v424 = vadd.f32 0.0, %v423
  %v425 = vpop.f32.mrf.mxu0
  %v426 = vadd.f32 0.0, %v425
  %427 = vmatmul.bf16.gmra.mxu0 %v269
  %v428 = vpop.f32.mrf.mxu0
  %v429 = vadd.f32 0.0, %v428
  %v430 = vpop.f32.mrf.mxu0
  %v431 = vadd.f32 0.0, %v430
  %432 = vmatmul.bf16.gmra.mxu0 %v272
  %v433 = vpop.f32.mrf.mxu0
  %v434 = vadd.f32 0.0, %v433
  %v435 = vpop.f32.mrf.mxu0
  %v436 = vadd.f32 0.0, %v435
  %437 = vmatmul.bf16.gmra.mxu0 %v275
  %v438 = vpop.f32.mrf.mxu0
  %v439 = vadd.f32 0.0, %v438
  %v440 = vpop.f32.mrf.mxu0
  %v441 = vadd.f32 0.0, %v440
  %442 = vmatmul.bf16.gmra.mxu0 %v278
  %v443 = vpop.f32.mrf.mxu0
  %v444 = vadd.f32 0.0, %v443
  %v445 = vpop.f32.mrf.mxu0
  %v446 = vadd.f32 0.0, %v445
  %447 = vdwg.mxu0
  %v448 = vpack.c.bf16 %v292, %v290
  %v449 = vpack.c.bf16 %v376, %v374
  %v450 = vpack.c.bf16 %v297, %v295
  %v451 = vpack.c.bf16 %v381, %v379
  %v452 = vpack.c.bf16 %v302, %v300
  %v453 = vpack.c.bf16 %v386, %v384
  %v454 = vpack.c.bf16 %v307, %v305
  %v455 = vpack.c.bf16 %v391, %v389
  %v456 = vpack.c.bf16 %v312, %v310
  %v457 = vpack.c.bf16 %v396, %v394
  %v458 = vld [vmem:[%s3] sm:$0xf]
  %v459 = vld [vmem:[%s3 + $0x4] sm:$0xf]
  %v460 = vld [vmem:[%s3 + $0x8] sm:$0xf]
  %v461 = vld [vmem:[%s3 + $0xc] sm:$0xf]
  %v462 = vld [vmem:[%s3 + $0x10] sm:$0xf]
  %v463 = vld [vmem:[%s3 + $0x14] sm:$0xf]
  %v464 = vld [vmem:[%s3 + $0x18] sm:$0xf]
  %v465 = vld [vmem:[%s3 + $0x1c] sm:$0xf]
  %v466 = vld [vmem:[%s3 + $0x20] sm:$0xf]
  %v467 = vld [vmem:[%s3 + $0x24] sm:$0xf]
  %v468 = vld [vmem:[%s3 + $0x28] sm:$0xf]
  %v469 = vld [vmem:[%s3 + $0x2c] sm:$0xf]
  %v470 = vld [vmem:[%s3 + $0x30] sm:$0xf]
  %v471 = vld [vmem:[%s3 + $0x34] sm:$0xf]
  %v472 = vld [vmem:[%s3 + $0x38] sm:$0xf]
  %v473 = vld [vmem:[%s3 + $0x3c] sm:$0xf]
  %v474 = vld [vmem:[%s3 + $0x40] sm:$0xf]
  %v475 = vld [vmem:[%s3 + $0x44] sm:$0xf]
  %v476 = vld [vmem:[%s3 + $0x48] sm:$0xf]
  %v477 = vld [vmem:[%s3 + $0x4c] sm:$0xf]
  %v478 = vpack.c.bf16 %v317, %v315
  %v479 = vpack.c.bf16 %v401, %v399
  %v480 = vpack.c.bf16 %v322, %v320
  %v481 = vpack.c.bf16 %v406, %v404
  %v482 = vpack.c.bf16 %v327, %v325
  %v483 = vpack.c.bf16 %v411, %v409
  %v484 = vpack.c.bf16 %v332, %v330
  %v485 = vpack.c.bf16 %v416, %v414
  %v486 = vpack.c.bf16 %v337, %v335
  %v487 = vpack.c.bf16 %v421, %v419
  %s488 = scalar_lea.vmem %s3, 80
  %v489 = vld [vmem:[%s488] sm:$0xf]
  %v490 = vld [vmem:[%s488 + $0x4] sm:$0xf]
  %v491 = vld [vmem:[%s488 + $0x8] sm:$0xf]
  %v492 = vld [vmem:[%s488 + $0xc] sm:$0xf]
  %v493 = vld [vmem:[%s488 + $0x10] sm:$0xf]
  %v494 = vld [vmem:[%s488 + $0x14] sm:$0xf]
  %v495 = vld [vmem:[%s488 + $0x18] sm:$0xf]
  %v496 = vld [vmem:[%s488 + $0x1c] sm:$0xf]
  %v497 = vld [vmem:[%s488 + $0x20] sm:$0xf]
  %v498 = vld [vmem:[%s488 + $0x24] sm:$0xf]
  %v499 = vld [vmem:[%s488 + $0x28] sm:$0xf]
  %v500 = vld [vmem:[%s488 + $0x2c] sm:$0xf]
  %v501 = vld [vmem:[%s488 + $0x30] sm:$0xf]
  %v502 = vld [vmem:[%s488 + $0x34] sm:$0xf]
  %v503 = vld [vmem:[%s488 + $0x38] sm:$0xf]
  %v504 = vld [vmem:[%s488 + $0x3c] sm:$0xf]
  %v505 = vld [vmem:[%s488 + $0x40] sm:$0xf]
  %v506 = vld [vmem:[%s488 + $0x44] sm:$0xf]
  %v507 = vld [vmem:[%s488 + $0x48] sm:$0xf]
  %v508 = vld [vmem:[%s488 + $0x4c] sm:$0xf]
  %v529 = vunpack.c.l.b16 %v489
  %v530 = vunpack.c.l.b16 %v490
  %v531 = vunpack.c.l.b16 %v491
  %v532 = vunpack.c.l.b16 %v492
  %v533 = vunpack.c.l.b16 %v493
  %v534 = vunpack.c.l.b16 %v494
  %v535 = vunpack.c.l.b16 %v495
  %v536 = vunpack.c.l.b16 %v496
  %v537 = vunpack.c.l.b16 %v497
  %v538 = vunpack.c.l.b16 %v498
  %v539 = vunpack.c.l.b16 %v499
  %v540 = vunpack.c.l.b16 %v500
  %v541 = vunpack.c.l.b16 %v501
  %v542 = vunpack.c.l.b16 %v502
  %v543 = vunpack.c.l.b16 %v503
  %v544 = vunpack.c.l.b16 %v504
  %v545 = vunpack.c.l.b16 %v505
  %v546 = vunpack.c.l.b16 %v506
  %v547 = vunpack.c.l.b16 %v507
  %v548 = vunpack.c.l.b16 %v508
  %v549 = vpack.c.b16 %v530, %v529
  %v550 = vpack.c.b16 %v532, %v531
  %v551 = vpack.c.b16 %v534, %v533
  %v552 = vpack.c.b16 %v536, %v535
  %v553 = vpack.c.b16 %v538, %v537
  %v554 = vpack.c.b16 %v540, %v539
  %v555 = vpack.c.b16 %v542, %v541
  %v556 = vpack.c.b16 %v544, %v543
  %v557 = vpack.c.b16 %v546, %v545
  %v558 = vpack.c.b16 %v548, %v547
  %vm569 = vcmask 261120
  %v571 = vsel %vm569, %v479, 0
  %v574 = vsel %vm569, %v481, 0
  %v577 = vsel %vm569, %v483, 0
  %v580 = vsel %vm569, %v485, 0
  %v583 = vsel %vm569, %v487, 0
  %585 = vmatpush.bf16.msra.mxu0 %v556
  %586 = vmatpush.bf16.msra.mxu0 %v555
  %587 = vmatpush.bf16.msra.mxu0 %v554
  %588 = vmatpush.bf16.msra.mxu0 %v553
  %589 = vmatpush.bf16.msra.mxu0 %v552
  %590 = vmatpush.bf16.msra.mxu0 %v551
  %591 = vmatpush.bf16.msra.mxu0 %v550
  %592 = vmatpush.bf16.msra.mxu0 %v549
  %593 = vmatmul.bf16.gmra.mxu0 %v478
  %v594 = vpop.f32.mrf.mxu0
  %v595 = vadd.f32 0.0, %v594
  %v596 = vpop.f32.mrf.mxu0
  %v597 = vadd.f32 0.0, %v596
  %598 = vmatmul.bf16.gmra.mxu0 %v480
  %v599 = vpop.f32.mrf.mxu0
  %v600 = vadd.f32 0.0, %v599
  %v601 = vpop.f32.mrf.mxu0
  %v602 = vadd.f32 0.0, %v601
  %603 = vmatmul.bf16.gmra.mxu0 %v482
  %v604 = vpop.f32.mrf.mxu0
  %v605 = vadd.f32 0.0, %v604
  %v606 = vpop.f32.mrf.mxu0
  %v607 = vadd.f32 0.0, %v606
  %608 = vmatmul.bf16.gmra.mxu0 %v484
  %v609 = vpop.f32.mrf.mxu0
  %v610 = vadd.f32 0.0, %v609
  %v611 = vpop.f32.mrf.mxu0
  %v612 = vadd.f32 0.0, %v611
  %613 = vmatmul.bf16.gmra.mxu0 %v486
  %v614 = vpop.f32.mrf.mxu0
  %v615 = vadd.f32 0.0, %v614
  %v616 = vpop.f32.mrf.mxu0
  %v617 = vadd.f32 0.0, %v616
  %618 = vdwg.mxu0
  %619 = vmatpush.bf16.msra.mxu0 0
  %620 = vmatpush.bf16.msra.mxu0 0
  %621 = vmatpush.bf16.msra.mxu0 0
  %622 = vmatpush.bf16.msra.mxu0 0
  %623 = vmatpush.bf16.msra.mxu0 0
  %624 = vmatpush.bf16.msra.mxu0 0
  %625 = vmatpush.bf16.msra.mxu0 %v558
  %626 = vmatpush.bf16.msra.mxu0 %v557
  %627 = vmatmul.bf16.gmra.mxu0 %v571
  %v628 = vpop.f32.mrf.mxu0
  %v629 = vadd.f32 %v595, %v628
  %v630 = vpop.f32.mrf.mxu0
  %v631 = vadd.f32 %v597, %v630
  %632 = vmatmul.bf16.gmra.mxu0 %v574
  %v633 = vpop.f32.mrf.mxu0
  %v634 = vadd.f32 %v600, %v633
  %v635 = vpop.f32.mrf.mxu0
  %v636 = vadd.f32 %v602, %v635
  %637 = vmatmul.bf16.gmra.mxu0 %v577
  %v638 = vpop.f32.mrf.mxu0
  %v639 = vadd.f32 %v605, %v638
  %v640 = vpop.f32.mrf.mxu0
  %v641 = vadd.f32 %v607, %v640
  %642 = vmatmul.bf16.gmra.mxu0 %v580
  %v643 = vpop.f32.mrf.mxu0
  %v644 = vadd.f32 %v610, %v643
  %v645 = vpop.f32.mrf.mxu0
  %v646 = vadd.f32 %v612, %v645
  %647 = vmatmul.bf16.gmra.mxu0 %v583
  %v648 = vpop.f32.mrf.mxu0
  %v649 = vadd.f32 %v615, %v648
  %v650 = vpop.f32.mrf.mxu0
  %v651 = vadd.f32 %v617, %v650
  %652 = vdwg.mxu0
  %v673 = vunpack.c.l.b16 %v458
  %v674 = vunpack.c.l.b16 %v459
  %v675 = vunpack.c.l.b16 %v460
  %v676 = vunpack.c.l.b16 %v461
  %v677 = vunpack.c.l.b16 %v462
  %v678 = vunpack.c.l.b16 %v463
  %v679 = vunpack.c.l.b16 %v464
  %v680 = vunpack.c.l.b16 %v465
  %v681 = vunpack.c.l.b16 %v466
  %v682 = vunpack.c.l.b16 %v467
  %v683 = vunpack.c.l.b16 %v468
  %v684 = vunpack.c.l.b16 %v469
  %v685 = vunpack.c.l.b16 %v470
  %v686 = vunpack.c.l.b16 %v471
  %v687 = vunpack.c.l.b16 %v472
  %v688 = vunpack.c.l.b16 %v473
  %v689 = vunpack.c.l.b16 %v474
  %v690 = vunpack.c.l.b16 %v475
  %v691 = vunpack.c.l.b16 %v476
  %v692 = vunpack.c.l.b16 %v477
  %v693 = vpack.c.b16 %v674, %v673
  %v694 = vpack.c.b16 %v676, %v675
  %v695 = vpack.c.b16 %v678, %v677
  %v696 = vpack.c.b16 %v680, %v679
  %v697 = vpack.c.b16 %v682, %v681
  %v698 = vpack.c.b16 %v684, %v683
  %v699 = vpack.c.b16 %v686, %v685
  %v700 = vpack.c.b16 %v688, %v687
  %v701 = vpack.c.b16 %v690, %v689
  %v702 = vpack.c.b16 %v692, %v691
  %v714 = vsel %vm569, %v449, 0
  %v717 = vsel %vm569, %v451, 0
  %v720 = vsel %vm569, %v453, 0
  %v723 = vsel %vm569, %v455, 0
  %v726 = vsel %vm569, %v457, 0
  %728 = vmatpush.bf16.msra.mxu0 %v700
  %729 = vmatpush.bf16.msra.mxu0 %v699
  %730 = vmatpush.bf16.msra.mxu0 %v698
  %731 = vmatpush.bf16.msra.mxu0 %v697
  %732 = vmatpush.bf16.msra.mxu0 %v696
  %733 = vmatpush.bf16.msra.mxu0 %v695
  %734 = vmatpush.bf16.msra.mxu0 %v694
  %735 = vmatpush.bf16.msra.mxu0 %v693
  %736 = vmatmul.bf16.gmra.mxu0 %v448
  %v737 = vpop.f32.mrf.mxu0
  %v738 = vadd.f32 %v629, %v737
  %v739 = vpop.f32.mrf.mxu0
  %v740 = vadd.f32 %v631, %v739
  %741 = vmatmul.bf16.gmra.mxu0 %v450
  %v742 = vpop.f32.mrf.mxu0
  %v743 = vadd.f32 %v634, %v742
  %v744 = vpop.f32.mrf.mxu0
  %v745 = vadd.f32 %v636, %v744
  %746 = vmatmul.bf16.gmra.mxu0 %v452
  %v747 = vpop.f32.mrf.mxu0
  %v748 = vadd.f32 %v639, %v747
  %v749 = vpop.f32.mrf.mxu0
  %v750 = vadd.f32 %v641, %v749
  %751 = vmatmul.bf16.gmra.mxu0 %v454
  %v752 = vpop.f32.mrf.mxu0
  %v753 = vadd.f32 %v644, %v752
  %v754 = vpop.f32.mrf.mxu0
  %v755 = vadd.f32 %v646, %v754
  %756 = vmatmul.bf16.gmra.mxu0 %v456
  %v757 = vpop.f32.mrf.mxu0
  %v758 = vadd.f32 %v649, %v757
  %v759 = vpop.f32.mrf.mxu0
  %v760 = vadd.f32 %v651, %v759
  %761 = vdwg.mxu0
  %762 = vmatpush.bf16.msra.mxu0 0
  %763 = vmatpush.bf16.msra.mxu0 0
  %764 = vmatpush.bf16.msra.mxu0 0
  %765 = vmatpush.bf16.msra.mxu0 0
  %766 = vmatpush.bf16.msra.mxu0 0
  %767 = vmatpush.bf16.msra.mxu0 0
  %768 = vmatpush.bf16.msra.mxu0 %v702
  %769 = vmatpush.bf16.msra.mxu0 %v701
  %770 = vmatmul.bf16.gmra.mxu0 %v714
  %v771 = vpop.f32.mrf.mxu0
  %v772 = vadd.f32 %v738, %v771
  %v773 = vpop.f32.mrf.mxu0
  %v774 = vadd.f32 %v740, %v773
  %775 = vmatmul.bf16.gmra.mxu0 %v717
  %v776 = vpop.f32.mrf.mxu0
  %v777 = vadd.f32 %v743, %v776
  %v778 = vpop.f32.mrf.mxu0
  %v779 = vadd.f32 %v745, %v778
  %780 = vmatmul.bf16.gmra.mxu0 %v720
  %v781 = vpop.f32.mrf.mxu0
  %v782 = vadd.f32 %v748, %v781
  %v783 = vpop.f32.mrf.mxu0
  %v784 = vadd.f32 %v750, %v783
  %785 = vmatmul.bf16.gmra.mxu0 %v723
  %v786 = vpop.f32.mrf.mxu0
  %v787 = vadd.f32 %v753, %v786
  %v788 = vpop.f32.mrf.mxu0
  %v789 = vadd.f32 %v755, %v788
  %790 = vmatmul.bf16.gmra.mxu0 %v726
  %v791 = vpop.f32.mrf.mxu0
  %v792 = vadd.f32 %v758, %v791
  %v793 = vpop.f32.mrf.mxu0
  %v794 = vadd.f32 %v760, %v793
  %795 = vdwg.mxu0
  %v796 = vpack.c.bf16 %v342, %v340
  %v797 = vpack.c.bf16 %v426, %v424
  %v798 = vpack.c.bf16 %v347, %v345
  %v799 = vpack.c.bf16 %v431, %v429
  %v800 = vpack.c.bf16 %v352, %v350
  %v801 = vpack.c.bf16 %v436, %v434
  %v802 = vpack.c.bf16 %v357, %v355
  %v803 = vpack.c.bf16 %v441, %v439
  %v804 = vpack.c.bf16 %v362, %v360
  %v805 = vpack.c.bf16 %v446, %v444
  %s806 = scalar_lea.vmem %s3, 160
  %v807 = vld [vmem:[%s806] sm:$0xf]
  %v808 = vld [vmem:[%s806 + $0x4] sm:$0xf]
  %v809 = vld [vmem:[%s806 + $0x8] sm:$0xf]
  %v810 = vld [vmem:[%s806 + $0xc] sm:$0xf]
  %v811 = vld [vmem:[%s806 + $0x10] sm:$0xf]
  %v812 = vld [vmem:[%s806 + $0x14] sm:$0xf]
  %v813 = vld [vmem:[%s806 + $0x18] sm:$0xf]
  %v814 = vld [vmem:[%s806 + $0x1c] sm:$0xf]
  %v815 = vld [vmem:[%s806 + $0x20] sm:$0xf]
  %v816 = vld [vmem:[%s806 + $0x24] sm:$0xf]
  %v817 = vld [vmem:[%s806 + $0x28] sm:$0xf]
  %v818 = vld [vmem:[%s806 + $0x2c] sm:$0xf]
  %v819 = vld [vmem:[%s806 + $0x30] sm:$0xf]
  %v820 = vld [vmem:[%s806 + $0x34] sm:$0xf]
  %v821 = vld [vmem:[%s806 + $0x38] sm:$0xf]
  %v822 = vld [vmem:[%s806 + $0x3c] sm:$0xf]
  %v823 = vld [vmem:[%s806 + $0x40] sm:$0xf]
  %v824 = vld [vmem:[%s806 + $0x44] sm:$0xf]
  %v825 = vld [vmem:[%s806 + $0x48] sm:$0xf]
  %v826 = vld [vmem:[%s806 + $0x4c] sm:$0xf]
  %v847 = vunpack.c.l.b16 %v807
  %v848 = vunpack.c.l.b16 %v808
  %v849 = vunpack.c.l.b16 %v809
  %v850 = vunpack.c.l.b16 %v810
  %v851 = vunpack.c.l.b16 %v811
  %v852 = vunpack.c.l.b16 %v812
  %v853 = vunpack.c.l.b16 %v813
  %v854 = vunpack.c.l.b16 %v814
  %v855 = vunpack.c.l.b16 %v815
  %v856 = vunpack.c.l.b16 %v816
  %v857 = vunpack.c.l.b16 %v817
  %v858 = vunpack.c.l.b16 %v818
  %v859 = vunpack.c.l.b16 %v819
  %v860 = vunpack.c.l.b16 %v820
  %v861 = vunpack.c.l.b16 %v821
  %v862 = vunpack.c.l.b16 %v822
  %v863 = vunpack.c.l.b16 %v823
  %v864 = vunpack.c.l.b16 %v824
  %v865 = vunpack.c.l.b16 %v825
  %v866 = vunpack.c.l.b16 %v826
  %v867 = vpack.c.b16 %v848, %v847
  %v868 = vpack.c.b16 %v850, %v849
  %v869 = vpack.c.b16 %v852, %v851
  %v870 = vpack.c.b16 %v854, %v853
  %v871 = vpack.c.b16 %v856, %v855
  %v872 = vpack.c.b16 %v858, %v857
  %v873 = vpack.c.b16 %v860, %v859
  %v874 = vpack.c.b16 %v862, %v861
  %v875 = vpack.c.b16 %v864, %v863
  %v876 = vpack.c.b16 %v866, %v865
  %v888 = vsel %vm569, %v797, 0
  %v891 = vsel %vm569, %v799, 0
  %v894 = vsel %vm569, %v801, 0
  %v897 = vsel %vm569, %v803, 0
  %v900 = vsel %vm569, %v805, 0
  %902 = vmatpush.bf16.msra.mxu0 %v874
  %903 = vmatpush.bf16.msra.mxu0 %v873
  %904 = vmatpush.bf16.msra.mxu0 %v872
  %905 = vmatpush.bf16.msra.mxu0 %v871
  %906 = vmatpush.bf16.msra.mxu0 %v870
  %907 = vmatpush.bf16.msra.mxu0 %v869
  %908 = vmatpush.bf16.msra.mxu0 %v868
  %909 = vmatpush.bf16.msra.mxu0 %v867
  %910 = vmatmul.bf16.gmra.mxu0 %v796
  %v911 = vpop.f32.mrf.mxu0
  %v912 = vadd.f32 0.0, %v911
  %v913 = vpop.f32.mrf.mxu0
  %v914 = vadd.f32 0.0, %v913
  %915 = vmatmul.bf16.gmra.mxu0 %v798
  %v916 = vpop.f32.mrf.mxu0
  %v917 = vadd.f32 0.0, %v916
  %v918 = vpop.f32.mrf.mxu0
  %v919 = vadd.f32 0.0, %v918
  %920 = vmatmul.bf16.gmra.mxu0 %v800
  %v921 = vpop.f32.mrf.mxu0
  %v922 = vadd.f32 0.0, %v921
  %v923 = vpop.f32.mrf.mxu0
  %v924 = vadd.f32 0.0, %v923
  %925 = vmatmul.bf16.gmra.mxu0 %v802
  %v926 = vpop.f32.mrf.mxu0
  %v927 = vadd.f32 0.0, %v926
  %v928 = vpop.f32.mrf.mxu0
  %v929 = vadd.f32 0.0, %v928
  %930 = vmatmul.bf16.gmra.mxu0 %v804
  %v931 = vpop.f32.mrf.mxu0
  %v932 = vadd.f32 0.0, %v931
  %v933 = vpop.f32.mrf.mxu0
  %v934 = vadd.f32 0.0, %v933
  %935 = vdwg.mxu0
  %936 = vmatpush.bf16.msra.mxu0 0
  %937 = vmatpush.bf16.msra.mxu0 0
  %938 = vmatpush.bf16.msra.mxu0 0
  %939 = vmatpush.bf16.msra.mxu0 0
  %940 = vmatpush.bf16.msra.mxu0 0
  %941 = vmatpush.bf16.msra.mxu0 0
  %942 = vmatpush.bf16.msra.mxu0 %v876
  %943 = vmatpush.bf16.msra.mxu0 %v875
  %944 = vmatmul.bf16.gmra.mxu0 %v888
  %v945 = vpop.f32.mrf.mxu0
  %v946 = vadd.f32 %v912, %v945
  %v947 = vpop.f32.mrf.mxu0
  %v948 = vadd.f32 %v914, %v947
  %949 = vmatmul.bf16.gmra.mxu0 %v891
  %v950 = vpop.f32.mrf.mxu0
  %v951 = vadd.f32 %v917, %v950
  %v952 = vpop.f32.mrf.mxu0
  %v953 = vadd.f32 %v919, %v952
  %954 = vmatmul.bf16.gmra.mxu0 %v894
  %v955 = vpop.f32.mrf.mxu0
  %v956 = vadd.f32 %v922, %v955
  %v957 = vpop.f32.mrf.mxu0
  %v958 = vadd.f32 %v924, %v957
  %959 = vmatmul.bf16.gmra.mxu0 %v897
  %v960 = vpop.f32.mrf.mxu0
  %v961 = vadd.f32 %v927, %v960
  %v962 = vpop.f32.mrf.mxu0
  %v963 = vadd.f32 %v929, %v962
  %964 = vmatmul.bf16.gmra.mxu0 %v900
  %v965 = vpop.f32.mrf.mxu0
  %v966 = vadd.f32 %v932, %v965
  %v967 = vpop.f32.mrf.mxu0
  %v968 = vadd.f32 %v934, %v967
  %969 = vdwg.mxu0
  %v970 = vadd.f32 %v772, %v946
  %v971 = vadd.f32 %v774, %v948
  %v972 = vadd.f32 %v777, %v951
  %v973 = vadd.f32 %v779, %v953
  %v974 = vadd.f32 %v782, %v956
  %v975 = vadd.f32 %v784, %v958
  %v976 = vadd.f32 %v787, %v961
  %v977 = vadd.f32 %v789, %v963
  %v978 = vadd.f32 %v792, %v966
  %v979 = vadd.f32 %v794, %v968
  %v980 = vld [vmem:[%s4] sm:$0xff]
  %v981 = vld [vmem:[%s4 + $0x8] sm:$0xff]
  %v982 = vld [vmem:[%s4 + $0x10] sm:$0xff]
  %v983 = vld [vmem:[%s4 + $0x18] sm:$0xff]
  %v984 = vld [vmem:[%s4 + $0x20] sm:$0xff]
  %v985 = vld [vmem:[%s4 + $0x28] sm:$0xff]
  %v986 = vld [vmem:[%s4 + $0x30] sm:$0xff]
  %v987 = vld [vmem:[%s4 + $0x38] sm:$0xff]
  %v988 = vld [vmem:[%s4 + $0x40] sm:$0xff]
  %v989 = vld [vmem:[%s4 + $0x48] sm:$0xff]
  %991 = vset.pattern.permute.xlu0 0
  %992 = vperm.xlu0 %991, %v980
  %v993 = vpop.permute.xlu0 %992
  %996 = vset.pattern.permute.xlu0 0
  %997 = vperm.xlu0 %996, %v981
  %v998 = vpop.permute.xlu0 %997
  %1001 = vset.pattern.permute.xlu0 0
  %1002 = vperm.xlu0 %1001, %v982
  %v1003 = vpop.permute.xlu0 %1002
  %1006 = vset.pattern.permute.xlu0 0
  %1007 = vperm.xlu0 %1006, %v983
  %v1008 = vpop.permute.xlu0 %1007
  %1011 = vset.pattern.permute.xlu0 0
  %1012 = vperm.xlu0 %1011, %v984
  %v1013 = vpop.permute.xlu0 %1012
  %1016 = vset.pattern.permute.xlu0 0
  %1017 = vperm.xlu0 %1016, %v985
  %v1018 = vpop.permute.xlu0 %1017
  %1021 = vset.pattern.permute.xlu0 0
  %1022 = vperm.xlu0 %1021, %v986
  %v1023 = vpop.permute.xlu0 %1022
  %1026 = vset.pattern.permute.xlu0 0
  %1027 = vperm.xlu0 %1026, %v987
  %v1028 = vpop.permute.xlu0 %1027
  %1031 = vset.pattern.permute.xlu0 0
  %1032 = vperm.xlu0 %1031, %v988
  %v1033 = vpop.permute.xlu0 %1032
  %1036 = vset.pattern.permute.xlu0 0
  %1037 = vperm.xlu0 %1036, %v989
  %v1038 = vpop.permute.xlu0 %1037
  %v1040 = vadd.f32 %v970, %v993
  %v1041 = vadd.f32 %v971, %v998
  %v1042 = vadd.f32 %v972, %v1003
  %v1043 = vadd.f32 %v973, %v1008
  %v1044 = vadd.f32 %v974, %v1013
  %v1045 = vadd.f32 %v975, %v1018
  %v1046 = vadd.f32 %v976, %v1023
  %v1047 = vadd.f32 %v977, %v1028
  %v1048 = vadd.f32 %v978, %v1033
  %v1049 = vadd.f32 %v979, %v1038
  %v1050 = vmax.f32 %v1040, 0.0
  %v1051 = vmax.f32 %v1041, 0.0
  %v1052 = vmax.f32 %v1042, 0.0
  %v1053 = vmax.f32 %v1043, 0.0
  %v1054 = vmax.f32 %v1044, 0.0
  %v1055 = vmax.f32 %v1045, 0.0
  %v1056 = vmax.f32 %v1046, 0.0
  %v1057 = vmax.f32 %v1047, 0.0
  %v1058 = vmax.f32 %v1048, 0.0
  %v1059 = vmax.f32 %v1049, 0.0
  %v1060 = vpack.c.bf16 %v1051, %v1050
  %v1061 = vpack.c.bf16 %v1053, %v1052
  %v1062 = vpack.c.bf16 %v1055, %v1054
  %v1063 = vpack.c.bf16 %v1057, %v1056
  %v1064 = vpack.c.bf16 %v1059, %v1058
  %v1065 = vld [vmem:[%s5] sm:$0xf]
  %v1066 = vld [vmem:[%s5 + $0x4] sm:$0xf]
  %v1067 = vld [vmem:[%s5 + $0x8] sm:$0xf]
  %v1068 = vld [vmem:[%s5 + $0xc] sm:$0xf]
  %v1069 = vld [vmem:[%s5 + $0x10] sm:$0xf]
  %v1070 = vld [vmem:[%s5 + $0x14] sm:$0xf]
  %v1071 = vld [vmem:[%s5 + $0x18] sm:$0xf]
  %v1072 = vld [vmem:[%s5 + $0x1c] sm:$0xf]
  %v1073 = vld [vmem:[%s5 + $0x20] sm:$0xf]
  %v1074 = vld [vmem:[%s5 + $0x24] sm:$0xf]
  %v1075 = vld [vmem:[%s5 + $0x28] sm:$0xf]
  %v1076 = vld [vmem:[%s5 + $0x2c] sm:$0xf]
  %v1077 = vld [vmem:[%s5 + $0x30] sm:$0xf]
  %v1078 = vld [vmem:[%s5 + $0x34] sm:$0xf]
  %v1079 = vld [vmem:[%s5 + $0x38] sm:$0xf]
  %v1080 = vld [vmem:[%s5 + $0x3c] sm:$0xf]
  %v1081 = vld [vmem:[%s5 + $0x40] sm:$0xf]
  %v1082 = vld [vmem:[%s5 + $0x44] sm:$0xf]
  %v1083 = vld [vmem:[%s5 + $0x48] sm:$0xf]
  %v1084 = vld [vmem:[%s5 + $0x4c] sm:$0xf]
  %v1085 = vld [vmem:[%s5 + $0x50] sm:$0xf]
  %v1086 = vld [vmem:[%s5 + $0x54] sm:$0xf]
  %v1087 = vld [vmem:[%s5 + $0x58] sm:$0xf]
  %v1088 = vld [vmem:[%s5 + $0x5c] sm:$0xf]
  %v1089 = vld [vmem:[%s5 + $0x60] sm:$0xf]
  %v1090 = vld [vmem:[%s5 + $0x64] sm:$0xf]
  %v1091 = vld [vmem:[%s5 + $0x68] sm:$0xf]
  %v1092 = vld [vmem:[%s5 + $0x6c] sm:$0xf]
  %v1093 = vld [vmem:[%s5 + $0x70] sm:$0xf]
  %v1094 = vld [vmem:[%s5 + $0x74] sm:$0xf]
  %v1125 = vunpack.c.l.b16 %v1065
  %v1126 = vunpack.c.l.b16 %v1066
  %v1127 = vunpack.c.l.b16 %v1067
  %v1128 = vunpack.c.l.b16 %v1068
  %v1129 = vunpack.c.l.b16 %v1069
  %v1130 = vunpack.c.l.b16 %v1070
  %v1131 = vunpack.c.l.b16 %v1071
  %v1132 = vunpack.c.l.b16 %v1072
  %v1133 = vunpack.c.l.b16 %v1073
  %v1134 = vunpack.c.l.b16 %v1074
  %v1135 = vunpack.c.l.b16 %v1075
  %v1136 = vunpack.c.l.b16 %v1076
  %v1137 = vunpack.c.l.b16 %v1077
  %v1138 = vunpack.c.l.b16 %v1078
  %v1139 = vunpack.c.l.b16 %v1079
  %v1140 = vunpack.c.l.b16 %v1080
  %v1141 = vunpack.c.l.b16 %v1081
  %v1142 = vunpack.c.l.b16 %v1082
  %v1143 = vunpack.c.l.b16 %v1083
  %v1144 = vunpack.c.l.b16 %v1084
  %v1145 = vunpack.c.l.b16 %v1085
  %v1146 = vunpack.c.l.b16 %v1086
  %v1147 = vunpack.c.l.b16 %v1087
  %v1148 = vunpack.c.l.b16 %v1088
  %v1149 = vunpack.c.l.b16 %v1089
  %v1150 = vunpack.c.l.b16 %v1090
  %v1151 = vunpack.c.l.b16 %v1091
  %v1152 = vunpack.c.l.b16 %v1092
  %v1153 = vunpack.c.l.b16 %v1093
  %v1154 = vunpack.c.l.b16 %v1094
  %v1155 = vpack.c.b16 %v1126, %v1125
  %v1156 = vpack.c.b16 %v1128, %v1127
  %v1157 = vpack.c.b16 %v1130, %v1129
  %v1158 = vpack.c.b16 %v1132, %v1131
  %v1159 = vpack.c.b16 %v1134, %v1133
  %v1160 = vpack.c.b16 %v1136, %v1135
  %v1161 = vpack.c.b16 %v1138, %v1137
  %v1162 = vpack.c.b16 %v1140, %v1139
  %v1163 = vpack.c.b16 %v1142, %v1141
  %v1164 = vpack.c.b16 %v1144, %v1143
  %v1165 = vpack.c.b16 %v1146, %v1145
  %v1166 = vpack.c.b16 %v1148, %v1147
  %v1167 = vpack.c.b16 %v1150, %v1149
  %v1168 = vpack.c.b16 %v1152, %v1151
  %v1169 = vpack.c.b16 %v1154, %v1153
  %v1171 = vsel %vm234, %v1155, 0
  %v1174 = vsel %vm234, %v1156, 0
  %v1177 = vsel %vm234, %v1157, 0
  %v1180 = vsel %vm234, %v1158, 0
  %v1183 = vsel %vm234, %v1159, 0
  %v1186 = vsel %vm234, %v1160, 0
  %v1189 = vsel %vm234, %v1161, 0
  %v1192 = vsel %vm234, %v1162, 0
  %v1195 = vsel %vm234, %v1163, 0
  %v1198 = vsel %vm234, %v1164, 0
  %v1201 = vsel %vm234, %v1165, 0
  %v1204 = vsel %vm234, %v1166, 0
  %v1207 = vsel %vm234, %v1167, 0
  %v1210 = vsel %vm234, %v1168, 0
  %v1213 = vsel %vm234, %v1169, 0
  %1215 = vmatpush.bf16.msra.mxu0 0
  %1216 = vmatpush.bf16.msra.mxu0 0
  %1217 = vmatpush.bf16.msra.mxu0 0
  %1218 = vmatpush.bf16.msra.mxu0 %v1064
  %1219 = vmatpush.bf16.msra.mxu0 %v1063
  %1220 = vmatpush.bf16.msra.mxu0 %v1062
  %1221 = vmatpush.bf16.msra.mxu0 %v1061
  %1222 = vmatpush.bf16.msra.mxu0 %v1060
  %1223 = vmatmul.bf16.gmra.mxu0 %v1171
  %v1224 = vpop.f32.mrf.mxu0
  %v1225 = vadd.f32 0.0, %v1224
  %v1226 = vpop.f32.mrf.mxu0
  %v1227 = vadd.f32 0.0, %v1226
  %1228 = vmatmul.bf16.gmra.mxu0 %v1174
  %v1229 = vpop.f32.mrf.mxu0
  %v1230 = vadd.f32 0.0, %v1229
  %v1231 = vpop.f32.mrf.mxu0
  %v1232 = vadd.f32 0.0, %v1231
  %1233 = vmatmul.bf16.gmra.mxu0 %v1177
  %v1234 = vpop.f32.mrf.mxu0
  %v1235 = vadd.f32 0.0, %v1234
  %v1236 = vpop.f32.mrf.mxu0
  %v1237 = vadd.f32 0.0, %v1236
  %1238 = vmatmul.bf16.gmra.mxu0 %v1180
  %v1239 = vpop.f32.mrf.mxu0
  %v1240 = vadd.f32 0.0, %v1239
  %v1241 = vpop.f32.mrf.mxu0
  %v1242 = vadd.f32 0.0, %v1241
  %1243 = vmatmul.bf16.gmra.mxu0 %v1183
  %v1244 = vpop.f32.mrf.mxu0
  %v1245 = vadd.f32 0.0, %v1244
  %v1246 = vpop.f32.mrf.mxu0
  %v1247 = vadd.f32 0.0, %v1246
  %1248 = vmatmul.bf16.gmra.mxu0 %v1186
  %v1249 = vpop.f32.mrf.mxu0
  %v1250 = vadd.f32 0.0, %v1249
  %v1251 = vpop.f32.mrf.mxu0
  %v1252 = vadd.f32 0.0, %v1251
  %1253 = vmatmul.bf16.gmra.mxu0 %v1189
  %v1254 = vpop.f32.mrf.mxu0
  %v1255 = vadd.f32 0.0, %v1254
  %v1256 = vpop.f32.mrf.mxu0
  %v1257 = vadd.f32 0.0, %v1256
  %1258 = vmatmul.bf16.gmra.mxu0 %v1192
  %v1259 = vpop.f32.mrf.mxu0
  %v1260 = vadd.f32 0.0, %v1259
  %v1261 = vpop.f32.mrf.mxu0
  %v1262 = vadd.f32 0.0, %v1261
  %1263 = vmatmul.bf16.gmra.mxu0 %v1195
  %v1264 = vpop.f32.mrf.mxu0
  %v1265 = vadd.f32 0.0, %v1264
  %v1266 = vpop.f32.mrf.mxu0
  %v1267 = vadd.f32 0.0, %v1266
  %1268 = vmatmul.bf16.gmra.mxu0 %v1198
  %v1269 = vpop.f32.mrf.mxu0
  %v1270 = vadd.f32 0.0, %v1269
  %v1271 = vpop.f32.mrf.mxu0
  %v1272 = vadd.f32 0.0, %v1271
  %1273 = vmatmul.bf16.gmra.mxu0 %v1201
  %v1274 = vpop.f32.mrf.mxu0
  %v1275 = vadd.f32 0.0, %v1274
  %v1276 = vpop.f32.mrf.mxu0
  %v1277 = vadd.f32 0.0, %v1276
  %1278 = vmatmul.bf16.gmra.mxu0 %v1204
  %v1279 = vpop.f32.mrf.mxu0
  %v1280 = vadd.f32 0.0, %v1279
  %v1281 = vpop.f32.mrf.mxu0
  %v1282 = vadd.f32 0.0, %v1281
  %1283 = vmatmul.bf16.gmra.mxu0 %v1207
  %v1284 = vpop.f32.mrf.mxu0
  %v1285 = vadd.f32 0.0, %v1284
  %v1286 = vpop.f32.mrf.mxu0
  %v1287 = vadd.f32 0.0, %v1286
  %1288 = vmatmul.bf16.gmra.mxu0 %v1210
  %v1289 = vpop.f32.mrf.mxu0
  %v1290 = vadd.f32 0.0, %v1289
  %v1291 = vpop.f32.mrf.mxu0
  %v1292 = vadd.f32 0.0, %v1291
  %1293 = vmatmul.bf16.gmra.mxu0 %v1213
  %v1294 = vpop.f32.mrf.mxu0
  %v1295 = vadd.f32 0.0, %v1294
  %v1296 = vpop.f32.mrf.mxu0
  %v1297 = vadd.f32 0.0, %v1296
  %1298 = vdwg.mxu0
  %v1299 = vpack.c.bf16 %v1227, %v1225
  %v1300 = vpack.c.bf16 %v1232, %v1230
  %v1301 = vpack.c.bf16 %v1237, %v1235
  %v1302 = vpack.c.bf16 %v1242, %v1240
  %v1303 = vpack.c.bf16 %v1247, %v1245
  %v1304 = vld [vmem:[%s6] sm:$0xf]
  %v1305 = vld [vmem:[%s6 + $0x4] sm:$0xf]
  %v1306 = vld [vmem:[%s6 + $0x8] sm:$0xf]
  %v1307 = vld [vmem:[%s6 + $0xc] sm:$0xf]
  %v1308 = vld [vmem:[%s6 + $0x10] sm:$0xf]
  %v1309 = vld [vmem:[%s6 + $0x14] sm:$0xf]
  %v1310 = vld [vmem:[%s6 + $0x18] sm:$0xf]
  %v1311 = vld [vmem:[%s6 + $0x1c] sm:$0xf]
  %v1312 = vld [vmem:[%s6 + $0x20] sm:$0xf]
  %v1313 = vld [vmem:[%s6 + $0x24] sm:$0xf]
  %v1314 = vpack.c.bf16 %v1252, %v1250
  %v1315 = vpack.c.bf16 %v1257, %v1255
  %v1316 = vpack.c.bf16 %v1262, %v1260
  %v1317 = vpack.c.bf16 %v1267, %v1265
  %v1318 = vpack.c.bf16 %v1272, %v1270
  %s1319 = scalar_lea.vmem %s6, 40
  %v1320 = vld [vmem:[%s1319] sm:$0xf]
  %v1321 = vld [vmem:[%s1319 + $0x4] sm:$0xf]
  %v1322 = vld [vmem:[%s1319 + $0x8] sm:$0xf]
  %v1323 = vld [vmem:[%s1319 + $0xc] sm:$0xf]
  %v1324 = vld [vmem:[%s1319 + $0x10] sm:$0xf]
  %v1325 = vld [vmem:[%s1319 + $0x14] sm:$0xf]
  %v1326 = vld [vmem:[%s1319 + $0x18] sm:$0xf]
  %v1327 = vld [vmem:[%s1319 + $0x1c] sm:$0xf]
  %v1328 = vld [vmem:[%s1319 + $0x20] sm:$0xf]
  %v1329 = vld [vmem:[%s1319 + $0x24] sm:$0xf]
  %v1340 = vunpack.c.l.b16 %v1320
  %v1341 = vunpack.c.l.b16 %v1321
  %v1342 = vunpack.c.l.b16 %v1322
  %v1343 = vunpack.c.l.b16 %v1323
  %v1344 = vunpack.c.l.b16 %v1324
  %v1345 = vunpack.c.l.b16 %v1325
  %v1346 = vunpack.c.l.b16 %v1326
  %v1347 = vunpack.c.l.b16 %v1327
  %v1348 = vunpack.c.l.b16 %v1328
  %v1349 = vunpack.c.l.b16 %v1329
  %v1350 = vpack.c.b16 %v1341, %v1340
  %v1351 = vpack.c.b16 %v1343, %v1342
  %v1352 = vpack.c.b16 %v1345, %v1344
  %v1353 = vpack.c.b16 %v1347, %v1346
  %v1354 = vpack.c.b16 %v1349, %v1348
  %v1361 = vsel %vm234, %v1314, 0
  %v1364 = vsel %vm234, %v1315, 0
  %v1367 = vsel %vm234, %v1316, 0
  %v1370 = vsel %vm234, %v1317, 0
  %v1373 = vsel %vm234, %v1318, 0
  %1375 = vmatpush.bf16.msra.mxu0 0
  %1376 = vmatpush.bf16.msra.mxu0 0
  %1377 = vmatpush.bf16.msra.mxu0 0
  %1378 = vmatpush.bf16.msra.mxu0 %v1354
  %1379 = vmatpush.bf16.msra.mxu0 %v1353
  %1380 = vmatpush.bf16.msra.mxu0 %v1352
  %1381 = vmatpush.bf16.msra.mxu0 %v1351
  %1382 = vmatpush.bf16.msra.mxu0 %v1350
  %1383 = vmatmul.bf16.gmra.mxu0 %v1361
  %v1384 = vpop.f32.mrf.mxu0
  %v1385 = vadd.f32 0.0, %v1384
  %v1386 = vpop.f32.mrf.mxu0
  %v1387 = vadd.f32 0.0, %v1386
  %1388 = vmatmul.bf16.gmra.mxu0 %v1364
  %v1389 = vpop.f32.mrf.mxu0
  %v1390 = vadd.f32 0.0, %v1389
  %v1391 = vpop.f32.mrf.mxu0
  %v1392 = vadd.f32 0.0, %v1391
  %1393 = vmatmul.bf16.gmra.mxu0 %v1367
  %v1394 = vpop.f32.mrf.mxu0
  %v1395 = vadd.f32 0.0, %v1394
  %v1396 = vpop.f32.mrf.mxu0
  %v1397 = vadd.f32 0.0, %v1396
  %1398 = vmatmul.bf16.gmra.mxu0 %v1370
  %v1399 = vpop.f32.mrf.mxu0
  %v1400 = vadd.f32 0.0, %v1399
  %v1401 = vpop.f32.mrf.mxu0
  %v1402 = vadd.f32 0.0, %v1401
  %1403 = vmatmul.bf16.gmra.mxu0 %v1373
  %v1404 = vpop.f32.mrf.mxu0
  %v1405 = vadd.f32 0.0, %v1404
  %v1406 = vpop.f32.mrf.mxu0
  %v1407 = vadd.f32 0.0, %v1406
  %1408 = vdwg.mxu0
  %v1419 = vunpack.c.l.b16 %v1304
  %v1420 = vunpack.c.l.b16 %v1305
  %v1421 = vunpack.c.l.b16 %v1306
  %v1422 = vunpack.c.l.b16 %v1307
  %v1423 = vunpack.c.l.b16 %v1308
  %v1424 = vunpack.c.l.b16 %v1309
  %v1425 = vunpack.c.l.b16 %v1310
  %v1426 = vunpack.c.l.b16 %v1311
  %v1427 = vunpack.c.l.b16 %v1312
  %v1428 = vunpack.c.l.b16 %v1313
  %v1429 = vpack.c.b16 %v1420, %v1419
  %v1430 = vpack.c.b16 %v1422, %v1421
  %v1431 = vpack.c.b16 %v1424, %v1423
  %v1432 = vpack.c.b16 %v1426, %v1425
  %v1433 = vpack.c.b16 %v1428, %v1427
  %v1440 = vsel %vm234, %v1299, 0
  %v1443 = vsel %vm234, %v1300, 0
  %v1446 = vsel %vm234, %v1301, 0
  %v1449 = vsel %vm234, %v1302, 0
  %v1452 = vsel %vm234, %v1303, 0
  %1454 = vmatpush.bf16.msra.mxu0 0
  %1455 = vmatpush.bf16.msra.mxu0 0
  %1456 = vmatpush.bf16.msra.mxu0 0
  %1457 = vmatpush.bf16.msra.mxu0 %v1433
  %1458 = vmatpush.bf16.msra.mxu0 %v1432
  %1459 = vmatpush.bf16.msra.mxu0 %v1431
  %1460 = vmatpush.bf16.msra.mxu0 %v1430
  %1461 = vmatpush.bf16.msra.mxu0 %v1429
  %1462 = vmatmul.bf16.gmra.mxu0 %v1440
  %v1463 = vpop.f32.mrf.mxu0
  %v1464 = vadd.f32 %v1385, %v1463
  %v1465 = vpop.f32.mrf.mxu0
  %v1466 = vadd.f32 %v1387, %v1465
  %1467 = vmatmul.bf16.gmra.mxu0 %v1443
  %v1468 = vpop.f32.mrf.mxu0
  %v1469 = vadd.f32 %v1390, %v1468
  %v1470 = vpop.f32.mrf.mxu0
  %v1471 = vadd.f32 %v1392, %v1470
  %1472 = vmatmul.bf16.gmra.mxu0 %v1446
  %v1473 = vpop.f32.mrf.mxu0
  %v1474 = vadd.f32 %v1395, %v1473
  %v1475 = vpop.f32.mrf.mxu0
  %v1476 = vadd.f32 %v1397, %v1475
  %1477 = vmatmul.bf16.gmra.mxu0 %v1449
  %v1478 = vpop.f32.mrf.mxu0
  %v1479 = vadd.f32 %v1400, %v1478
  %v1480 = vpop.f32.mrf.mxu0
  %v1481 = vadd.f32 %v1402, %v1480
  %1482 = vmatmul.bf16.gmra.mxu0 %v1452
  %v1483 = vpop.f32.mrf.mxu0
  %v1484 = vadd.f32 %v1405, %v1483
  %v1485 = vpop.f32.mrf.mxu0
  %v1486 = vadd.f32 %v1407, %v1485
  %1487 = vdwg.mxu0
  %v1488 = vpack.c.bf16 %v1277, %v1275
  %v1489 = vpack.c.bf16 %v1282, %v1280
  %v1490 = vpack.c.bf16 %v1287, %v1285
  %v1491 = vpack.c.bf16 %v1292, %v1290
  %v1492 = vpack.c.bf16 %v1297, %v1295
  %s1493 = scalar_lea.vmem %s6, 80
  %v1494 = vld [vmem:[%s1493] sm:$0xf]
  %v1495 = vld [vmem:[%s1493 + $0x4] sm:$0xf]
  %v1496 = vld [vmem:[%s1493 + $0x8] sm:$0xf]
  %v1497 = vld [vmem:[%s1493 + $0xc] sm:$0xf]
  %v1498 = vld [vmem:[%s1493 + $0x10] sm:$0xf]
  %v1499 = vld [vmem:[%s1493 + $0x14] sm:$0xf]
  %v1500 = vld [vmem:[%s1493 + $0x18] sm:$0xf]
  %v1501 = vld [vmem:[%s1493 + $0x1c] sm:$0xf]
  %v1502 = vld [vmem:[%s1493 + $0x20] sm:$0xf]
  %v1503 = vld [vmem:[%s1493 + $0x24] sm:$0xf]
  %v1514 = vunpack.c.l.b16 %v1494
  %v1515 = vunpack.c.l.b16 %v1495
  %v1516 = vunpack.c.l.b16 %v1496
  %v1517 = vunpack.c.l.b16 %v1497
  %v1518 = vunpack.c.l.b16 %v1498
  %v1519 = vunpack.c.l.b16 %v1499
  %v1520 = vunpack.c.l.b16 %v1500
  %v1521 = vunpack.c.l.b16 %v1501
  %v1522 = vunpack.c.l.b16 %v1502
  %v1523 = vunpack.c.l.b16 %v1503
  %v1524 = vpack.c.b16 %v1515, %v1514
  %v1525 = vpack.c.b16 %v1517, %v1516
  %v1526 = vpack.c.b16 %v1519, %v1518
  %v1527 = vpack.c.b16 %v1521, %v1520
  %v1528 = vpack.c.b16 %v1523, %v1522
  %v1535 = vsel %vm234, %v1488, 0
  %v1538 = vsel %vm234, %v1489, 0
  %v1541 = vsel %vm234, %v1490, 0
  %v1544 = vsel %vm234, %v1491, 0
  %v1547 = vsel %vm234, %v1492, 0
  %1549 = vmatpush.bf16.msra.mxu0 0
  %1550 = vmatpush.bf16.msra.mxu0 0
  %1551 = vmatpush.bf16.msra.mxu0 0
  %1552 = vmatpush.bf16.msra.mxu0 %v1528
  %1553 = vmatpush.bf16.msra.mxu0 %v1527
  %1554 = vmatpush.bf16.msra.mxu0 %v1526
  %1555 = vmatpush.bf16.msra.mxu0 %v1525
  %1556 = vmatpush.bf16.msra.mxu0 %v1524
  %1557 = vmatmul.bf16.gmra.mxu0 %v1535
  %v1558 = vpop.f32.mrf.mxu0
  %v1559 = vadd.f32 0.0, %v1558
  %v1560 = vpop.f32.mrf.mxu0
  %v1561 = vadd.f32 0.0, %v1560
  %1562 = vmatmul.bf16.gmra.mxu0 %v1538
  %v1563 = vpop.f32.mrf.mxu0
  %v1564 = vadd.f32 0.0, %v1563
  %v1565 = vpop.f32.mrf.mxu0
  %v1566 = vadd.f32 0.0, %v1565
  %1567 = vmatmul.bf16.gmra.mxu0 %v1541
  %v1568 = vpop.f32.mrf.mxu0
  %v1569 = vadd.f32 0.0, %v1568
  %v1570 = vpop.f32.mrf.mxu0
  %v1571 = vadd.f32 0.0, %v1570
  %1572 = vmatmul.bf16.gmra.mxu0 %v1544
  %v1573 = vpop.f32.mrf.mxu0
  %v1574 = vadd.f32 0.0, %v1573
  %v1575 = vpop.f32.mrf.mxu0
  %v1576 = vadd.f32 0.0, %v1575
  %1577 = vmatmul.bf16.gmra.mxu0 %v1547
  %v1578 = vpop.f32.mrf.mxu0
  %v1579 = vadd.f32 0.0, %v1578
  %v1580 = vpop.f32.mrf.mxu0
  %v1581 = vadd.f32 0.0, %v1580
  %1582 = vdwg.mxu0
  %v1583 = vadd.f32 %v1464, %v1559
  %v1584 = vadd.f32 %v1466, %v1561
  %v1585 = vadd.f32 %v1469, %v1564
  %v1586 = vadd.f32 %v1471, %v1566
  %v1587 = vadd.f32 %v1474, %v1569
  %v1588 = vadd.f32 %v1476, %v1571
  %v1589 = vadd.f32 %v1479, %v1574
  %v1590 = vadd.f32 %v1481, %v1576
  %v1591 = vadd.f32 %v1484, %v1579
  %v1592 = vadd.f32 %v1486, %v1581
  %v1593 = vld [vmem:[%s7] sm:$0xff]
  %v1594 = vld [vmem:[%s7 + $0x8] sm:$0xff]
  %v1595 = vld [vmem:[%s7 + $0x10] sm:$0xff]
  %v1596 = vld [vmem:[%s7 + $0x18] sm:$0xff]
  %v1597 = vld [vmem:[%s7 + $0x20] sm:$0xff]
  %v1598 = vld [vmem:[%s7 + $0x28] sm:$0xff]
  %v1599 = vld [vmem:[%s7 + $0x30] sm:$0xff]
  %v1600 = vld [vmem:[%s7 + $0x38] sm:$0xff]
  %v1601 = vld [vmem:[%s7 + $0x40] sm:$0xff]
  %v1602 = vld [vmem:[%s7 + $0x48] sm:$0xff]
  %1604 = vset.pattern.permute.xlu0 0
  %1605 = vperm.xlu0 %1604, %v1593
  %v1606 = vpop.permute.xlu0 %1605
  %1609 = vset.pattern.permute.xlu0 0
  %1610 = vperm.xlu0 %1609, %v1594
  %v1611 = vpop.permute.xlu0 %1610
  %1614 = vset.pattern.permute.xlu0 0
  %1615 = vperm.xlu0 %1614, %v1595
  %v1616 = vpop.permute.xlu0 %1615
  %1619 = vset.pattern.permute.xlu0 0
  %1620 = vperm.xlu0 %1619, %v1596
  %v1621 = vpop.permute.xlu0 %1620
  %1624 = vset.pattern.permute.xlu0 0
  %1625 = vperm.xlu0 %1624, %v1597
  %v1626 = vpop.permute.xlu0 %1625
  %1629 = vset.pattern.permute.xlu0 0
  %1630 = vperm.xlu0 %1629, %v1598
  %v1631 = vpop.permute.xlu0 %1630
  %1634 = vset.pattern.permute.xlu0 0
  %1635 = vperm.xlu0 %1634, %v1599
  %v1636 = vpop.permute.xlu0 %1635
  %1639 = vset.pattern.permute.xlu0 0
  %1640 = vperm.xlu0 %1639, %v1600
  %v1641 = vpop.permute.xlu0 %1640
  %1644 = vset.pattern.permute.xlu0 0
  %1645 = vperm.xlu0 %1644, %v1601
  %v1646 = vpop.permute.xlu0 %1645
  %1649 = vset.pattern.permute.xlu0 0
  %1650 = vperm.xlu0 %1649, %v1602
  %v1651 = vpop.permute.xlu0 %1650
  %v1653 = vadd.f32 %v1583, %v1606
  %v1654 = vadd.f32 %v1584, %v1611
  %v1655 = vadd.f32 %v1585, %v1616
  %v1656 = vadd.f32 %v1586, %v1621
  %v1657 = vadd.f32 %v1587, %v1626
  %v1658 = vadd.f32 %v1588, %v1631
  %v1659 = vadd.f32 %v1589, %v1636
  %v1660 = vadd.f32 %v1590, %v1641
  %v1661 = vadd.f32 %v1591, %v1646
  %v1662 = vadd.f32 %v1592, %v1651
  %v1663 = vmax.f32 %v1653, 0.0
  %v1664 = vmax.f32 %v1654, 0.0
  %v1665 = vmax.f32 %v1655, 0.0
  %v1666 = vmax.f32 %v1656, 0.0
  %v1667 = vmax.f32 %v1657, 0.0
  %v1668 = vmax.f32 %v1658, 0.0
  %v1669 = vmax.f32 %v1659, 0.0
  %v1670 = vmax.f32 %v1660, 0.0
  %v1671 = vmax.f32 %v1661, 0.0
  %v1672 = vmax.f32 %v1662, 0.0
  %v1673 = vpack.c.bf16 %v1664, %v1663
  %v1674 = vpack.c.bf16 %v1666, %v1665
  %v1675 = vpack.c.bf16 %v1668, %v1667
  %v1676 = vpack.c.bf16 %v1670, %v1669
  %v1677 = vpack.c.bf16 %v1672, %v1671
  %v1678 = vld [vmem:[%s8] sm:$0xf]
  %v1679 = vld [vmem:[%s8 + $0x4] sm:$0xf]
  %v1680 = vld [vmem:[%s8 + $0x8] sm:$0xf]
  %v1681 = vld [vmem:[%s8 + $0xc] sm:$0xf]
  %v1682 = vld [vmem:[%s8 + $0x10] sm:$0xf]
  %v1683 = vld [vmem:[%s8 + $0x14] sm:$0xf]
  %v1684 = vld [vmem:[%s8 + $0x18] sm:$0xf]
  %v1685 = vld [vmem:[%s8 + $0x1c] sm:$0xf]
  %v1686 = vld [vmem:[%s8 + $0x20] sm:$0xf]
  %v1687 = vld [vmem:[%s8 + $0x24] sm:$0xf]
  %v1688 = vld [vmem:[%s8 + $0x28] sm:$0xf]
  %v1689 = vld [vmem:[%s8 + $0x2c] sm:$0xf]
  %v1690 = vld [vmem:[%s8 + $0x30] sm:$0xf]
  %v1691 = vld [vmem:[%s8 + $0x34] sm:$0xf]
  %v1692 = vld [vmem:[%s8 + $0x38] sm:$0xf]
  %v1693 = vld [vmem:[%s8 + $0x3c] sm:$0xf]
  %v1694 = vld [vmem:[%s8 + $0x40] sm:$0xf]
  %v1695 = vld [vmem:[%s8 + $0x44] sm:$0xf]
  %v1696 = vld [vmem:[%s8 + $0x48] sm:$0xf]
  %v1697 = vld [vmem:[%s8 + $0x4c] sm:$0xf]
  %v1698 = vld [vmem:[%s8 + $0x50] sm:$0xf]
  %v1699 = vld [vmem:[%s8 + $0x54] sm:$0xf]
  %v1700 = vld [vmem:[%s8 + $0x58] sm:$0xf]
  %v1701 = vld [vmem:[%s8 + $0x5c] sm:$0xf]
  %v1702 = vld [vmem:[%s8 + $0x60] sm:$0xf]
  %v1703 = vld [vmem:[%s8 + $0x64] sm:$0xf]
  %v1704 = vld [vmem:[%s8 + $0x68] sm:$0xf]
  %v1705 = vld [vmem:[%s8 + $0x6c] sm:$0xf]
  %v1706 = vld [vmem:[%s8 + $0x70] sm:$0xf]
  %v1707 = vld [vmem:[%s8 + $0x74] sm:$0xf]
  %v1738 = vunpack.c.l.b16 %v1678
  %v1739 = vunpack.c.l.b16 %v1679
  %v1740 = vunpack.c.l.b16 %v1680
  %v1741 = vunpack.c.l.b16 %v1681
  %v1742 = vunpack.c.l.b16 %v1682
  %v1743 = vunpack.c.l.b16 %v1683
  %v1744 = vunpack.c.l.b16 %v1684
  %v1745 = vunpack.c.l.b16 %v1685
  %v1746 = vunpack.c.l.b16 %v1686
  %v1747 = vunpack.c.l.b16 %v1687
  %v1748 = vunpack.c.l.b16 %v1688
  %v1749 = vunpack.c.l.b16 %v1689
  %v1750 = vunpack.c.l.b16 %v1690
  %v1751 = vunpack.c.l.b16 %v1691
  %v1752 = vunpack.c.l.b16 %v1692
  %v1753 = vunpack.c.l.b16 %v1693
  %v1754 = vunpack.c.l.b16 %v1694
  %v1755 = vunpack.c.l.b16 %v1695
  %v1756 = vunpack.c.l.b16 %v1696
  %v1757 = vunpack.c.l.b16 %v1697
  %v1758 = vunpack.c.l.b16 %v1698
  %v1759 = vunpack.c.l.b16 %v1699
  %v1760 = vunpack.c.l.b16 %v1700
  %v1761 = vunpack.c.l.b16 %v1701
  %v1762 = vunpack.c.l.b16 %v1702
  %v1763 = vunpack.c.l.b16 %v1703
  %v1764 = vunpack.c.l.b16 %v1704
  %v1765 = vunpack.c.l.b16 %v1705
  %v1766 = vunpack.c.l.b16 %v1706
  %v1767 = vunpack.c.l.b16 %v1707
  %v1768 = vpack.c.b16 %v1739, %v1738
  %v1769 = vpack.c.b16 %v1741, %v1740
  %v1770 = vpack.c.b16 %v1743, %v1742
  %v1771 = vpack.c.b16 %v1745, %v1744
  %v1772 = vpack.c.b16 %v1747, %v1746
  %v1773 = vpack.c.b16 %v1749, %v1748
  %v1774 = vpack.c.b16 %v1751, %v1750
  %v1775 = vpack.c.b16 %v1753, %v1752
  %v1776 = vpack.c.b16 %v1755, %v1754
  %v1777 = vpack.c.b16 %v1757, %v1756
  %v1778 = vpack.c.b16 %v1759, %v1758
  %v1779 = vpack.c.b16 %v1761, %v1760
  %v1780 = vpack.c.b16 %v1763, %v1762
  %v1781 = vpack.c.b16 %v1765, %v1764
  %v1782 = vpack.c.b16 %v1767, %v1766
  %v1784 = vsel %vm234, %v1768, 0
  %v1787 = vsel %vm234, %v1769, 0
  %v1790 = vsel %vm234, %v1770, 0
  %v1793 = vsel %vm234, %v1771, 0
  %v1796 = vsel %vm234, %v1772, 0
  %v1799 = vsel %vm234, %v1773, 0
  %v1802 = vsel %vm234, %v1774, 0
  %v1805 = vsel %vm234, %v1775, 0
  %v1808 = vsel %vm234, %v1776, 0
  %v1811 = vsel %vm234, %v1777, 0
  %v1814 = vsel %vm234, %v1778, 0
  %v1817 = vsel %vm234, %v1779, 0
  %v1820 = vsel %vm234, %v1780, 0
  %v1823 = vsel %vm234, %v1781, 0
  %v1826 = vsel %vm234, %v1782, 0
  %1828 = vmatpush.bf16.msra.mxu0 0
  %1829 = vmatpush.bf16.msra.mxu0 0
  %1830 = vmatpush.bf16.msra.mxu0 0
  %1831 = vmatpush.bf16.msra.mxu0 %v1677
  %1832 = vmatpush.bf16.msra.mxu0 %v1676
  %1833 = vmatpush.bf16.msra.mxu0 %v1675
  %1834 = vmatpush.bf16.msra.mxu0 %v1674
  %1835 = vmatpush.bf16.msra.mxu0 %v1673
  %1836 = vmatmul.bf16.gmra.mxu0 %v1784
  %v1837 = vpop.f32.mrf.mxu0
  %v1838 = vadd.f32 0.0, %v1837
  %v1839 = vpop.f32.mrf.mxu0
  %v1840 = vadd.f32 0.0, %v1839
  %1841 = vmatmul.bf16.gmra.mxu0 %v1787
  %v1842 = vpop.f32.mrf.mxu0
  %v1843 = vadd.f32 0.0, %v1842
  %v1844 = vpop.f32.mrf.mxu0
  %v1845 = vadd.f32 0.0, %v1844
  %1846 = vmatmul.bf16.gmra.mxu0 %v1790
  %v1847 = vpop.f32.mrf.mxu0
  %v1848 = vadd.f32 0.0, %v1847
  %v1849 = vpop.f32.mrf.mxu0
  %v1850 = vadd.f32 0.0, %v1849
  %1851 = vmatmul.bf16.gmra.mxu0 %v1793
  %v1852 = vpop.f32.mrf.mxu0
  %v1853 = vadd.f32 0.0, %v1852
  %v1854 = vpop.f32.mrf.mxu0
  %v1855 = vadd.f32 0.0, %v1854
  %1856 = vmatmul.bf16.gmra.mxu0 %v1796
  %v1857 = vpop.f32.mrf.mxu0
  %v1858 = vadd.f32 0.0, %v1857
  %v1859 = vpop.f32.mrf.mxu0
  %v1860 = vadd.f32 0.0, %v1859
  %1861 = vmatmul.bf16.gmra.mxu0 %v1799
  %v1862 = vpop.f32.mrf.mxu0
  %v1863 = vadd.f32 0.0, %v1862
  %v1864 = vpop.f32.mrf.mxu0
  %v1865 = vadd.f32 0.0, %v1864
  %1866 = vmatmul.bf16.gmra.mxu0 %v1802
  %v1867 = vpop.f32.mrf.mxu0
  %v1868 = vadd.f32 0.0, %v1867
  %v1869 = vpop.f32.mrf.mxu0
  %v1870 = vadd.f32 0.0, %v1869
  %1871 = vmatmul.bf16.gmra.mxu0 %v1805
  %v1872 = vpop.f32.mrf.mxu0
  %v1873 = vadd.f32 0.0, %v1872
  %v1874 = vpop.f32.mrf.mxu0
  %v1875 = vadd.f32 0.0, %v1874
  %1876 = vmatmul.bf16.gmra.mxu0 %v1808
  %v1877 = vpop.f32.mrf.mxu0
  %v1878 = vadd.f32 0.0, %v1877
  %v1879 = vpop.f32.mrf.mxu0
  %v1880 = vadd.f32 0.0, %v1879
  %1881 = vmatmul.bf16.gmra.mxu0 %v1811
  %v1882 = vpop.f32.mrf.mxu0
  %v1883 = vadd.f32 0.0, %v1882
  %v1884 = vpop.f32.mrf.mxu0
  %v1885 = vadd.f32 0.0, %v1884
  %1886 = vmatmul.bf16.gmra.mxu0 %v1814
  %v1887 = vpop.f32.mrf.mxu0
  %v1888 = vadd.f32 0.0, %v1887
  %v1889 = vpop.f32.mrf.mxu0
  %v1890 = vadd.f32 0.0, %v1889
  %1891 = vmatmul.bf16.gmra.mxu0 %v1817
  %v1892 = vpop.f32.mrf.mxu0
  %v1893 = vadd.f32 0.0, %v1892
  %v1894 = vpop.f32.mrf.mxu0
  %v1895 = vadd.f32 0.0, %v1894
  %1896 = vmatmul.bf16.gmra.mxu0 %v1820
  %v1897 = vpop.f32.mrf.mxu0
  %v1898 = vadd.f32 0.0, %v1897
  %v1899 = vpop.f32.mrf.mxu0
  %v1900 = vadd.f32 0.0, %v1899
  %1901 = vmatmul.bf16.gmra.mxu0 %v1823
  %v1902 = vpop.f32.mrf.mxu0
  %v1903 = vadd.f32 0.0, %v1902
  %v1904 = vpop.f32.mrf.mxu0
  %v1905 = vadd.f32 0.0, %v1904
  %1906 = vmatmul.bf16.gmra.mxu0 %v1826
  %v1907 = vpop.f32.mrf.mxu0
  %v1908 = vadd.f32 0.0, %v1907
  %v1909 = vpop.f32.mrf.mxu0
  %v1910 = vadd.f32 0.0, %v1909
  %1911 = vdwg.mxu0
  %v1912 = vpack.c.bf16 %v1840, %v1838
  %v1913 = vpack.c.bf16 %v1845, %v1843
  %v1914 = vpack.c.bf16 %v1850, %v1848
  %v1915 = vpack.c.bf16 %v1855, %v1853
  %v1916 = vpack.c.bf16 %v1860, %v1858
  %v1917 = vld [vmem:[%s9] sm:$0xf]
  %v1918 = vld [vmem:[%s9 + $0x4] sm:$0xf]
  %v1919 = vld [vmem:[%s9 + $0x8] sm:$0xf]
  %v1920 = vld [vmem:[%s9 + $0xc] sm:$0xf]
  %v1921 = vld [vmem:[%s9 + $0x10] sm:$0xf]
  %v1922 = vpack.c.bf16 %v1865, %v1863
  %v1923 = vpack.c.bf16 %v1870, %v1868
  %v1924 = vpack.c.bf16 %v1875, %v1873
  %v1925 = vpack.c.bf16 %v1880, %v1878
  %v1926 = vpack.c.bf16 %v1885, %v1883
  %s1927 = scalar_lea.vmem %s9, 20
  %v1928 = vld [vmem:[%s1927] sm:$0xf]
  %v1929 = vld [vmem:[%s1927 + $0x4] sm:$0xf]
  %v1930 = vld [vmem:[%s1927 + $0x8] sm:$0xf]
  %v1931 = vld [vmem:[%s1927 + $0xc] sm:$0xf]
  %v1932 = vld [vmem:[%s1927 + $0x10] sm:$0xf]
  %v1938 = vunpack.c.l.b16 %v1928
  %v1939 = vunpack.c.l.b16 %v1929
  %v1940 = vunpack.c.l.b16 %v1930
  %v1941 = vunpack.c.l.b16 %v1931
  %v1942 = vunpack.c.l.b16 %v1932
  %v1943 = vpack.c.b16 %v1939, %v1938
  %v1944 = vpack.c.b16 %v1941, %v1940
  %v1945 = vpack.c.b16 %v1942, %v1942
  %vm1948 = vcmask 326656
  %v1950 = vsel %vm1948, %v1922, 0
  %v1953 = vsel %vm1948, %v1923, 0
  %v1956 = vsel %vm1948, %v1924, 0
  %v1959 = vsel %vm1948, %v1925, 0
  %v1962 = vsel %vm1948, %v1926, 0
  %vm1964 = vcmask 1043456
  %v1966 = vsel %vm1964, %v1945, 0
  %1968 = vmatpush.bf16.msra.mxu0 0
  %1969 = vmatpush.bf16.msra.mxu0 0
  %1970 = vmatpush.bf16.msra.mxu0 0
  %1971 = vmatpush.bf16.msra.mxu0 0
  %1972 = vmatpush.bf16.msra.mxu0 0
  %1973 = vmatpush.bf16.msra.mxu0 %v1966
  %1974 = vmatpush.bf16.msra.mxu0 %v1944
  %1975 = vmatpush.bf16.msra.mxu0 %v1943
  %1976 = vmatmul.bf16.gmra.mxu0 %v1950
  %v1977 = vpop.f32.mrf.mxu0
  %v1978 = vadd.f32 0.0, %v1977
  %v1979 = vpop.f32.mrf.mxu0
  %v1980 = vadd.f32 0.0, %v1979
  %1981 = vmatmul.bf16.gmra.mxu0 %v1953
  %v1982 = vpop.f32.mrf.mxu0
  %v1983 = vadd.f32 0.0, %v1982
  %v1984 = vpop.f32.mrf.mxu0
  %v1985 = vadd.f32 0.0, %v1984
  %1986 = vmatmul.bf16.gmra.mxu0 %v1956
  %v1987 = vpop.f32.mrf.mxu0
  %v1988 = vadd.f32 0.0, %v1987
  %v1989 = vpop.f32.mrf.mxu0
  %v1990 = vadd.f32 0.0, %v1989
  %1991 = vmatmul.bf16.gmra.mxu0 %v1959
  %v1992 = vpop.f32.mrf.mxu0
  %v1993 = vadd.f32 0.0, %v1992
  %v1994 = vpop.f32.mrf.mxu0
  %v1995 = vadd.f32 0.0, %v1994
  %1996 = vmatmul.bf16.gmra.mxu0 %v1962
  %v1997 = vpop.f32.mrf.mxu0
  %v1998 = vadd.f32 0.0, %v1997
  %v1999 = vpop.f32.mrf.mxu0
  %v2000 = vadd.f32 0.0, %v1999
  %2001 = vdwg.mxu0
  %v2007 = vunpack.c.l.b16 %v1917
  %v2008 = vunpack.c.l.b16 %v1918
  %v2009 = vunpack.c.l.b16 %v1919
  %v2010 = vunpack.c.l.b16 %v1920
  %v2011 = vunpack.c.l.b16 %v1921
  %v2012 = vpack.c.b16 %v2008, %v2007
  %v2013 = vpack.c.b16 %v2010, %v2009
  %v2014 = vpack.c.b16 %v2011, %v2011
  %v2018 = vsel %vm1948, %v1912, 0
  %v2021 = vsel %vm1948, %v1913, 0
  %v2024 = vsel %vm1948, %v1914, 0
  %v2027 = vsel %vm1948, %v1915, 0
  %v2030 = vsel %vm1948, %v1916, 0
  %v2033 = vsel %vm1964, %v2014, 0
  %2035 = vmatpush.bf16.msra.mxu0 0
  %2036 = vmatpush.bf16.msra.mxu0 0
  %2037 = vmatpush.bf16.msra.mxu0 0
  %2038 = vmatpush.bf16.msra.mxu0 0
  %2039 = vmatpush.bf16.msra.mxu0 0
  %2040 = vmatpush.bf16.msra.mxu0 %v2033
  %2041 = vmatpush.bf16.msra.mxu0 %v2013
  %2042 = vmatpush.bf16.msra.mxu0 %v2012
  %2043 = vmatmul.bf16.gmra.mxu0 %v2018
  %v2044 = vpop.f32.mrf.mxu0
  %v2045 = vadd.f32 %v1978, %v2044
  %v2046 = vpop.f32.mrf.mxu0
  %v2047 = vadd.f32 %v1980, %v2046
  %2048 = vmatmul.bf16.gmra.mxu0 %v2021
  %v2049 = vpop.f32.mrf.mxu0
  %v2050 = vadd.f32 %v1983, %v2049
  %v2051 = vpop.f32.mrf.mxu0
  %v2052 = vadd.f32 %v1985, %v2051
  %2053 = vmatmul.bf16.gmra.mxu0 %v2024
  %v2054 = vpop.f32.mrf.mxu0
  %v2055 = vadd.f32 %v1988, %v2054
  %v2056 = vpop.f32.mrf.mxu0
  %v2057 = vadd.f32 %v1990, %v2056
  %2058 = vmatmul.bf16.gmra.mxu0 %v2027
  %v2059 = vpop.f32.mrf.mxu0
  %v2060 = vadd.f32 %v1993, %v2059
  %v2061 = vpop.f32.mrf.mxu0
  %v2062 = vadd.f32 %v1995, %v2061
  %2063 = vmatmul.bf16.gmra.mxu0 %v2030
  %v2064 = vpop.f32.mrf.mxu0
  %v2065 = vadd.f32 %v1998, %v2064
  %v2066 = vpop.f32.mrf.mxu0
  %v2067 = vadd.f32 %v2000, %v2066
  %2068 = vdwg.mxu0
  %v2069 = vpack.c.bf16 %v1890, %v1888
  %v2070 = vpack.c.bf16 %v1895, %v1893
  %v2071 = vpack.c.bf16 %v1900, %v1898
  %v2072 = vpack.c.bf16 %v1905, %v1903
  %v2073 = vpack.c.bf16 %v1910, %v1908
  %s2074 = scalar_lea.vmem %s9, 40
  %v2075 = vld [vmem:[%s2074] sm:$0xf]
  %v2076 = vld [vmem:[%s2074 + $0x4] sm:$0xf]
  %v2077 = vld [vmem:[%s2074 + $0x8] sm:$0xf]
  %v2078 = vld [vmem:[%s2074 + $0xc] sm:$0xf]
  %v2079 = vld [vmem:[%s2074 + $0x10] sm:$0xf]
  %v2085 = vunpack.c.l.b16 %v2075
  %v2086 = vunpack.c.l.b16 %v2076
  %v2087 = vunpack.c.l.b16 %v2077
  %v2088 = vunpack.c.l.b16 %v2078
  %v2089 = vunpack.c.l.b16 %v2079
  %v2090 = vpack.c.b16 %v2086, %v2085
  %v2091 = vpack.c.b16 %v2088, %v2087
  %v2092 = vpack.c.b16 %v2089, %v2089
  %v2096 = vsel %vm1948, %v2069, 0
  %v2099 = vsel %vm1948, %v2070, 0
  %v2102 = vsel %vm1948, %v2071, 0
  %v2105 = vsel %vm1948, %v2072, 0
  %v2108 = vsel %vm1948, %v2073, 0
  %v2111 = vsel %vm1964, %v2092, 0
  %2113 = vmatpush.bf16.msra.mxu0 0
  %2114 = vmatpush.bf16.msra.mxu0 0
  %2115 = vmatpush.bf16.msra.mxu0 0
  %2116 = vmatpush.bf16.msra.mxu0 0
  %2117 = vmatpush.bf16.msra.mxu0 0
  %2118 = vmatpush.bf16.msra.mxu0 %v2111
  %2119 = vmatpush.bf16.msra.mxu0 %v2091
  %2120 = vmatpush.bf16.msra.mxu0 %v2090
  %2121 = vmatmul.bf16.gmra.mxu0 %v2096
  %v2122 = vpop.f32.mrf.mxu0
  %v2123 = vadd.f32 0.0, %v2122
  %v2124 = vpop.f32.mrf.mxu0
  %v2125 = vadd.f32 0.0, %v2124
  %2126 = vmatmul.bf16.gmra.mxu0 %v2099
  %v2127 = vpop.f32.mrf.mxu0
  %v2128 = vadd.f32 0.0, %v2127
  %v2129 = vpop.f32.mrf.mxu0
  %v2130 = vadd.f32 0.0, %v2129
  %2131 = vmatmul.bf16.gmra.mxu0 %v2102
  %v2132 = vpop.f32.mrf.mxu0
  %v2133 = vadd.f32 0.0, %v2132
  %v2134 = vpop.f32.mrf.mxu0
  %v2135 = vadd.f32 0.0, %v2134
  %2136 = vmatmul.bf16.gmra.mxu0 %v2105
  %v2137 = vpop.f32.mrf.mxu0
  %v2138 = vadd.f32 0.0, %v2137
  %v2139 = vpop.f32.mrf.mxu0
  %v2140 = vadd.f32 0.0, %v2139
  %2141 = vmatmul.bf16.gmra.mxu0 %v2108
  %v2142 = vpop.f32.mrf.mxu0
  %v2143 = vadd.f32 0.0, %v2142
  %v2144 = vpop.f32.mrf.mxu0
  %v2145 = vadd.f32 0.0, %v2144
  %2146 = vdwg.mxu0
  %v2147 = vadd.f32 %v2045, %v2123
  %v2148 = vadd.f32 %v2047, %v2125
  %v2149 = vadd.f32 %v2050, %v2128
  %v2150 = vadd.f32 %v2052, %v2130
  %v2151 = vadd.f32 %v2055, %v2133
  %v2152 = vadd.f32 %v2057, %v2135
  %v2153 = vadd.f32 %v2060, %v2138
  %v2154 = vadd.f32 %v2062, %v2140
  %v2155 = vadd.f32 %v2065, %v2143
  %v2156 = vadd.f32 %v2067, %v2145
  %v2157 = vld [vmem:[%s10] sm:$0xff]
  %v2158 = vld [vmem:[%s10 + $0x8] sm:$0xff]
  %v2159 = vld [vmem:[%s10 + $0x10] sm:$0xff]
  %v2160 = vld [vmem:[%s10 + $0x18] sm:$0xff]
  %v2161 = vld [vmem:[%s10 + $0x20] sm:$0xff]
  %v2162 = vld [vmem:[%s10 + $0x28] sm:$0xff]
  %v2163 = vld [vmem:[%s10 + $0x30] sm:$0xff]
  %v2164 = vld [vmem:[%s10 + $0x38] sm:$0xff]
  %v2165 = vld [vmem:[%s10 + $0x40] sm:$0xff]
  %v2166 = vld [vmem:[%s10 + $0x48] sm:$0xff]
  %2168 = vset.pattern.permute.xlu0 0
  %2169 = vperm.xlu0 %2168, %v2157
  %v2170 = vpop.permute.xlu0 %2169
  %2173 = vset.pattern.permute.xlu0 0
  %2174 = vperm.xlu0 %2173, %v2158
  %v2175 = vpop.permute.xlu0 %2174
  %2178 = vset.pattern.permute.xlu0 0
  %2179 = vperm.xlu0 %2178, %v2159
  %v2180 = vpop.permute.xlu0 %2179
  %2183 = vset.pattern.permute.xlu0 0
  %2184 = vperm.xlu0 %2183, %v2160
  %v2185 = vpop.permute.xlu0 %2184
  %2188 = vset.pattern.permute.xlu0 0
  %2189 = vperm.xlu0 %2188, %v2161
  %v2190 = vpop.permute.xlu0 %2189
  %2193 = vset.pattern.permute.xlu0 0
  %2194 = vperm.xlu0 %2193, %v2162
  %v2195 = vpop.permute.xlu0 %2194
  %2198 = vset.pattern.permute.xlu0 0
  %2199 = vperm.xlu0 %2198, %v2163
  %v2200 = vpop.permute.xlu0 %2199
  %2203 = vset.pattern.permute.xlu0 0
  %2204 = vperm.xlu0 %2203, %v2164
  %v2205 = vpop.permute.xlu0 %2204
  %2208 = vset.pattern.permute.xlu0 0
  %2209 = vperm.xlu0 %2208, %v2165
  %v2210 = vpop.permute.xlu0 %2209
  %2213 = vset.pattern.permute.xlu0 0
  %2214 = vperm.xlu0 %2213, %v2166
  %v2215 = vpop.permute.xlu0 %2214
  %v2217 = vadd.f32 %v2147, %v2170
  %v2218 = vadd.f32 %v2148, %v2175
  %v2219 = vadd.f32 %v2149, %v2180
  %v2220 = vadd.f32 %v2150, %v2185
  %v2221 = vadd.f32 %v2151, %v2190
  %v2222 = vadd.f32 %v2152, %v2195
  %v2223 = vadd.f32 %v2153, %v2200
  %v2224 = vadd.f32 %v2154, %v2205
  %v2225 = vadd.f32 %v2155, %v2210
  %v2226 = vadd.f32 %v2156, %v2215
  %v2227 = vmax.f32 %v2217, 0.0
  %v2228 = vmax.f32 %v2218, 0.0
  %v2229 = vmax.f32 %v2219, 0.0
  %v2230 = vmax.f32 %v2220, 0.0
  %v2231 = vmax.f32 %v2221, 0.0
  %v2232 = vmax.f32 %v2222, 0.0
  %v2233 = vmax.f32 %v2223, 0.0
  %v2234 = vmax.f32 %v2224, 0.0
  %v2235 = vmax.f32 %v2225, 0.0
  %v2236 = vmax.f32 %v2226, 0.0
  %v2237 = vpack.c.bf16 %v2228, %v2227
  %v2238 = vpack.c.bf16 %v2230, %v2229
  %v2239 = vpack.c.bf16 %v2232, %v2231
  %v2240 = vpack.c.bf16 %v2234, %v2233
  %v2241 = vpack.c.bf16 %v2236, %v2235
  %v2242 = vld [vmem:[%s11] sm:$0xf]
  %v2243 = vld [vmem:[%s11 + $0x4] sm:$0xf]
  %v2244 = vld [vmem:[%s11 + $0x8] sm:$0xf]
  %v2245 = vld [vmem:[%s11 + $0xc] sm:$0xf]
  %v2246 = vld [vmem:[%s11 + $0x10] sm:$0xf]
  %v2247 = vld [vmem:[%s11 + $0x14] sm:$0xf]
  %v2248 = vld [vmem:[%s11 + $0x18] sm:$0xf]
  %v2249 = vld [vmem:[%s11 + $0x1c] sm:$0xf]
  %v2250 = vld [vmem:[%s11 + $0x20] sm:$0xf]
  %v2251 = vld [vmem:[%s11 + $0x24] sm:$0xf]
  %v2252 = vld [vmem:[%s11 + $0x28] sm:$0xf]
  %v2253 = vld [vmem:[%s11 + $0x2c] sm:$0xf]
  %v2254 = vld [vmem:[%s11 + $0x30] sm:$0xf]
  %v2255 = vld [vmem:[%s11 + $0x34] sm:$0xf]
  %v2256 = vld [vmem:[%s11 + $0x38] sm:$0xf]
  %v2257 = vld [vmem:[%s11 + $0x3c] sm:$0xf]
  %v2258 = vld [vmem:[%s11 + $0x40] sm:$0xf]
  %v2259 = vld [vmem:[%s11 + $0x44] sm:$0xf]
  %v2260 = vld [vmem:[%s11 + $0x48] sm:$0xf]
  %v2261 = vld [vmem:[%s11 + $0x4c] sm:$0xf]
  %v2262 = vld [vmem:[%s11 + $0x50] sm:$0xf]
  %v2263 = vld [vmem:[%s11 + $0x54] sm:$0xf]
  %v2264 = vld [vmem:[%s11 + $0x58] sm:$0xf]
  %v2265 = vld [vmem:[%s11 + $0x5c] sm:$0xf]
  %v2266 = vld [vmem:[%s11 + $0x60] sm:$0xf]
  %v2267 = vld [vmem:[%s11 + $0x64] sm:$0xf]
  %v2268 = vld [vmem:[%s11 + $0x68] sm:$0xf]
  %v2269 = vld [vmem:[%s11 + $0x6c] sm:$0xf]
  %v2270 = vld [vmem:[%s11 + $0x70] sm:$0xf]
  %v2271 = vld [vmem:[%s11 + $0x74] sm:$0xf]
  %v2302 = vunpack.c.l.b16 %v2242
  %v2303 = vunpack.c.l.b16 %v2243
  %v2304 = vunpack.c.l.b16 %v2244
  %v2305 = vunpack.c.l.b16 %v2245
  %v2306 = vunpack.c.l.b16 %v2246
  %v2307 = vunpack.c.l.b16 %v2247
  %v2308 = vunpack.c.l.b16 %v2248
  %v2309 = vunpack.c.l.b16 %v2249
  %v2310 = vunpack.c.l.b16 %v2250
  %v2311 = vunpack.c.l.b16 %v2251
  %v2312 = vunpack.c.l.b16 %v2252
  %v2313 = vunpack.c.l.b16 %v2253
  %v2314 = vunpack.c.l.b16 %v2254
  %v2315 = vunpack.c.l.b16 %v2255
  %v2316 = vunpack.c.l.b16 %v2256
  %v2317 = vunpack.c.l.b16 %v2257
  %v2318 = vunpack.c.l.b16 %v2258
  %v2319 = vunpack.c.l.b16 %v2259
  %v2320 = vunpack.c.l.b16 %v2260
  %v2321 = vunpack.c.l.b16 %v2261
  %v2322 = vunpack.c.l.b16 %v2262
  %v2323 = vunpack.c.l.b16 %v2263
  %v2324 = vunpack.c.l.b16 %v2264
  %v2325 = vunpack.c.l.b16 %v2265
  %v2326 = vunpack.c.l.b16 %v2266
  %v2327 = vunpack.c.l.b16 %v2267
  %v2328 = vunpack.c.l.b16 %v2268
  %v2329 = vunpack.c.l.b16 %v2269
  %v2330 = vunpack.c.l.b16 %v2270
  %v2331 = vunpack.c.l.b16 %v2271
  %v2332 = vpack.c.b16 %v2303, %v2302
  %v2333 = vpack.c.b16 %v2305, %v2304
  %v2334 = vpack.c.b16 %v2307, %v2306
  %v2335 = vpack.c.b16 %v2309, %v2308
  %v2336 = vpack.c.b16 %v2311, %v2310
  %v2337 = vpack.c.b16 %v2313, %v2312
  %v2338 = vpack.c.b16 %v2315, %v2314
  %v2339 = vpack.c.b16 %v2317, %v2316
  %v2340 = vpack.c.b16 %v2319, %v2318
  %v2341 = vpack.c.b16 %v2321, %v2320
  %v2342 = vpack.c.b16 %v2323, %v2322
  %v2343 = vpack.c.b16 %v2325, %v2324
  %v2344 = vpack.c.b16 %v2327, %v2326
  %v2345 = vpack.c.b16 %v2329, %v2328
  %v2346 = vpack.c.b16 %v2331, %v2330
  %v2348 = vsel %vm234, %v2332, 0
  %v2351 = vsel %vm234, %v2333, 0
  %v2354 = vsel %vm234, %v2334, 0
  %v2357 = vsel %vm234, %v2335, 0
  %v2360 = vsel %vm234, %v2336, 0
  %v2363 = vsel %vm234, %v2337, 0
  %v2366 = vsel %vm234, %v2338, 0
  %v2369 = vsel %vm234, %v2339, 0
  %v2372 = vsel %vm234, %v2340, 0
  %v2375 = vsel %vm234, %v2341, 0
  %v2378 = vsel %vm234, %v2342, 0
  %v2381 = vsel %vm234, %v2343, 0
  %v2384 = vsel %vm234, %v2344, 0
  %v2387 = vsel %vm234, %v2345, 0
  %v2390 = vsel %vm234, %v2346, 0
  %2392 = vmatpush.bf16.msra.mxu0 0
  %2393 = vmatpush.bf16.msra.mxu0 0
  %2394 = vmatpush.bf16.msra.mxu0 0
  %2395 = vmatpush.bf16.msra.mxu0 %v2241
  %2396 = vmatpush.bf16.msra.mxu0 %v2240
  %2397 = vmatpush.bf16.msra.mxu0 %v2239
  %2398 = vmatpush.bf16.msra.mxu0 %v2238
  %2399 = vmatpush.bf16.msra.mxu0 %v2237
  %2400 = vmatmul.bf16.gmra.mxu0 %v2348
  %v2401 = vpop.f32.mrf.mxu0
  %v2402 = vadd.f32 0.0, %v2401
  %v2403 = vpop.f32.mrf.mxu0
  %v2404 = vadd.f32 0.0, %v2403
  %2405 = vmatmul.bf16.gmra.mxu0 %v2351
  %v2406 = vpop.f32.mrf.mxu0
  %v2407 = vadd.f32 0.0, %v2406
  %v2408 = vpop.f32.mrf.mxu0
  %v2409 = vadd.f32 0.0, %v2408
  %2410 = vmatmul.bf16.gmra.mxu0 %v2354
  %v2411 = vpop.f32.mrf.mxu0
  %v2412 = vadd.f32 0.0, %v2411
  %v2413 = vpop.f32.mrf.mxu0
  %v2414 = vadd.f32 0.0, %v2413
  %2415 = vmatmul.bf16.gmra.mxu0 %v2357
  %v2416 = vpop.f32.mrf.mxu0
  %v2417 = vadd.f32 0.0, %v2416
  %v2418 = vpop.f32.mrf.mxu0
  %v2419 = vadd.f32 0.0, %v2418
  %2420 = vmatmul.bf16.gmra.mxu0 %v2360
  %v2421 = vpop.f32.mrf.mxu0
  %v2422 = vadd.f32 0.0, %v2421
  %v2423 = vpop.f32.mrf.mxu0
  %v2424 = vadd.f32 0.0, %v2423
  %2425 = vmatmul.bf16.gmra.mxu0 %v2363
  %v2426 = vpop.f32.mrf.mxu0
  %v2427 = vadd.f32 0.0, %v2426
  %v2428 = vpop.f32.mrf.mxu0
  %v2429 = vadd.f32 0.0, %v2428
  %2430 = vmatmul.bf16.gmra.mxu0 %v2366
  %v2431 = vpop.f32.mrf.mxu0
  %v2432 = vadd.f32 0.0, %v2431
  %v2433 = vpop.f32.mrf.mxu0
  %v2434 = vadd.f32 0.0, %v2433
  %2435 = vmatmul.bf16.gmra.mxu0 %v2369
  %v2436 = vpop.f32.mrf.mxu0
  %v2437 = vadd.f32 0.0, %v2436
  %v2438 = vpop.f32.mrf.mxu0
  %v2439 = vadd.f32 0.0, %v2438
  %2440 = vmatmul.bf16.gmra.mxu0 %v2372
  %v2441 = vpop.f32.mrf.mxu0
  %v2442 = vadd.f32 0.0, %v2441
  %v2443 = vpop.f32.mrf.mxu0
  %v2444 = vadd.f32 0.0, %v2443
  %2445 = vmatmul.bf16.gmra.mxu0 %v2375
  %v2446 = vpop.f32.mrf.mxu0
  %v2447 = vadd.f32 0.0, %v2446
  %v2448 = vpop.f32.mrf.mxu0
  %v2449 = vadd.f32 0.0, %v2448
  %2450 = vmatmul.bf16.gmra.mxu0 %v2378
  %v2451 = vpop.f32.mrf.mxu0
  %v2452 = vadd.f32 0.0, %v2451
  %v2453 = vpop.f32.mrf.mxu0
  %v2454 = vadd.f32 0.0, %v2453
  %2455 = vmatmul.bf16.gmra.mxu0 %v2381
  %v2456 = vpop.f32.mrf.mxu0
  %v2457 = vadd.f32 0.0, %v2456
  %v2458 = vpop.f32.mrf.mxu0
  %v2459 = vadd.f32 0.0, %v2458
  %2460 = vmatmul.bf16.gmra.mxu0 %v2384
  %v2461 = vpop.f32.mrf.mxu0
  %v2462 = vadd.f32 0.0, %v2461
  %v2463 = vpop.f32.mrf.mxu0
  %v2464 = vadd.f32 0.0, %v2463
  %2465 = vmatmul.bf16.gmra.mxu0 %v2387
  %v2466 = vpop.f32.mrf.mxu0
  %v2467 = vadd.f32 0.0, %v2466
  %v2468 = vpop.f32.mrf.mxu0
  %v2469 = vadd.f32 0.0, %v2468
  %2470 = vmatmul.bf16.gmra.mxu0 %v2390
  %v2471 = vpop.f32.mrf.mxu0
  %v2472 = vadd.f32 0.0, %v2471
  %v2473 = vpop.f32.mrf.mxu0
  %v2474 = vadd.f32 0.0, %v2473
  %2475 = vdwg.mxu0
  %v2476 = vpack.c.bf16 %v2404, %v2402
  %v2477 = vpack.c.bf16 %v2409, %v2407
  %v2478 = vpack.c.bf16 %v2414, %v2412
  %v2479 = vpack.c.bf16 %v2419, %v2417
  %v2480 = vpack.c.bf16 %v2424, %v2422
  %v2481 = vld [vmem:[%s12] sm:$0xf]
  %v2482 = vld [vmem:[%s12 + $0x4] sm:$0xf]
  %v2483 = vld [vmem:[%s12 + $0x8] sm:$0x3]
  %v2484 = vpack.c.bf16 %v2429, %v2427
  %v2485 = vpack.c.bf16 %v2434, %v2432
  %v2486 = vpack.c.bf16 %v2439, %v2437
  %v2487 = vpack.c.bf16 %v2444, %v2442
  %v2488 = vpack.c.bf16 %v2449, %v2447
  %s2489 = scalar_lea.vmem %s12, 12
  %v2490 = vld [vmem:[%s2489] sm:$0xf]
  %v2491 = vld [vmem:[%s2489 + $0x4] sm:$0xf]
  %v2492 = vld [vmem:[%s2489 + $0x8] sm:$0x3]
  %v2496 = vunpack.c.l.b16 %v2490
  %v2497 = vunpack.c.l.b16 %v2491
  %v2498 = vunpack.c.l.b16 %v2492
  %v2499 = vpack.c.b16 %v2497, %v2496
  %v2500 = vpack.c.b16 %v2498, %v2498
  %vm2502 = vcmask 162816
  %v2504 = vsel %vm2502, %v2484, 0
  %v2507 = vsel %vm2502, %v2485, 0
  %v2510 = vsel %vm2502, %v2486, 0
  %v2513 = vsel %vm2502, %v2487, 0
  %v2516 = vsel %vm2502, %v2488, 0
  %vm2518 = vcmask 1041408
  %v2520 = vsel %vm2518, %v2500, 0
  %2522 = vmatpush.bf16.msra.mxu0 0
  %2523 = vmatpush.bf16.msra.mxu0 0
  %2524 = vmatpush.bf16.msra.mxu0 0
  %2525 = vmatpush.bf16.msra.mxu0 0
  %2526 = vmatpush.bf16.msra.mxu0 0
  %2527 = vmatpush.bf16.msra.mxu0 0
  %2528 = vmatpush.bf16.msra.mxu0 %v2520
  %2529 = vmatpush.bf16.msra.mxu0 %v2499
  %2530 = vmatmul.bf16.gmra.mxu0 %v2504
  %v2531 = vpop.f32.mrf.mxu0
  %v2532 = vadd.f32 0.0, %v2531
  %v2533 = vpop.f32.mrf.mxu0
  %v2534 = vadd.f32 0.0, %v2533
  %2535 = vmatmul.bf16.gmra.mxu0 %v2507
  %v2536 = vpop.f32.mrf.mxu0
  %v2537 = vadd.f32 0.0, %v2536
  %v2538 = vpop.f32.mrf.mxu0
  %v2539 = vadd.f32 0.0, %v2538
  %2540 = vmatmul.bf16.gmra.mxu0 %v2510
  %v2541 = vpop.f32.mrf.mxu0
  %v2542 = vadd.f32 0.0, %v2541
  %v2543 = vpop.f32.mrf.mxu0
  %v2544 = vadd.f32 0.0, %v2543
  %2545 = vmatmul.bf16.gmra.mxu0 %v2513
  %v2546 = vpop.f32.mrf.mxu0
  %v2547 = vadd.f32 0.0, %v2546
  %v2548 = vpop.f32.mrf.mxu0
  %v2549 = vadd.f32 0.0, %v2548
  %2550 = vmatmul.bf16.gmra.mxu0 %v2516
  %v2551 = vpop.f32.mrf.mxu0
  %v2552 = vadd.f32 0.0, %v2551
  %v2553 = vpop.f32.mrf.mxu0
  %v2554 = vadd.f32 0.0, %v2553
  %2555 = vdwg.mxu0
  %v2559 = vunpack.c.l.b16 %v2481
  %v2560 = vunpack.c.l.b16 %v2482
  %v2561 = vunpack.c.l.b16 %v2483
  %v2562 = vpack.c.b16 %v2560, %v2559
  %v2563 = vpack.c.b16 %v2561, %v2561
  %v2566 = vsel %vm2502, %v2476, 0
  %v2569 = vsel %vm2502, %v2477, 0
  %v2572 = vsel %vm2502, %v2478, 0
  %v2575 = vsel %vm2502, %v2479, 0
  %v2578 = vsel %vm2502, %v2480, 0
  %v2581 = vsel %vm2518, %v2563, 0
  %2583 = vmatpush.bf16.msra.mxu0 0
  %2584 = vmatpush.bf16.msra.mxu0 0
  %2585 = vmatpush.bf16.msra.mxu0 0
  %2586 = vmatpush.bf16.msra.mxu0 0
  %2587 = vmatpush.bf16.msra.mxu0 0
  %2588 = vmatpush.bf16.msra.mxu0 0
  %2589 = vmatpush.bf16.msra.mxu0 %v2581
  %2590 = vmatpush.bf16.msra.mxu0 %v2562
  %2591 = vmatmul.bf16.gmra.mxu0 %v2566
  %v2592 = vpop.f32.mrf.mxu0
  %v2593 = vadd.f32 %v2532, %v2592
  %v2594 = vpop.f32.mrf.mxu0
  %v2595 = vadd.f32 %v2534, %v2594
  %2596 = vmatmul.bf16.gmra.mxu0 %v2569
  %v2597 = vpop.f32.mrf.mxu0
  %v2598 = vadd.f32 %v2537, %v2597
  %v2599 = vpop.f32.mrf.mxu0
  %v2600 = vadd.f32 %v2539, %v2599
  %2601 = vmatmul.bf16.gmra.mxu0 %v2572
  %v2602 = vpop.f32.mrf.mxu0
  %v2603 = vadd.f32 %v2542, %v2602
  %v2604 = vpop.f32.mrf.mxu0
  %v2605 = vadd.f32 %v2544, %v2604
  %2606 = vmatmul.bf16.gmra.mxu0 %v2575
  %v2607 = vpop.f32.mrf.mxu0
  %v2608 = vadd.f32 %v2547, %v2607
  %v2609 = vpop.f32.mrf.mxu0
  %v2610 = vadd.f32 %v2549, %v2609
  %2611 = vmatmul.bf16.gmra.mxu0 %v2578
  %v2612 = vpop.f32.mrf.mxu0
  %v2613 = vadd.f32 %v2552, %v2612
  %v2614 = vpop.f32.mrf.mxu0
  %v2615 = vadd.f32 %v2554, %v2614
  %2616 = vdwg.mxu0
  %v2617 = vpack.c.bf16 %v2454, %v2452
  %v2618 = vpack.c.bf16 %v2459, %v2457
  %v2619 = vpack.c.bf16 %v2464, %v2462
  %v2620 = vpack.c.bf16 %v2469, %v2467
  %v2621 = vpack.c.bf16 %v2474, %v2472
  %s2622 = scalar_lea.vmem %s12, 24
  %v2623 = vld [vmem:[%s2622] sm:$0xf]
  %v2624 = vld [vmem:[%s2622 + $0x4] sm:$0xf]
  %v2625 = vld [vmem:[%s2622 + $0x8] sm:$0x3]
  %v2629 = vunpack.c.l.b16 %v2623
  %v2630 = vunpack.c.l.b16 %v2624
  %v2631 = vunpack.c.l.b16 %v2625
  %v2632 = vpack.c.b16 %v2630, %v2629
  %v2633 = vpack.c.b16 %v2631, %v2631
  %v2636 = vsel %vm2502, %v2617, 0
  %v2639 = vsel %vm2502, %v2618, 0
  %v2642 = vsel %vm2502, %v2619, 0
  %v2645 = vsel %vm2502, %v2620, 0
  %v2648 = vsel %vm2502, %v2621, 0
  %v2651 = vsel %vm2518, %v2633, 0
  %2653 = vmatpush.bf16.msra.mxu0 0
  %2654 = vmatpush.bf16.msra.mxu0 0
  %2655 = vmatpush.bf16.msra.mxu0 0
  %2656 = vmatpush.bf16.msra.mxu0 0
  %2657 = vmatpush.bf16.msra.mxu0 0
  %2658 = vmatpush.bf16.msra.mxu0 0
  %2659 = vmatpush.bf16.msra.mxu0 %v2651
  %2660 = vmatpush.bf16.msra.mxu0 %v2632
  %2661 = vmatmul.bf16.gmra.mxu0 %v2636
  %v2662 = vpop.f32.mrf.mxu0
  %v2663 = vadd.f32 0.0, %v2662
  %v2664 = vpop.f32.mrf.mxu0
  %v2665 = vadd.f32 0.0, %v2664
  %2666 = vmatmul.bf16.gmra.mxu0 %v2639
  %v2667 = vpop.f32.mrf.mxu0
  %v2668 = vadd.f32 0.0, %v2667
  %v2669 = vpop.f32.mrf.mxu0
  %v2670 = vadd.f32 0.0, %v2669
  %2671 = vmatmul.bf16.gmra.mxu0 %v2642
  %v2672 = vpop.f32.mrf.mxu0
  %v2673 = vadd.f32 0.0, %v2672
  %v2674 = vpop.f32.mrf.mxu0
  %v2675 = vadd.f32 0.0, %v2674
  %2676 = vmatmul.bf16.gmra.mxu0 %v2645
  %v2677 = vpop.f32.mrf.mxu0
  %v2678 = vadd.f32 0.0, %v2677
  %v2679 = vpop.f32.mrf.mxu0
  %v2680 = vadd.f32 0.0, %v2679
  %2681 = vmatmul.bf16.gmra.mxu0 %v2648
  %v2682 = vpop.f32.mrf.mxu0
  %v2683 = vadd.f32 0.0, %v2682
  %v2684 = vpop.f32.mrf.mxu0
  %v2685 = vadd.f32 0.0, %v2684
  %2686 = vdwg.mxu0
  %v2687 = vadd.f32 %v2593, %v2663
  %v2688 = vadd.f32 %v2595, %v2665
  %v2689 = vadd.f32 %v2598, %v2668
  %v2690 = vadd.f32 %v2600, %v2670
  %v2691 = vadd.f32 %v2603, %v2673
  %v2692 = vadd.f32 %v2605, %v2675
  %v2693 = vadd.f32 %v2608, %v2678
  %v2694 = vadd.f32 %v2610, %v2680
  %v2695 = vadd.f32 %v2613, %v2683
  %v2696 = vadd.f32 %v2615, %v2685
  %v2697 = vld [vmem:[%s13] sm:$0xff]
  %v2698 = vld [vmem:[%s13 + $0x8] sm:$0xff]
  %v2699 = vld [vmem:[%s13 + $0x10] sm:$0xff]
  %v2700 = vld [vmem:[%s13 + $0x18] sm:$0xff]
  %v2701 = vld [vmem:[%s13 + $0x20] sm:$0xff]
  %v2702 = vld [vmem:[%s13 + $0x28] sm:$0xff]
  %v2703 = vld [vmem:[%s13 + $0x30] sm:$0xff]
  %v2704 = vld [vmem:[%s13 + $0x38] sm:$0xff]
  %v2705 = vld [vmem:[%s13 + $0x40] sm:$0xff]
  %v2706 = vld [vmem:[%s13 + $0x48] sm:$0xff]
  %2708 = vset.pattern.permute.xlu0 0
  %2709 = vperm.xlu0 %2708, %v2697
  %v2710 = vpop.permute.xlu0 %2709
  %2713 = vset.pattern.permute.xlu0 0
  %2714 = vperm.xlu0 %2713, %v2698
  %v2715 = vpop.permute.xlu0 %2714
  %2718 = vset.pattern.permute.xlu0 0
  %2719 = vperm.xlu0 %2718, %v2699
  %v2720 = vpop.permute.xlu0 %2719
  %2723 = vset.pattern.permute.xlu0 0
  %2724 = vperm.xlu0 %2723, %v2700
  %v2725 = vpop.permute.xlu0 %2724
  %2728 = vset.pattern.permute.xlu0 0
  %2729 = vperm.xlu0 %2728, %v2701
  %v2730 = vpop.permute.xlu0 %2729
  %2733 = vset.pattern.permute.xlu0 0
  %2734 = vperm.xlu0 %2733, %v2702
  %v2735 = vpop.permute.xlu0 %2734
  %2738 = vset.pattern.permute.xlu0 0
  %2739 = vperm.xlu0 %2738, %v2703
  %v2740 = vpop.permute.xlu0 %2739
  %2743 = vset.pattern.permute.xlu0 0
  %2744 = vperm.xlu0 %2743, %v2704
  %v2745 = vpop.permute.xlu0 %2744
  %2748 = vset.pattern.permute.xlu0 0
  %2749 = vperm.xlu0 %2748, %v2705
  %v2750 = vpop.permute.xlu0 %2749
  %2753 = vset.pattern.permute.xlu0 0
  %2754 = vperm.xlu0 %2753, %v2706
  %v2755 = vpop.permute.xlu0 %2754
  %v2757 = vadd.f32 %v2687, %v2710
  %v2758 = vadd.f32 %v2688, %v2715
  %v2759 = vadd.f32 %v2689, %v2720
  %v2760 = vadd.f32 %v2690, %v2725
  %v2761 = vadd.f32 %v2691, %v2730
  %v2762 = vadd.f32 %v2692, %v2735
  %v2763 = vadd.f32 %v2693, %v2740
  %v2764 = vadd.f32 %v2694, %v2745
  %v2765 = vadd.f32 %v2695, %v2750
  %v2766 = vadd.f32 %v2696, %v2755
  %v2767 = vmax.f32 %v2757, 0.0
  %v2768 = vmax.f32 %v2758, 0.0
  %v2769 = vmax.f32 %v2759, 0.0
  %v2770 = vmax.f32 %v2760, 0.0
  %v2771 = vmax.f32 %v2761, 0.0
  %v2772 = vmax.f32 %v2762, 0.0
  %v2773 = vmax.f32 %v2763, 0.0
  %v2774 = vmax.f32 %v2764, 0.0
  %v2775 = vmax.f32 %v2765, 0.0
  %v2776 = vmax.f32 %v2766, 0.0
  %v2777 = vpack.c.bf16 %v2767, %v2767
  %v2778 = vpack.c.bf16 %v2768, %v2768
  %v2779 = vpack.c.bf16 %v2769, %v2769
  %v2780 = vpack.c.bf16 %v2770, %v2770
  %v2781 = vpack.c.bf16 %v2771, %v2771
  %v2782 = vpack.c.bf16 %v2772, %v2772
  %v2783 = vpack.c.bf16 %v2773, %v2773
  %v2784 = vpack.c.bf16 %v2774, %v2774
  %v2785 = vpack.c.bf16 %v2775, %v2775
  %v2786 = vpack.c.bf16 %v2776, %v2776
  %v2787 = vld [vmem:[%s15] sm:$0xf]
  %v2788 = vld [vmem:[%s15 + $0x4] sm:$0xf]
  %v2789 = vld [vmem:[%s15 + $0x8] sm:$0xf]
  %v2790 = vld [vmem:[%s15 + $0xc] sm:$0xf]
  %v2791 = vld [vmem:[%s15 + $0x10] sm:$0xf]
  %v2792 = vld [vmem:[%s15 + $0x14] sm:$0xf]
  %v2793 = vld [vmem:[%s15 + $0x18] sm:$0xf]
  %v2794 = vld [vmem:[%s15 + $0x1c] sm:$0xf]
  %v2795 = vld [vmem:[%s15 + $0x20] sm:$0xf]
  %v2796 = vld [vmem:[%s15 + $0x24] sm:$0xf]
  %v2797 = vld [vmem:[%s15 + $0x28] sm:$0xf]
  %v2798 = vld [vmem:[%s15 + $0x2c] sm:$0xf]
  %v2799 = vld [vmem:[%s15 + $0x30] sm:$0xf]
  %v2800 = vld [vmem:[%s15 + $0x34] sm:$0xf]
  %v2801 = vld [vmem:[%s15 + $0x38] sm:$0xf]
  %v2802 = vld [vmem:[%s1] sm:$0x7]
  %v2803 = vld [vmem:[%s14] sm:$0xf]
  %v2804 = vld [vmem:[%s14 + $0x4] sm:$0xf]
  %v2805 = vld [vmem:[%s14 + $0x8] sm:$0xf]
  %v2806 = vld [vmem:[%s14 + $0xc] sm:$0xf]
  %v2807 = vld [vmem:[%s14 + $0x10] sm:$0xf]
  %v2808 = vld [vmem:[%s14 + $0x14] sm:$0xf]
  %v2809 = vld [vmem:[%s14 + $0x18] sm:$0xf]
  %v2810 = vld [vmem:[%s14 + $0x1c] sm:$0xf]
  %v2811 = vld [vmem:[%s14 + $0x20] sm:$0xf]
  %v2812 = vld [vmem:[%s14 + $0x24] sm:$0xf]
  %v2813 = vld [vmem:[%s14 + $0x28] sm:$0xf]
  %v2814 = vld [vmem:[%s14 + $0x2c] sm:$0xf]
  %v2815 = vld [vmem:[%s14 + $0x30] sm:$0xf]
  %v2816 = vld [vmem:[%s14 + $0x34] sm:$0xf]
  %v2817 = vld [vmem:[%s14 + $0x38] sm:$0xf]
  %v2833 = vunpack.c.l.b16 %v2803
  %v2834 = vunpack.c.l.b16 %v2804
  %v2835 = vunpack.c.l.b16 %v2805
  %v2836 = vunpack.c.l.b16 %v2806
  %v2837 = vunpack.c.l.b16 %v2807
  %v2838 = vunpack.c.l.b16 %v2808
  %v2839 = vunpack.c.l.b16 %v2809
  %v2840 = vunpack.c.l.b16 %v2810
  %v2841 = vunpack.c.l.b16 %v2811
  %v2842 = vunpack.c.l.b16 %v2812
  %v2843 = vunpack.c.l.b16 %v2813
  %v2844 = vunpack.c.l.b16 %v2814
  %v2845 = vunpack.c.l.b16 %v2815
  %v2846 = vunpack.c.l.b16 %v2816
  %v2847 = vunpack.c.l.b16 %v2817
  %v2848 = vpack.c.b16 %v2834, %v2833
  %v2849 = vpack.c.b16 %v2836, %v2835
  %v2850 = vpack.c.b16 %v2838, %v2837
  %v2851 = vpack.c.b16 %v2840, %v2839
  %v2852 = vpack.c.b16 %v2842, %v2841
  %v2853 = vpack.c.b16 %v2844, %v2843
  %v2854 = vpack.c.b16 %v2846, %v2845
  %v2855 = vpack.c.b16 %v2847, %v2847
  %v2866 = vunpack.c.l.b16 %v2777
  %v2867 = vunpack.c.l.b16 %v2778
  %v2868 = vunpack.c.l.b16 %v2779
  %v2869 = vunpack.c.l.b16 %v2780
  %v2870 = vunpack.c.l.b16 %v2781
  %v2871 = vunpack.c.l.b16 %v2782
  %v2872 = vunpack.c.l.b16 %v2783
  %v2873 = vunpack.c.l.b16 %v2784
  %v2874 = vunpack.c.l.b16 %v2785
  %v2875 = vunpack.c.l.b16 %v2786
  %v2876 = vpack.c.b16 %v2867, %v2866
  %v2877 = vpack.c.b16 %v2869, %v2868
  %v2878 = vpack.c.b16 %v2871, %v2870
  %v2879 = vpack.c.b16 %v2873, %v2872
  %v2880 = vpack.c.b16 %v2875, %v2874
  %v2887 = vsel %vm234, %v2848, 0
  %v2890 = vsel %vm234, %v2849, 0
  %v2893 = vsel %vm234, %v2850, 0
  %v2896 = vsel %vm234, %v2851, 0
  %v2899 = vsel %vm234, %v2852, 0
  %v2902 = vsel %vm234, %v2853, 0
  %v2905 = vsel %vm234, %v2854, 0
  %v2908 = vsel %vm234, %v2855, 0
  %2910 = vmatpush.bf16.msra.mxu0 0
  %2911 = vmatpush.bf16.msra.mxu0 0
  %2912 = vmatpush.bf16.msra.mxu0 0
  %2913 = vmatpush.bf16.msra.mxu0 %v2880
  %2914 = vmatpush.bf16.msra.mxu0 %v2879
  %2915 = vmatpush.bf16.msra.mxu0 %v2878
  %2916 = vmatpush.bf16.msra.mxu0 %v2877
  %2917 = vmatpush.bf16.msra.mxu0 %v2876
  %2918 = vmatmul.bf16.gmra.mxu0 %v2887
  %v2919 = vpop.f32.mrf.mxu0
  %v2920 = vadd.f32 0.0, %v2919
  %v2921 = vpop.f32.mrf.mxu0
  %v2922 = vadd.f32 0.0, %v2921
  %2923 = vmatmul.bf16.gmra.mxu0 %v2890
  %v2924 = vpop.f32.mrf.mxu0
  %v2925 = vadd.f32 0.0, %v2924
  %v2926 = vpop.f32.mrf.mxu0
  %v2927 = vadd.f32 0.0, %v2926
  %2928 = vmatmul.bf16.gmra.mxu0 %v2893
  %v2929 = vpop.f32.mrf.mxu0
  %v2930 = vadd.f32 0.0, %v2929
  %v2931 = vpop.f32.mrf.mxu0
  %v2932 = vadd.f32 0.0, %v2931
  %2933 = vmatmul.bf16.gmra.mxu0 %v2896
  %v2934 = vpop.f32.mrf.mxu0
  %v2935 = vadd.f32 0.0, %v2934
  %v2936 = vpop.f32.mrf.mxu0
  %v2937 = vadd.f32 0.0, %v2936
  %2938 = vmatmul.bf16.gmra.mxu0 %v2899
  %v2939 = vpop.f32.mrf.mxu0
  %v2940 = vadd.f32 0.0, %v2939
  %v2941 = vpop.f32.mrf.mxu0
  %v2942 = vadd.f32 0.0, %v2941
  %2943 = vmatmul.bf16.gmra.mxu0 %v2902
  %v2944 = vpop.f32.mrf.mxu0
  %v2945 = vadd.f32 0.0, %v2944
  %v2946 = vpop.f32.mrf.mxu0
  %v2947 = vadd.f32 0.0, %v2946
  %2948 = vmatmul.bf16.gmra.mxu0 %v2905
  %v2949 = vpop.f32.mrf.mxu0
  %v2950 = vadd.f32 0.0, %v2949
  %v2951 = vpop.f32.mrf.mxu0
  %v2952 = vadd.f32 0.0, %v2951
  %2953 = vmatmul.bf16.gmra.mxu0 %v2908
  %v2954 = vpop.f32.mrf.mxu0
  %v2955 = vadd.f32 0.0, %v2954
  %v2956 = vpop.f32.mrf.mxu0
  %2957 = vdwg.mxu0
  %v2973 = vunpack.c.l.b16 %v2787
  %v2974 = vunpack.c.l.b16 %v2788
  %v2975 = vunpack.c.l.b16 %v2789
  %v2976 = vunpack.c.l.b16 %v2790
  %v2977 = vunpack.c.l.b16 %v2791
  %v2978 = vunpack.c.l.b16 %v2792
  %v2979 = vunpack.c.l.b16 %v2793
  %v2980 = vunpack.c.l.b16 %v2794
  %v2981 = vunpack.c.l.b16 %v2795
  %v2982 = vunpack.c.l.b16 %v2796
  %v2983 = vunpack.c.l.b16 %v2797
  %v2984 = vunpack.c.l.b16 %v2798
  %v2985 = vunpack.c.l.b16 %v2799
  %v2986 = vunpack.c.l.b16 %v2800
  %v2987 = vunpack.c.l.b16 %v2801
  %v2988 = vpack.c.b16 %v2974, %v2973
  %v2989 = vpack.c.b16 %v2976, %v2975
  %v2990 = vpack.c.b16 %v2978, %v2977
  %v2991 = vpack.c.b16 %v2980, %v2979
  %v2992 = vpack.c.b16 %v2982, %v2981
  %v2993 = vpack.c.b16 %v2984, %v2983
  %v2994 = vpack.c.b16 %v2986, %v2985
  %v2995 = vpack.c.b16 %v2987, %v2987
  %vm2996 = vcmask 39936
  %v2998 = vsel %vm2996, %v2988, 0
  %v3001 = vsel %vm2996, %v2989, 0
  %v3004 = vsel %vm2996, %v2990, 0
  %v3007 = vsel %vm2996, %v2991, 0
  %v3010 = vsel %vm2996, %v2992, 0
  %v3013 = vsel %vm2996, %v2993, 0
  %v3016 = vsel %vm2996, %v2994, 0
  %v3019 = vsel %vm2996, %v2995, 0
  %vm3021 = vcmask 1042432
  %v3022 = vsel %vm2518, 4294967295, 65535
  %v3023 = vsel %vm3021, %v3022, 0
  %v3025 = vand.u32 %v2802, %v3023
  %3027 = vmatpush.bf16.msra.mxu0 0
  %3028 = vmatpush.bf16.msra.mxu0 0
  %3029 = vmatpush.bf16.msra.mxu0 0
  %3030 = vmatpush.bf16.msra.mxu0 0
  %3031 = vmatpush.bf16.msra.mxu0 0
  %3032 = vmatpush.bf16.msra.mxu0 0
  %3033 = vmatpush.bf16.msra.mxu0 0
  %3034 = vmatpush.bf16.msra.mxu0 %v3025
  %3035 = vmatmul.bf16.gmra.mxu0 %v2998
  %v3036 = vpop.f32.mrf.mxu0
  %v3037 = vadd.f32 %v2920, %v3036
  %v3038 = vpop.f32.mrf.mxu0
  %v3039 = vadd.f32 %v2922, %v3038
  %3040 = vmatmul.bf16.gmra.mxu0 %v3001
  %v3041 = vpop.f32.mrf.mxu0
  %v3042 = vadd.f32 %v2925, %v3041
  %v3043 = vpop.f32.mrf.mxu0
  %v3044 = vadd.f32 %v2927, %v3043
  %3045 = vmatmul.bf16.gmra.mxu0 %v3004
  %v3046 = vpop.f32.mrf.mxu0
  %v3047 = vadd.f32 %v2930, %v3046
  %v3048 = vpop.f32.mrf.mxu0
  %v3049 = vadd.f32 %v2932, %v3048
  %3050 = vmatmul.bf16.gmra.mxu0 %v3007
  %v3051 = vpop.f32.mrf.mxu0
  %v3052 = vadd.f32 %v2935, %v3051
  %v3053 = vpop.f32.mrf.mxu0
  %v3054 = vadd.f32 %v2937, %v3053
  %3055 = vmatmul.bf16.gmra.mxu0 %v3010
  %v3056 = vpop.f32.mrf.mxu0
  %v3057 = vadd.f32 %v2940, %v3056
  %v3058 = vpop.f32.mrf.mxu0
  %v3059 = vadd.f32 %v2942, %v3058
  %3060 = vmatmul.bf16.gmra.mxu0 %v3013
  %v3061 = vpop.f32.mrf.mxu0
  %v3062 = vadd.f32 %v2945, %v3061
  %v3063 = vpop.f32.mrf.mxu0
  %v3064 = vadd.f32 %v2947, %v3063
  %3065 = vmatmul.bf16.gmra.mxu0 %v3016
  %v3066 = vpop.f32.mrf.mxu0
  %v3067 = vadd.f32 %v2950, %v3066
  %v3068 = vpop.f32.mrf.mxu0
  %v3069 = vadd.f32 %v2952, %v3068
  %3070 = vmatmul.bf16.gmra.mxu0 %v3019
  %v3071 = vpop.f32.mrf.mxu0
  %v3072 = vadd.f32 %v2955, %v3071
  %v3073 = vpop.f32.mrf.mxu0
  %3074 = vdwg.mxu0
  %s3075 = scalar_lea.vmem %s14, 60
  %v3076 = vld [vmem:[%s3075] sm:$0xf]
  %v3077 = vld [vmem:[%s3075 + $0x4] sm:$0xf]
  %v3078 = vld [vmem:[%s3075 + $0x8] sm:$0xf]
  %v3079 = vld [vmem:[%s3075 + $0xc] sm:$0xf]
  %v3080 = vld [vmem:[%s3075 + $0x10] sm:$0xf]
  %v3081 = vld [vmem:[%s3075 + $0x14] sm:$0xf]
  %v3082 = vld [vmem:[%s3075 + $0x18] sm:$0xf]
  %v3083 = vld [vmem:[%s3075 + $0x1c] sm:$0xf]
  %v3084 = vld [vmem:[%s3075 + $0x20] sm:$0xf]
  %v3085 = vld [vmem:[%s3075 + $0x24] sm:$0xf]
  %v3086 = vld [vmem:[%s3075 + $0x28] sm:$0xf]
  %v3087 = vld [vmem:[%s3075 + $0x2c] sm:$0xf]
  %v3088 = vld [vmem:[%s3075 + $0x30] sm:$0xf]
  %v3089 = vld [vmem:[%s3075 + $0x34] sm:$0xf]
  %v3090 = vld [vmem:[%s3075 + $0x38] sm:$0xf]
  %v3106 = vunpack.c.l.b16 %v3076
  %v3107 = vunpack.c.l.b16 %v3077
  %v3108 = vunpack.c.l.b16 %v3078
  %v3109 = vunpack.c.l.b16 %v3079
  %v3110 = vunpack.c.l.b16 %v3080
  %v3111 = vunpack.c.l.b16 %v3081
  %v3112 = vunpack.c.l.b16 %v3082
  %v3113 = vunpack.c.l.b16 %v3083
  %v3114 = vunpack.c.l.b16 %v3084
  %v3115 = vunpack.c.l.b16 %v3085
  %v3116 = vunpack.c.l.b16 %v3086
  %v3117 = vunpack.c.l.b16 %v3087
  %v3118 = vunpack.c.l.b16 %v3088
  %v3119 = vunpack.c.l.b16 %v3089
  %v3120 = vunpack.c.l.b16 %v3090
  %v3121 = vpack.c.b16 %v3107, %v3106
  %v3122 = vpack.c.b16 %v3109, %v3108
  %v3123 = vpack.c.b16 %v3111, %v3110
  %v3124 = vpack.c.b16 %v3113, %v3112
  %v3125 = vpack.c.b16 %v3115, %v3114
  %v3126 = vpack.c.b16 %v3117, %v3116
  %v3127 = vpack.c.b16 %v3119, %v3118
  %v3128 = vpack.c.b16 %v3120, %v3120
  %3129 = vrot.lane.b32.xlu0 %v2876, 126
  %v3130 = vpop.permute.xlu0 %3129
  %3131 = vrot.lane.b32.xlu0 %v2877, 126
  %v3132 = vpop.permute.xlu0 %3131
  %3133 = vrot.lane.b32.xlu0 %v2878, 126
  %v3134 = vpop.permute.xlu0 %3133
  %3135 = vrot.lane.b32.xlu0 %v2879, 126
  %v3136 = vpop.permute.xlu0 %3135
  %3137 = vrot.lane.b32.xlu0 %v2880, 126
  %v3138 = vpop.permute.xlu0 %3137
  %v3145 = vsel %vm234, %v3121, 0
  %v3148 = vsel %vm234, %v3122, 0
  %v3151 = vsel %vm234, %v3123, 0
  %v3154 = vsel %vm234, %v3124, 0
  %v3157 = vsel %vm234, %v3125, 0
  %v3160 = vsel %vm234, %v3126, 0
  %v3163 = vsel %vm234, %v3127, 0
  %v3166 = vsel %vm234, %v3128, 0
  %3168 = vmatpush.bf16.msra.mxu0 0
  %3169 = vmatpush.bf16.msra.mxu0 0
  %3170 = vmatpush.bf16.msra.mxu0 0
  %3171 = vmatpush.bf16.msra.mxu0 %v3138
  %3172 = vmatpush.bf16.msra.mxu0 %v3136
  %3173 = vmatpush.bf16.msra.mxu0 %v3134
  %3174 = vmatpush.bf16.msra.mxu0 %v3132
  %3175 = vmatpush.bf16.msra.mxu0 %v3130
  %3176 = vmatmul.bf16.gmra.mxu0 %v3145
  %v3177 = vpop.f32.mrf.mxu0
  %v3178 = vadd.f32 0.0, %v3177
  %v3179 = vpop.f32.mrf.mxu0
  %v3180 = vadd.f32 0.0, %v3179
  %3181 = vmatmul.bf16.gmra.mxu0 %v3148
  %v3182 = vpop.f32.mrf.mxu0
  %v3183 = vadd.f32 0.0, %v3182
  %v3184 = vpop.f32.mrf.mxu0
  %v3185 = vadd.f32 0.0, %v3184
  %3186 = vmatmul.bf16.gmra.mxu0 %v3151
  %v3187 = vpop.f32.mrf.mxu0
  %v3188 = vadd.f32 0.0, %v3187
  %v3189 = vpop.f32.mrf.mxu0
  %v3190 = vadd.f32 0.0, %v3189
  %3191 = vmatmul.bf16.gmra.mxu0 %v3154
  %v3192 = vpop.f32.mrf.mxu0
  %v3193 = vadd.f32 0.0, %v3192
  %v3194 = vpop.f32.mrf.mxu0
  %v3195 = vadd.f32 0.0, %v3194
  %3196 = vmatmul.bf16.gmra.mxu0 %v3157
  %v3197 = vpop.f32.mrf.mxu0
  %v3198 = vadd.f32 0.0, %v3197
  %v3199 = vpop.f32.mrf.mxu0
  %v3200 = vadd.f32 0.0, %v3199
  %3201 = vmatmul.bf16.gmra.mxu0 %v3160
  %v3202 = vpop.f32.mrf.mxu0
  %v3203 = vadd.f32 0.0, %v3202
  %v3204 = vpop.f32.mrf.mxu0
  %v3205 = vadd.f32 0.0, %v3204
  %3206 = vmatmul.bf16.gmra.mxu0 %v3163
  %v3207 = vpop.f32.mrf.mxu0
  %v3208 = vadd.f32 0.0, %v3207
  %v3209 = vpop.f32.mrf.mxu0
  %v3210 = vadd.f32 0.0, %v3209
  %3211 = vmatmul.bf16.gmra.mxu0 %v3166
  %v3212 = vpop.f32.mrf.mxu0
  %v3213 = vadd.f32 0.0, %v3212
  %v3214 = vpop.f32.mrf.mxu0
  %3215 = vdwg.mxu0
  %v3216 = vadd.f32 %v3037, %v3178
  %v3217 = vadd.f32 %v3039, %v3180
  %v3218 = vadd.f32 %v3042, %v3183
  %v3219 = vadd.f32 %v3044, %v3185
  %v3220 = vadd.f32 %v3047, %v3188
  %v3221 = vadd.f32 %v3049, %v3190
  %v3222 = vadd.f32 %v3052, %v3193
  %v3223 = vadd.f32 %v3054, %v3195
  %v3224 = vadd.f32 %v3057, %v3198
  %v3225 = vadd.f32 %v3059, %v3200
  %v3226 = vadd.f32 %v3062, %v3203
  %v3227 = vadd.f32 %v3064, %v3205
  %v3228 = vadd.f32 %v3067, %v3208
  %v3229 = vadd.f32 %v3069, %v3210
  %v3230 = vadd.f32 %v3072, %v3213
  %s3231 = scalar_lea.vmem %s14, 120
  %v3232 = vld [vmem:[%s3231] sm:$0xf]
  %v3233 = vld [vmem:[%s3231 + $0x4] sm:$0xf]
  %v3234 = vld [vmem:[%s3231 + $0x8] sm:$0xf]
  %v3235 = vld [vmem:[%s3231 + $0xc] sm:$0xf]
  %v3236 = vld [vmem:[%s3231 + $0x10] sm:$0xf]
  %v3237 = vld [vmem:[%s3231 + $0x14] sm:$0xf]
  %v3238 = vld [vmem:[%s3231 + $0x18] sm:$0xf]
  %v3239 = vld [vmem:[%s3231 + $0x1c] sm:$0xf]
  %v3240 = vld [vmem:[%s3231 + $0x20] sm:$0xf]
  %v3241 = vld [vmem:[%s3231 + $0x24] sm:$0xf]
  %v3242 = vld [vmem:[%s3231 + $0x28] sm:$0xf]
  %v3243 = vld [vmem:[%s3231 + $0x2c] sm:$0xf]
  %v3244 = vld [vmem:[%s3231 + $0x30] sm:$0xf]
  %v3245 = vld [vmem:[%s3231 + $0x34] sm:$0xf]
  %v3246 = vld [vmem:[%s3231 + $0x38] sm:$0xf]
  %v3262 = vunpack.c.l.b16 %v3232
  %v3263 = vunpack.c.l.b16 %v3233
  %v3264 = vunpack.c.l.b16 %v3234
  %v3265 = vunpack.c.l.b16 %v3235
  %v3266 = vunpack.c.l.b16 %v3236
  %v3267 = vunpack.c.l.b16 %v3237
  %v3268 = vunpack.c.l.b16 %v3238
  %v3269 = vunpack.c.l.b16 %v3239
  %v3270 = vunpack.c.l.b16 %v3240
  %v3271 = vunpack.c.l.b16 %v3241
  %v3272 = vunpack.c.l.b16 %v3242
  %v3273 = vunpack.c.l.b16 %v3243
  %v3274 = vunpack.c.l.b16 %v3244
  %v3275 = vunpack.c.l.b16 %v3245
  %v3276 = vunpack.c.l.b16 %v3246
  %v3277 = vpack.c.b16 %v3263, %v3262
  %v3278 = vpack.c.b16 %v3265, %v3264
  %v3279 = vpack.c.b16 %v3267, %v3266
  %v3280 = vpack.c.b16 %v3269, %v3268
  %v3281 = vpack.c.b16 %v3271, %v3270
  %v3282 = vpack.c.b16 %v3273, %v3272
  %v3283 = vpack.c.b16 %v3275, %v3274
  %v3284 = vpack.c.b16 %v3276, %v3276
  %3285 = vrot.lane.b32.xlu0 %v2876, 124
  %v3286 = vpop.permute.xlu0 %3285
  %3287 = vrot.lane.b32.xlu0 %v2877, 124
  %v3288 = vpop.permute.xlu0 %3287
  %3289 = vrot.lane.b32.xlu0 %v2878, 124
  %v3290 = vpop.permute.xlu0 %3289
  %3291 = vrot.lane.b32.xlu0 %v2879, 124
  %v3292 = vpop.permute.xlu0 %3291
  %3293 = vrot.lane.b32.xlu0 %v2880, 124
  %v3294 = vpop.permute.xlu0 %3293
  %v3301 = vsel %vm234, %v3277, 0
  %v3304 = vsel %vm234, %v3278, 0
  %v3307 = vsel %vm234, %v3279, 0
  %v3310 = vsel %vm234, %v3280, 0
  %v3313 = vsel %vm234, %v3281, 0
  %v3316 = vsel %vm234, %v3282, 0
  %v3319 = vsel %vm234, %v3283, 0
  %v3322 = vsel %vm234, %v3284, 0
  %3324 = vmatpush.bf16.msra.mxu0 0
  %3325 = vmatpush.bf16.msra.mxu0 0
  %3326 = vmatpush.bf16.msra.mxu0 0
  %3327 = vmatpush.bf16.msra.mxu0 %v3294
  %3328 = vmatpush.bf16.msra.mxu0 %v3292
  %3329 = vmatpush.bf16.msra.mxu0 %v3290
  %3330 = vmatpush.bf16.msra.mxu0 %v3288
  %3331 = vmatpush.bf16.msra.mxu0 %v3286
  %3332 = vmatmul.bf16.gmra.mxu0 %v3301
  %v3333 = vpop.f32.mrf.mxu0
  %v3334 = vadd.f32 0.0, %v3333
  %v3335 = vpop.f32.mrf.mxu0
  %v3336 = vadd.f32 0.0, %v3335
  %3337 = vmatmul.bf16.gmra.mxu0 %v3304
  %v3338 = vpop.f32.mrf.mxu0
  %v3339 = vadd.f32 0.0, %v3338
  %v3340 = vpop.f32.mrf.mxu0
  %v3341 = vadd.f32 0.0, %v3340
  %3342 = vmatmul.bf16.gmra.mxu0 %v3307
  %v3343 = vpop.f32.mrf.mxu0
  %v3344 = vadd.f32 0.0, %v3343
  %v3345 = vpop.f32.mrf.mxu0
  %v3346 = vadd.f32 0.0, %v3345
  %3347 = vmatmul.bf16.gmra.mxu0 %v3310
  %v3348 = vpop.f32.mrf.mxu0
  %v3349 = vadd.f32 0.0, %v3348
  %v3350 = vpop.f32.mrf.mxu0
  %v3351 = vadd.f32 0.0, %v3350
  %3352 = vmatmul.bf16.gmra.mxu0 %v3313
  %v3353 = vpop.f32.mrf.mxu0
  %v3354 = vadd.f32 0.0, %v3353
  %v3355 = vpop.f32.mrf.mxu0
  %v3356 = vadd.f32 0.0, %v3355
  %3357 = vmatmul.bf16.gmra.mxu0 %v3316
  %v3358 = vpop.f32.mrf.mxu0
  %v3359 = vadd.f32 0.0, %v3358
  %v3360 = vpop.f32.mrf.mxu0
  %v3361 = vadd.f32 0.0, %v3360
  %3362 = vmatmul.bf16.gmra.mxu0 %v3319
  %v3363 = vpop.f32.mrf.mxu0
  %v3364 = vadd.f32 0.0, %v3363
  %v3365 = vpop.f32.mrf.mxu0
  %v3366 = vadd.f32 0.0, %v3365
  %3367 = vmatmul.bf16.gmra.mxu0 %v3322
  %v3368 = vpop.f32.mrf.mxu0
  %v3369 = vadd.f32 0.0, %v3368
  %v3370 = vpop.f32.mrf.mxu0
  %3371 = vdwg.mxu0
  %v3372 = vadd.f32 %v3216, %v3334
  %v3373 = vadd.f32 %v3217, %v3336
  %v3374 = vadd.f32 %v3218, %v3339
  %v3375 = vadd.f32 %v3219, %v3341
  %v3376 = vadd.f32 %v3220, %v3344
  %v3377 = vadd.f32 %v3221, %v3346
  %v3378 = vadd.f32 %v3222, %v3349
  %v3379 = vadd.f32 %v3223, %v3351
  %v3380 = vadd.f32 %v3224, %v3354
  %v3381 = vadd.f32 %v3225, %v3356
  %v3382 = vadd.f32 %v3226, %v3359
  %v3383 = vadd.f32 %v3227, %v3361
  %v3384 = vadd.f32 %v3228, %v3364
  %v3385 = vadd.f32 %v3229, %v3366
  %v3386 = vadd.f32 %v3230, %v3369
  %s3387 = scalar_lea.vmem %s14, 180
  %v3388 = vld [vmem:[%s3387] sm:$0xf]
  %v3389 = vld [vmem:[%s3387 + $0x4] sm:$0xf]
  %v3390 = vld [vmem:[%s3387 + $0x8] sm:$0xf]
  %v3391 = vld [vmem:[%s3387 + $0xc] sm:$0xf]
  %v3392 = vld [vmem:[%s3387 + $0x10] sm:$0xf]
  %v3393 = vld [vmem:[%s3387 + $0x14] sm:$0xf]
  %v3394 = vld [vmem:[%s3387 + $0x18] sm:$0xf]
  %v3395 = vld [vmem:[%s3387 + $0x1c] sm:$0xf]
  %v3396 = vld [vmem:[%s3387 + $0x20] sm:$0xf]
  %v3397 = vld [vmem:[%s3387 + $0x24] sm:$0xf]
  %v3398 = vld [vmem:[%s3387 + $0x28] sm:$0xf]
  %v3399 = vld [vmem:[%s3387 + $0x2c] sm:$0xf]
  %v3400 = vld [vmem:[%s3387 + $0x30] sm:$0xf]
  %v3401 = vld [vmem:[%s3387 + $0x34] sm:$0xf]
  %v3402 = vld [vmem:[%s3387 + $0x38] sm:$0xf]
  %v3418 = vunpack.c.l.b16 %v3388
  %v3419 = vunpack.c.l.b16 %v3389
  %v3420 = vunpack.c.l.b16 %v3390
  %v3421 = vunpack.c.l.b16 %v3391
  %v3422 = vunpack.c.l.b16 %v3392
  %v3423 = vunpack.c.l.b16 %v3393
  %v3424 = vunpack.c.l.b16 %v3394
  %v3425 = vunpack.c.l.b16 %v3395
  %v3426 = vunpack.c.l.b16 %v3396
  %v3427 = vunpack.c.l.b16 %v3397
  %v3428 = vunpack.c.l.b16 %v3398
  %v3429 = vunpack.c.l.b16 %v3399
  %v3430 = vunpack.c.l.b16 %v3400
  %v3431 = vunpack.c.l.b16 %v3401
  %v3432 = vunpack.c.l.b16 %v3402
  %v3433 = vpack.c.b16 %v3419, %v3418
  %v3434 = vpack.c.b16 %v3421, %v3420
  %v3435 = vpack.c.b16 %v3423, %v3422
  %v3436 = vpack.c.b16 %v3425, %v3424
  %v3437 = vpack.c.b16 %v3427, %v3426
  %v3438 = vpack.c.b16 %v3429, %v3428
  %v3439 = vpack.c.b16 %v3431, %v3430
  %v3440 = vpack.c.b16 %v3432, %v3432
  %3441 = vrot.lane.b32.xlu0 %v2876, 122
  %v3442 = vpop.permute.xlu0 %3441
  %3443 = vrot.lane.b32.xlu0 %v2877, 122
  %v3444 = vpop.permute.xlu0 %3443
  %3445 = vrot.lane.b32.xlu0 %v2878, 122
  %v3446 = vpop.permute.xlu0 %3445
  %3447 = vrot.lane.b32.xlu0 %v2879, 122
  %v3448 = vpop.permute.xlu0 %3447
  %3449 = vrot.lane.b32.xlu0 %v2880, 122
  %v3450 = vpop.permute.xlu0 %3449
  %v3457 = vsel %vm234, %v3433, 0
  %v3460 = vsel %vm234, %v3434, 0
  %v3463 = vsel %vm234, %v3435, 0
  %v3466 = vsel %vm234, %v3436, 0
  %v3469 = vsel %vm234, %v3437, 0
  %v3472 = vsel %vm234, %v3438, 0
  %v3475 = vsel %vm234, %v3439, 0
  %v3478 = vsel %vm234, %v3440, 0
  %3480 = vmatpush.bf16.msra.mxu0 0
  %3481 = vmatpush.bf16.msra.mxu0 0
  %3482 = vmatpush.bf16.msra.mxu0 0
  %3483 = vmatpush.bf16.msra.mxu0 %v3450
  %3484 = vmatpush.bf16.msra.mxu0 %v3448
  %3485 = vmatpush.bf16.msra.mxu0 %v3446
  %3486 = vmatpush.bf16.msra.mxu0 %v3444
  %3487 = vmatpush.bf16.msra.mxu0 %v3442
  %3488 = vmatmul.bf16.gmra.mxu0 %v3457
  %v3489 = vpop.f32.mrf.mxu0
  %v3490 = vadd.f32 0.0, %v3489
  %v3491 = vpop.f32.mrf.mxu0
  %v3492 = vadd.f32 0.0, %v3491
  %3493 = vmatmul.bf16.gmra.mxu0 %v3460
  %v3494 = vpop.f32.mrf.mxu0
  %v3495 = vadd.f32 0.0, %v3494
  %v3496 = vpop.f32.mrf.mxu0
  %v3497 = vadd.f32 0.0, %v3496
  %3498 = vmatmul.bf16.gmra.mxu0 %v3463
  %v3499 = vpop.f32.mrf.mxu0
  %v3500 = vadd.f32 0.0, %v3499
  %v3501 = vpop.f32.mrf.mxu0
  %v3502 = vadd.f32 0.0, %v3501
  %3503 = vmatmul.bf16.gmra.mxu0 %v3466
  %v3504 = vpop.f32.mrf.mxu0
  %v3505 = vadd.f32 0.0, %v3504
  %v3506 = vpop.f32.mrf.mxu0
  %v3507 = vadd.f32 0.0, %v3506
  %3508 = vmatmul.bf16.gmra.mxu0 %v3469
  %v3509 = vpop.f32.mrf.mxu0
  %v3510 = vadd.f32 0.0, %v3509
  %v3511 = vpop.f32.mrf.mxu0
  %v3512 = vadd.f32 0.0, %v3511
  %3513 = vmatmul.bf16.gmra.mxu0 %v3472
  %v3514 = vpop.f32.mrf.mxu0
  %v3515 = vadd.f32 0.0, %v3514
  %v3516 = vpop.f32.mrf.mxu0
  %v3517 = vadd.f32 0.0, %v3516
  %3518 = vmatmul.bf16.gmra.mxu0 %v3475
  %v3519 = vpop.f32.mrf.mxu0
  %v3520 = vadd.f32 0.0, %v3519
  %v3521 = vpop.f32.mrf.mxu0
  %v3522 = vadd.f32 0.0, %v3521
  %3523 = vmatmul.bf16.gmra.mxu0 %v3478
  %v3524 = vpop.f32.mrf.mxu0
  %v3525 = vadd.f32 0.0, %v3524
  %v3526 = vpop.f32.mrf.mxu0
  %3527 = vdwg.mxu0
  %v3528 = vadd.f32 %v3372, %v3490
  %v3529 = vadd.f32 %v3373, %v3492
  %v3530 = vadd.f32 %v3374, %v3495
  %v3531 = vadd.f32 %v3375, %v3497
  %v3532 = vadd.f32 %v3376, %v3500
  %v3533 = vadd.f32 %v3377, %v3502
  %v3534 = vadd.f32 %v3378, %v3505
  %v3535 = vadd.f32 %v3379, %v3507
  %v3536 = vadd.f32 %v3380, %v3510
  %v3537 = vadd.f32 %v3381, %v3512
  %v3538 = vadd.f32 %v3382, %v3515
  %v3539 = vadd.f32 %v3383, %v3517
  %v3540 = vadd.f32 %v3384, %v3520
  %v3541 = vadd.f32 %v3385, %v3522
  %v3542 = vadd.f32 %v3386, %v3525
  %s3543 = scalar_lea.vmem %s14, 240
  %v3544 = vld [vmem:[%s3543] sm:$0xf]
  %v3545 = vld [vmem:[%s3543 + $0x4] sm:$0xf]
  %v3546 = vld [vmem:[%s3543 + $0x8] sm:$0xf]
  %v3547 = vld [vmem:[%s3543 + $0xc] sm:$0xf]
  %v3548 = vld [vmem:[%s3543 + $0x10] sm:$0xf]
  %v3549 = vld [vmem:[%s3543 + $0x14] sm:$0xf]
  %v3550 = vld [vmem:[%s3543 + $0x18] sm:$0xf]
  %v3551 = vld [vmem:[%s3543 + $0x1c] sm:$0xf]
  %v3552 = vld [vmem:[%s3543 + $0x20] sm:$0xf]
  %v3553 = vld [vmem:[%s3543 + $0x24] sm:$0xf]
  %v3554 = vld [vmem:[%s3543 + $0x28] sm:$0xf]
  %v3555 = vld [vmem:[%s3543 + $0x2c] sm:$0xf]
  %v3556 = vld [vmem:[%s3543 + $0x30] sm:$0xf]
  %v3557 = vld [vmem:[%s3543 + $0x34] sm:$0xf]
  %v3558 = vld [vmem:[%s3543 + $0x38] sm:$0xf]
  %v3574 = vunpack.c.l.b16 %v3544
  %v3575 = vunpack.c.l.b16 %v3545
  %v3576 = vunpack.c.l.b16 %v3546
  %v3577 = vunpack.c.l.b16 %v3547
  %v3578 = vunpack.c.l.b16 %v3548
  %v3579 = vunpack.c.l.b16 %v3549
  %v3580 = vunpack.c.l.b16 %v3550
  %v3581 = vunpack.c.l.b16 %v3551
  %v3582 = vunpack.c.l.b16 %v3552
  %v3583 = vunpack.c.l.b16 %v3553
  %v3584 = vunpack.c.l.b16 %v3554
  %v3585 = vunpack.c.l.b16 %v3555
  %v3586 = vunpack.c.l.b16 %v3556
  %v3587 = vunpack.c.l.b16 %v3557
  %v3588 = vunpack.c.l.b16 %v3558
  %v3589 = vpack.c.b16 %v3575, %v3574
  %v3590 = vpack.c.b16 %v3577, %v3576
  %v3591 = vpack.c.b16 %v3579, %v3578
  %v3592 = vpack.c.b16 %v3581, %v3580
  %v3593 = vpack.c.b16 %v3583, %v3582
  %v3594 = vpack.c.b16 %v3585, %v3584
  %v3595 = vpack.c.b16 %v3587, %v3586
  %v3596 = vpack.c.b16 %v3588, %v3588
  %3597 = vrot.lane.b32.xlu0 %v2876, 120
  %v3598 = vpop.permute.xlu0 %3597
  %3599 = vrot.lane.b32.xlu0 %v2877, 120
  %v3600 = vpop.permute.xlu0 %3599
  %3601 = vrot.lane.b32.xlu0 %v2878, 120
  %v3602 = vpop.permute.xlu0 %3601
  %3603 = vrot.lane.b32.xlu0 %v2879, 120
  %v3604 = vpop.permute.xlu0 %3603
  %3605 = vrot.lane.b32.xlu0 %v2880, 120
  %v3606 = vpop.permute.xlu0 %3605
  %v3613 = vsel %vm234, %v3589, 0
  %v3616 = vsel %vm234, %v3590, 0
  %v3619 = vsel %vm234, %v3591, 0
  %v3622 = vsel %vm234, %v3592, 0
  %v3625 = vsel %vm234, %v3593, 0
  %v3628 = vsel %vm234, %v3594, 0
  %v3631 = vsel %vm234, %v3595, 0
  %v3634 = vsel %vm234, %v3596, 0
  %3636 = vmatpush.bf16.msra.mxu0 0
  %3637 = vmatpush.bf16.msra.mxu0 0
  %3638 = vmatpush.bf16.msra.mxu0 0
  %3639 = vmatpush.bf16.msra.mxu0 %v3606
  %3640 = vmatpush.bf16.msra.mxu0 %v3604
  %3641 = vmatpush.bf16.msra.mxu0 %v3602
  %3642 = vmatpush.bf16.msra.mxu0 %v3600
  %3643 = vmatpush.bf16.msra.mxu0 %v3598
  %3644 = vmatmul.bf16.gmra.mxu0 %v3613
  %v3645 = vpop.f32.mrf.mxu0
  %v3646 = vadd.f32 0.0, %v3645
  %v3647 = vpop.f32.mrf.mxu0
  %v3648 = vadd.f32 0.0, %v3647
  %3649 = vmatmul.bf16.gmra.mxu0 %v3616
  %v3650 = vpop.f32.mrf.mxu0
  %v3651 = vadd.f32 0.0, %v3650
  %v3652 = vpop.f32.mrf.mxu0
  %v3653 = vadd.f32 0.0, %v3652
  %3654 = vmatmul.bf16.gmra.mxu0 %v3619
  %v3655 = vpop.f32.mrf.mxu0
  %v3656 = vadd.f32 0.0, %v3655
  %v3657 = vpop.f32.mrf.mxu0
  %v3658 = vadd.f32 0.0, %v3657
  %3659 = vmatmul.bf16.gmra.mxu0 %v3622
  %v3660 = vpop.f32.mrf.mxu0
  %v3661 = vadd.f32 0.0, %v3660
  %v3662 = vpop.f32.mrf.mxu0
  %v3663 = vadd.f32 0.0, %v3662
  %3664 = vmatmul.bf16.gmra.mxu0 %v3625
  %v3665 = vpop.f32.mrf.mxu0
  %v3666 = vadd.f32 0.0, %v3665
  %v3667 = vpop.f32.mrf.mxu0
  %v3668 = vadd.f32 0.0, %v3667
  %3669 = vmatmul.bf16.gmra.mxu0 %v3628
  %v3670 = vpop.f32.mrf.mxu0
  %v3671 = vadd.f32 0.0, %v3670
  %v3672 = vpop.f32.mrf.mxu0
  %v3673 = vadd.f32 0.0, %v3672
  %3674 = vmatmul.bf16.gmra.mxu0 %v3631
  %v3675 = vpop.f32.mrf.mxu0
  %v3676 = vadd.f32 0.0, %v3675
  %v3677 = vpop.f32.mrf.mxu0
  %v3678 = vadd.f32 0.0, %v3677
  %3679 = vmatmul.bf16.gmra.mxu0 %v3634
  %v3680 = vpop.f32.mrf.mxu0
  %v3681 = vadd.f32 0.0, %v3680
  %v3682 = vpop.f32.mrf.mxu0
  %3683 = vdwg.mxu0
  %v3684 = vadd.f32 %v3528, %v3646
  %v3685 = vadd.f32 %v3529, %v3648
  %v3686 = vadd.f32 %v3530, %v3651
  %v3687 = vadd.f32 %v3531, %v3653
  %v3688 = vadd.f32 %v3532, %v3656
  %v3689 = vadd.f32 %v3533, %v3658
  %v3690 = vadd.f32 %v3534, %v3661
  %v3691 = vadd.f32 %v3535, %v3663
  %v3692 = vadd.f32 %v3536, %v3666
  %v3693 = vadd.f32 %v3537, %v3668
  %v3694 = vadd.f32 %v3538, %v3671
  %v3695 = vadd.f32 %v3539, %v3673
  %v3696 = vadd.f32 %v3540, %v3676
  %v3697 = vadd.f32 %v3541, %v3678
  %v3698 = vadd.f32 %v3542, %v3681
  %v3699 = vld [vmem:[%s16] sm:$0xff]
  %v3700 = vld [vmem:[%s16 + $0x8] sm:$0xff]
  %v3701 = vld [vmem:[%s16 + $0x10] sm:$0xff]
  %v3702 = vld [vmem:[%s16 + $0x18] sm:$0xff]
  %v3703 = vld [vmem:[%s16 + $0x20] sm:$0xff]
  %v3704 = vld [vmem:[%s16 + $0x28] sm:$0xff]
  %v3705 = vld [vmem:[%s16 + $0x30] sm:$0xff]
  %v3706 = vld [vmem:[%s16 + $0x38] sm:$0xff]
  %v3707 = vld [vmem:[%s16 + $0x40] sm:$0xff]
  %v3708 = vld [vmem:[%s16 + $0x48] sm:$0xff]
  %v3709 = vld [vmem:[%s16 + $0x50] sm:$0xff]
  %v3710 = vld [vmem:[%s16 + $0x58] sm:$0xff]
  %v3711 = vld [vmem:[%s16 + $0x60] sm:$0xff]
  %v3712 = vld [vmem:[%s16 + $0x68] sm:$0xff]
  %v3713 = vld [vmem:[%s16 + $0x70] sm:$0xff]
  %3715 = vset.pattern.permute.xlu0 0
  %3716 = vperm.xlu0 %3715, %v3699
  %v3717 = vpop.permute.xlu0 %3716
  %3720 = vset.pattern.permute.xlu0 0
  %3721 = vperm.xlu0 %3720, %v3700
  %v3722 = vpop.permute.xlu0 %3721
  %3725 = vset.pattern.permute.xlu0 0
  %3726 = vperm.xlu0 %3725, %v3701
  %v3727 = vpop.permute.xlu0 %3726
  %3730 = vset.pattern.permute.xlu0 0
  %3731 = vperm.xlu0 %3730, %v3702
  %v3732 = vpop.permute.xlu0 %3731
  %3735 = vset.pattern.permute.xlu0 0
  %3736 = vperm.xlu0 %3735, %v3703
  %v3737 = vpop.permute.xlu0 %3736
  %3740 = vset.pattern.permute.xlu0 0
  %3741 = vperm.xlu0 %3740, %v3704
  %v3742 = vpop.permute.xlu0 %3741
  %3745 = vset.pattern.permute.xlu0 0
  %3746 = vperm.xlu0 %3745, %v3705
  %v3747 = vpop.permute.xlu0 %3746
  %3750 = vset.pattern.permute.xlu0 0
  %3751 = vperm.xlu0 %3750, %v3706
  %v3752 = vpop.permute.xlu0 %3751
  %3755 = vset.pattern.permute.xlu0 0
  %3756 = vperm.xlu0 %3755, %v3707
  %v3757 = vpop.permute.xlu0 %3756
  %3760 = vset.pattern.permute.xlu0 0
  %3761 = vperm.xlu0 %3760, %v3708
  %v3762 = vpop.permute.xlu0 %3761
  %3765 = vset.pattern.permute.xlu0 0
  %3766 = vperm.xlu0 %3765, %v3709
  %v3767 = vpop.permute.xlu0 %3766
  %3770 = vset.pattern.permute.xlu0 0
  %3771 = vperm.xlu0 %3770, %v3710
  %v3772 = vpop.permute.xlu0 %3771
  %3775 = vset.pattern.permute.xlu0 0
  %3776 = vperm.xlu0 %3775, %v3711
  %v3777 = vpop.permute.xlu0 %3776
  %3780 = vset.pattern.permute.xlu0 0
  %3781 = vperm.xlu0 %3780, %v3712
  %v3782 = vpop.permute.xlu0 %3781
  %3785 = vset.pattern.permute.xlu0 0
  %3786 = vperm.xlu0 %3785, %v3713
  %v3787 = vpop.permute.xlu0 %3786
  %v3789 = vadd.f32 %v3684, %v3717
  %v3790 = vadd.f32 %v3685, %v3722
  %v3791 = vadd.f32 %v3686, %v3727
  %v3792 = vadd.f32 %v3687, %v3732
  %v3793 = vadd.f32 %v3688, %v3737
  %v3794 = vadd.f32 %v3689, %v3742
  %v3795 = vadd.f32 %v3690, %v3747
  %v3796 = vadd.f32 %v3691, %v3752
  %v3797 = vadd.f32 %v3692, %v3757
  %v3798 = vadd.f32 %v3693, %v3762
  %v3799 = vadd.f32 %v3694, %v3767
  %v3800 = vadd.f32 %v3695, %v3772
  %v3801 = vadd.f32 %v3696, %v3777
  %v3802 = vadd.f32 %v3697, %v3782
  %v3803 = vadd.f32 %v3698, %v3787
  %v3804 = vmax.f32 %v3789, 0.0
  %v3805 = vmax.f32 %v3790, 0.0
  %v3806 = vmax.f32 %v3791, 0.0
  %v3807 = vmax.f32 %v3792, 0.0
  %v3808 = vmax.f32 %v3793, 0.0
  %v3809 = vmax.f32 %v3794, 0.0
  %v3810 = vmax.f32 %v3795, 0.0
  %v3811 = vmax.f32 %v3796, 0.0
  %v3812 = vmax.f32 %v3797, 0.0
  %v3813 = vmax.f32 %v3798, 0.0
  %v3814 = vmax.f32 %v3799, 0.0
  %v3815 = vmax.f32 %v3800, 0.0
  %v3816 = vmax.f32 %v3801, 0.0
  %v3817 = vmax.f32 %v3802, 0.0
  %v3818 = vmax.f32 %v3803, 0.0
  %v3819 = vpack.c.bf16 %v3805, %v3804
  %v3820 = vpack.c.bf16 %v3807, %v3806
  %v3821 = vpack.c.bf16 %v3809, %v3808
  %v3822 = vpack.c.bf16 %v3811, %v3810
  %v3823 = vpack.c.bf16 %v3813, %v3812
  %v3824 = vpack.c.bf16 %v3815, %v3814
  %v3825 = vpack.c.bf16 %v3817, %v3816
  %v3826 = vpack.c.bf16 %v3818, %v3818
  %v3827 = vld [vmem:[%s17] sm:$0xf]
  %v3828 = vld [vmem:[%s17 + $0x4] sm:$0xf]
  %v3829 = vld [vmem:[%s17 + $0x8] sm:$0xf]
  %v3830 = vld [vmem:[%s17 + $0xc] sm:$0xf]
  %v3831 = vld [vmem:[%s17 + $0x10] sm:$0xf]
  %v3832 = vld [vmem:[%s17 + $0x14] sm:$0xf]
  %v3833 = vld [vmem:[%s17 + $0x18] sm:$0xf]
  %v3834 = vld [vmem:[%s17 + $0x1c] sm:$0xf]
  %v3835 = vld [vmem:[%s17 + $0x20] sm:$0xf]
  %v3836 = vld [vmem:[%s17 + $0x24] sm:$0xf]
  %v3837 = vld [vmem:[%s18] sm:$0xff]
  %v3838 = vld [vmem:[%s18 + $0x8] sm:$0xff]
  %v3839 = vld [vmem:[%s18 + $0x10] sm:$0xff]
  %v3840 = vld [vmem:[%s18 + $0x18] sm:$0xff]
  %v3841 = vld [vmem:[%s18 + $0x20] sm:$0xff]
  %v3842 = vld [vmem:[%s18 + $0x28] sm:$0xff]
  %v3843 = vld [vmem:[%s18 + $0x30] sm:$0xff]
  %v3844 = vld [vmem:[%s18 + $0x38] sm:$0xff]
  %v3845 = vld [vmem:[%s18 + $0x40] sm:$0xff]
  %v3846 = vld [vmem:[%s18 + $0x48] sm:$0xff]
  %3848 = vset.pattern.permute.xlu0 0
  %3849 = vperm.xlu0 %3848, %v3837
  %v3850 = vpop.permute.xlu0 %3849
  %3853 = vset.pattern.permute.xlu0 0
  %3854 = vperm.xlu0 %3853, %v3838
  %v3855 = vpop.permute.xlu0 %3854
  %3858 = vset.pattern.permute.xlu0 0
  %3859 = vperm.xlu0 %3858, %v3839
  %v3860 = vpop.permute.xlu0 %3859
  %3863 = vset.pattern.permute.xlu0 0
  %3864 = vperm.xlu0 %3863, %v3840
  %v3865 = vpop.permute.xlu0 %3864
  %3868 = vset.pattern.permute.xlu0 0
  %3869 = vperm.xlu0 %3868, %v3841
  %v3870 = vpop.permute.xlu0 %3869
  %3873 = vset.pattern.permute.xlu0 0
  %3874 = vperm.xlu0 %3873, %v3842
  %v3875 = vpop.permute.xlu0 %3874
  %3878 = vset.pattern.permute.xlu0 0
  %3879 = vperm.xlu0 %3878, %v3843
  %v3880 = vpop.permute.xlu0 %3879
  %3883 = vset.pattern.permute.xlu0 0
  %3884 = vperm.xlu0 %3883, %v3844
  %v3885 = vpop.permute.xlu0 %3884
  %3888 = vset.pattern.permute.xlu0 0
  %3889 = vperm.xlu0 %3888, %v3845
  %v3890 = vpop.permute.xlu0 %3889
  %3893 = vset.pattern.permute.xlu0 0
  %3894 = vperm.xlu0 %3893, %v3846
  %v3895 = vpop.permute.xlu0 %3894
  %v3907 = vunpack.c.l.b16 %v3827
  %v3908 = vunpack.c.l.b16 %v3828
  %v3909 = vunpack.c.l.b16 %v3829
  %v3910 = vunpack.c.l.b16 %v3830
  %v3911 = vunpack.c.l.b16 %v3831
  %v3912 = vunpack.c.l.b16 %v3832
  %v3913 = vunpack.c.l.b16 %v3833
  %v3914 = vunpack.c.l.b16 %v3834
  %v3915 = vunpack.c.l.b16 %v3835
  %v3916 = vunpack.c.l.b16 %v3836
  %v3917 = vpack.c.b16 %v3908, %v3907
  %v3918 = vpack.c.b16 %v3910, %v3909
  %v3919 = vpack.c.b16 %v3912, %v3911
  %v3920 = vpack.c.b16 %v3914, %v3913
  %v3921 = vpack.c.b16 %v3916, %v3915
  %vm3922 = vcmask 982016
  %v3924 = vsel %vm3922, %v3917, 0
  %v3927 = vsel %vm3922, %v3918, 0
  %v3930 = vsel %vm3922, %v3919, 0
  %v3933 = vsel %vm3922, %v3920, 0
  %v3936 = vsel %vm3922, %v3921, 0
  %v3939 = vsel %vm1964, %v3826, 0
  %3941 = vmatpush.bf16.msra.mxu0 %v3939
  %3942 = vmatpush.bf16.msra.mxu0 %v3825
  %3943 = vmatpush.bf16.msra.mxu0 %v3824
  %3944 = vmatpush.bf16.msra.mxu0 %v3823
  %3945 = vmatpush.bf16.msra.mxu0 %v3822
  %3946 = vmatpush.bf16.msra.mxu0 %v3821
  %3947 = vmatpush.bf16.msra.mxu0 %v3820
  %3948 = vmatpush.bf16.msra.mxu0 %v3819
  %3949 = vmatmul.bf16.gmra.mxu0 %v3924
  %v3950 = vpop.f32.mrf.mxu0
  %v3951 = vadd.f32 %v3850, %v3950
  %v3952 = vpop.f32.mrf.mxu0
  %v3953 = vadd.f32 %v3855, %v3952
  %3954 = vmatmul.bf16.gmra.mxu0 %v3927
  %v3955 = vpop.f32.mrf.mxu0
  %v3956 = vadd.f32 %v3860, %v3955
  %v3957 = vpop.f32.mrf.mxu0
  %v3958 = vadd.f32 %v3865, %v3957
  %3959 = vmatmul.bf16.gmra.mxu0 %v3930
  %v3960 = vpop.f32.mrf.mxu0
  %v3961 = vadd.f32 %v3870, %v3960
  %v3962 = vpop.f32.mrf.mxu0
  %v3963 = vadd.f32 %v3875, %v3962
  %3964 = vmatmul.bf16.gmra.mxu0 %v3933
  %v3965 = vpop.f32.mrf.mxu0
  %v3966 = vadd.f32 %v3880, %v3965
  %v3967 = vpop.f32.mrf.mxu0
  %v3968 = vadd.f32 %v3885, %v3967
  %3969 = vmatmul.bf16.gmra.mxu0 %v3936
  %v3970 = vpop.f32.mrf.mxu0
  %v3971 = vadd.f32 %v3890, %v3970
  %v3972 = vpop.f32.mrf.mxu0
  %v3973 = vadd.f32 %v3895, %v3972
  %3974 = vdwg.mxu0
  %v3975 = vmax.f32 %v3951, 0.0
  %v3976 = vmax.f32 %v3953, 0.0
  %v3977 = vmax.f32 %v3956, 0.0
  %v3978 = vmax.f32 %v3958, 0.0
  %v3979 = vmax.f32 %v3961, 0.0
  %v3980 = vmax.f32 %v3963, 0.0
  %v3981 = vmax.f32 %v3966, 0.0
  %v3982 = vmax.f32 %v3968, 0.0
  %v3983 = vmax.f32 %v3971, 0.0
  %v3984 = vmax.f32 %v3973, 0.0
  %v3985 = vpack.c.bf16 %v3976, %v3975
  %v3986 = vpack.c.bf16 %v3978, %v3977
  %v3987 = vpack.c.bf16 %v3980, %v3979
  %v3988 = vpack.c.bf16 %v3982, %v3981
  %v3989 = vpack.c.bf16 %v3984, %v3983
  %v3990 = vld [vmem:[%s19] sm:$0xf]
  %v3991 = vld [vmem:[%s19 + $0x4] sm:$0xf]
  %v3992 = vld [vmem:[%s19 + $0x8] sm:$0xf]
  %v3993 = vld [vmem:[%s19 + $0xc] sm:$0x1]
  %v3994 = vld [vmem:[%s20] sm:$0xff]
  %v3995 = vld [vmem:[%s20 + $0x8] sm:$0xff]
  %v3996 = vld [vmem:[%s20 + $0x10] sm:$0xff]
  %v3997 = vld [vmem:[%s20 + $0x18] sm:$0x1]
  %3999 = vset.pattern.permute.xlu0 0
  %4000 = vperm.xlu0 %3999, %v3994
  %v4001 = vpop.permute.xlu0 %4000
  %4004 = vset.pattern.permute.xlu0 0
  %4005 = vperm.xlu0 %4004, %v3995
  %v4006 = vpop.permute.xlu0 %4005
  %4009 = vset.pattern.permute.xlu0 0
  %4010 = vperm.xlu0 %4009, %v3996
  %v4011 = vpop.permute.xlu0 %4010
  %4014 = vset.pattern.permute.xlu0 0
  %4015 = vperm.xlu0 %4014, %v3997
  %v4016 = vpop.permute.xlu0 %4015
  %v4022 = vunpack.c.l.b16 %v3990
  %v4023 = vunpack.c.l.b16 %v3991
  %v4024 = vunpack.c.l.b16 %v3992
  %v4025 = vunpack.c.l.b16 %v3993
  %v4026 = vpack.c.b16 %v4023, %v4022
  %v4027 = vpack.c.b16 %v4025, %v4024
  %v4029 = vsel %vm234, %v4026, 0
  %v4032 = vsel %vm234, %v4027, 0
  %4034 = vmatpush.bf16.msra.mxu0 0
  %4035 = vmatpush.bf16.msra.mxu0 0
  %4036 = vmatpush.bf16.msra.mxu0 0
  %4037 = vmatpush.bf16.msra.mxu0 %v3989
  %4038 = vmatpush.bf16.msra.mxu0 %v3988
  %4039 = vmatpush.bf16.msra.mxu0 %v3987
  %4040 = vmatpush.bf16.msra.mxu0 %v3986
  %4041 = vmatpush.bf16.msra.mxu0 %v3985
  %4042 = vmatmul.bf16.gmra.mxu0 %v4029
  %v4043 = vpop.f32.mrf.mxu0
  %v4044 = vadd.f32 %v4001, %v4043
  %v4045 = vpop.f32.mrf.mxu0
  %v4046 = vadd.f32 %v4006, %v4045
  %4047 = vmatmul.bf16.gmra.mxu0 %v4032
  %v4048 = vpop.f32.mrf.mxu0
  %v4049 = vadd.f32 %v4011, %v4048
  %v4050 = vpop.f32.mrf.mxu0
  %v4051 = vadd.f32 %v4016, %v4050
  %4052 = vdwg.mxu0
  %vm4053 = vcmask 15360
  %4054 = vst.msk [vmem:[%s21] sm:$0xff] %vm4053, %v4044
  %4055 = vst.msk [vmem:[%s21 + $0x8] sm:$0xff] %vm4053, %v4046
  %4056 = vst.msk [vmem:[%s21 + $0x10] sm:$0xff] %vm4053, %v4049
  %vm4057 = vcmask 8192
  %4058 = vst.msk [vmem:[%s21 + $0x18] sm:$0x1] %vm4057, %v4051
  // Predicated region
  $region86: #{policy_forward.1} parent=0 // pred_check
    _
  $region87: #{policy_forward.1} parent=0 // pred_check_branch
    %4060 = sbr.rel (0) target = $region89
  $region88: #{policy_forward.1} parent=0 // pred_region
    _
  $region89: #{policy_forward.1} parent=0 // pred_fallthru
    _
  // Predicated region
  $region90: #{policy_forward.1} parent=0 // pred_check
    _
  $region91: #{policy_forward.1} parent=0 // pred_check_branch
    %4062 = sbr.rel (0) target = $region93
  $region92: #{policy_forward.1} parent=0 // pred_region
    _
  $region93: #{policy_forward.1} parent=0 // pred_fallthru
    _

</llo_original>
